<compile_context>
chip_gen: v7x
topology: tpu7x:2x2x1
jax: 0.10.0
libtpu: 0.0.40
codegen_flags: <defaults>
</compile_context>

<pallas_src>
import functools
import math

import jax
import jax.numpy as jnp
from jax.experimental import pallas as pl
from jax.experimental.pallas import tpu as pltpu

LN_EPS = 1e-5


def _layer_norm(v, g, b):
    mu = jnp.mean(v, axis=-1, keepdims=True)
    var = jnp.mean(jnp.square(v - mu), axis=-1, keepdims=True)
    return (v - mu) * jax.lax.rsqrt(var + LN_EPS) * g + b


def encoder_layer_kernel(x_ref, ln1_g_ref, ln1_b_ref, wqkv_ref, wo_ref,
                         ln2_g_ref, ln2_b_ref, w1_ref, w2_ref, out_ref,
                         h2_sc, acc_sc,
                         *, num_heads, head_size, residual_scaling,
                         use_bf16_exp):
    k = pl.program_id(1)                      # ffn-chunk (reduction) axis
    nh, hd = num_heads, head_size
    Bt, S, H = x_ref.shape
    M = Bt * S

    # ---- attention + layernorms: once per batch block (first ffn chunk) ----
    @pl.when(k == 0)
    def _attention():
        x = x_ref[...].reshape(M, H).astype(jnp.float32)
        residual = x if residual_scaling == 1.0 else x * residual_scaling
        h = _layer_norm(x, ln1_g_ref[...], ln1_b_ref[...]).astype(jnp.bfloat16)

        # Fused qkv projection over all Bt*S rows (softmax scale already
        # folded into the Q columns of the weight on the host).
        qkv = jnp.dot(h, wqkv_ref[...], preferred_element_type=jnp.float32)
        q = qkv[:, 0 * H:1 * H].astype(jnp.bfloat16)
        kk = qkv[:, 1 * H:2 * H].astype(jnp.bfloat16)
        v = qkv[:, 2 * H:3 * H].astype(jnp.bfloat16)

        ctx_rows = []
        for bi in range(Bt):                  # attention per batch element
            r0 = bi * S
            qh = jnp.transpose(q[r0:r0 + S].reshape(S, nh, hd), (1, 0, 2))
            kh = jnp.transpose(kk[r0:r0 + S].reshape(S, nh, hd), (1, 0, 2))
            vh = jnp.transpose(v[r0:r0 + S].reshape(S, nh, hd), (1, 0, 2))

            s = jnp.einsum('nqd,nkd->nqk', qh, kh,
                           preferred_element_type=jnp.float32)      # (nh,S,S)
            z = s - jnp.max(s, axis=-1, keepdims=True)
            if use_bf16_exp:                  # v6e/v7x bf16 EUP, half the buffer
                z = z.astype(jnp.bfloat16)
            p = jnp.exp(z)
            denom = jnp.sum(p.astype(jnp.float32), axis=-1, keepdims=True)

            ctx_h = jnp.einsum('nqk,nkd->nqd', p.astype(jnp.bfloat16), vh,
                               preferred_element_type=jnp.float32)  # (nh,S,hd)
            # Deferred softmax normalization: per-row scale over hd, not S.
            ctx_h = ctx_h * pl.reciprocal(denom, approx=True)
            ctx_rows.append(jnp.transpose(ctx_h, (1, 0, 2)).reshape(S, H))

        ctx = ctx_rows[0] if Bt == 1 else jnp.concatenate(ctx_rows, axis=0)
        attn_out = jnp.dot(ctx.astype(jnp.bfloat16), wo_ref[...],
                           preferred_element_type=jnp.float32)
        h1 = residual + attn_out
        residual2 = h1 if residual_scaling == 1.0 else h1 * residual_scaling
        h2_sc[...] = _layer_norm(h1, ln2_g_ref[...], ln2_b_ref[...]
                                 ).astype(jnp.bfloat16)
        acc_sc[...] = residual2               # accumulator starts at residual

    # ---- MLP: one streamed ffn chunk per grid step (every k) ----
    ff = jnp.dot(h2_sc[...], w1_ref[...], preferred_element_type=jnp.float32)
    ff = jnp.maximum(ff, 0.0).astype(jnp.bfloat16)          # hidden_act='relu'
    acc_sc[...] = acc_sc[...] + jnp.dot(ff, w2_ref[...],
                                        preferred_element_type=jnp.float32)

    @pl.when(k == pl.num_programs(1) - 1)
    def _write():
        out_ref[...] = acc_sc[...].reshape(Bt, S, H).astype(out_ref.dtype)


def _vmem_capacity_bytes():
    try:
        cap = getattr(pltpu.get_tpu_info(), "vmem_capacity_bytes", None)
        if cap:
            return int(cap)
    except Exception:
        pass
    return 64 * 1024 * 1024                   # conservative (v7x per-TC)


def _use_bf16_exp():
    try:
        kind = jax.devices()[0].device_kind.lower()
    except Exception:
        return False
    # bf16 EUP only on v6e / v7x; keep f32 exp elsewhere (v5e and older).
    return any(t in kind for t in ("v6", "v7", "7x", "trillium"))


def _pick_ffn_chunk(ffn, requested):
    requested = min(requested, ffn)
    c = requested - requested % 128
    while c >= 128:                           # largest mult. of 128 dividing ffn
        if ffn % c == 0:
            return c
        c -= 128
    return ffn                                # single chunk (full dim is legal)


def _pick_batch_tile(b, s, max_rows=256):
    for cand in range(b, 0, -1):
        if b % cand == 0 and cand * s <= max(max_rows, s):
            return cand
    return 1


def encoder_layer(x, params, *, num_heads, head_size,
                  q_scaling=1.0, residual_scaling=1.0, ffn_chunk=2048):
    B, S, H = x.shape
    assert H == num_heads * head_size
    ln1_g, ln1_b, wqkv, wo, ln2_g, ln2_b, w1, w2 = params
    ffn = w1.shape[1]
    ffn_chunk = _pick_ffn_chunk(ffn, ffn_chunk)
    n_k = ffn // ffn_chunk
    Bt = _pick_batch_tile(B, S)
    Bb = B // Bt
    M = Bt * S

    # Host-side prep: fold softmax scale into the Q columns of the fused qkv
    # weight and cast matmul weights to bf16 (halves HBM traffic + VMEM).
    scale = 1.0 / (math.sqrt(head_size) * q_scaling)
    col_scale = jnp.concatenate(
        [jnp.full((1, H), scale, jnp.float32), jnp.ones((1, 2 * H), jnp.float32)],
        axis=1)
    wqkv_b = (wqkv.astype(jnp.float32) * col_scale).astype(jnp.bfloat16)
    wo_b = wo.astype(jnp.bfloat16)
    w1_b = w1.astype(jnp.bfloat16)
    w2_b = w2.astype(jnp.bfloat16)
    ln1_g = ln1_g.astype(jnp.float32)
    ln1_b = ln1_b.astype(jnp.float32)
    ln2_g = ln2_g.astype(jnp.float32)
    ln2_b = ln2_b.astype(jnp.float32)

    kernel = functools.partial(
        encoder_layer_kernel,
        num_heads=num_heads, head_size=head_size,
        residual_scaling=residual_scaling, use_bf16_exp=_use_bf16_exp())

    # Advisory cost estimate for XLA scheduling around the custom call.
    flops = int(2 * B * S * H * 3 * H        # qkv projection
                + 4 * B * S * S * H          # scores + context
                + 2 * B * S * H * H          # attention dense
                + 4 * B * S * H * ffn)       # mlp fc + proj
    transcendentals = int(B * num_heads * S * S)
    weight_bytes = 2 * (3 * H * H + H * H + 2 * H * ffn) + 4 * 4 * H
    bytes_accessed = int(2 * B * S * H * x.dtype.itemsize + weight_bytes)
    cost = pl.CostEstimate(flops=flops, transcendentals=transcendentals,
                           bytes_accessed=bytes_accessed)

    # VMEM budget: single-buffered resident weights + double-buffered streamed
    # w1/w2 blocks + activations, clamped to the physical VMEM of this chip.
    resident_w = 2 * (3 * H * H + H * H) + 4 * 4 * H
    streamed_w = 2 * 2 * (H * ffn_chunk + ffn_chunk * H)
    io_blocks = 2 * 2 * M * H * x.dtype.itemsize
    scratch_b = M * H * (2 + 4)
    acts = (M * 3 * H * 4 + 3 * M * H * 2 + 3 * num_heads * S * S * 4
            + M * ffn_chunk * 4 + 8 * M * H * 4)
    need = resident_w + streamed_w + io_blocks + scratch_b + acts + (4 << 20)
    cap = _vmem_capacity_bytes()
    vmem_limit = int(min(max(need, 32 << 20), cap - (8 << 20)))

    in_arrays = (x, ln1_g, ln1_b, wqkv_b, wo_b, ln2_g, ln2_b, w1_b, w2_b)

    def build(single_buffer_weights):
        def const_spec(shape):
            n = len(shape)

            def idx(b, k):
                return (0,) * n

            if single_buffer_weights:
                return pl.BlockSpec(shape, idx, pipeline_mode=pl.Buffered(1))
            return pl.BlockSpec(shape, idx)

        in_specs = [
            pl.BlockSpec((Bt, S, H), lambda b, k: (b, 0, 0)),   # hidden_states
            const_spec((1, H)), const_spec((1, H)),             # attention LN
            const_spec((H, 3 * H)),                             # fused qkv (bf16)
            const_spec((H, H)),                                 # attention dense
            const_spec((1, H)), const_spec((1, H)),             # mlp LN
            pl.BlockSpec((H, ffn_chunk), lambda b, k: (0, k)),  # mlp fc (streamed)
            pl.BlockSpec((ffn_chunk, H), lambda b, k: (k, 0)),  # mlp proj (streamed)
        ]
        return pl.pallas_call(
            kernel,
            out_shape=jax.ShapeDtypeStruct((B, S, H), x.dtype),
            grid=(Bb, n_k),
            in_specs=in_specs,
            out_specs=pl.BlockSpec((Bt, S, H), lambda b, k: (b, 0, 0)),
            scratch_shapes=[pltpu.VMEM((M, H), jnp.bfloat16),   # ln2(h1)
                            pltpu.VMEM((M, H), jnp.float32)],   # residual + MLP acc
            compiler_params=pltpu.CompilerParams(
                dimension_semantics=("parallel", "arbitrary"),
                vmem_limit_bytes=vmem_limit),
            cost_estimate=cost,
        )

    try:
        return build(True)(*in_arrays)
    except Exception:
        # Fallback for JAX versions without BlockSpec pipeline_mode support.
        return build(False)(*in_arrays)


def encoder_layer_ref(x, params, *, num_heads, head_size,
                      q_scaling=1.0, residual_scaling=1.0):
    """Pure-JAX f32 reference for correctness checking."""
    ln1_g, ln1_b, wqkv, wo, ln2_g, ln2_b, w1, w2 = params
    B, S, H = x.shape

    def ln(v, g, b):
        mu = v.mean(-1, keepdims=True)
        var = ((v - mu) ** 2).mean(-1, keepdims=True)
        return (v - mu) / jnp.sqrt(var + LN_EPS) * g + b

    residual = x * residual_scaling
    h = ln(x, ln1_g[0], ln1_b[0])
    qkv = h @ wqkv
    q, k, v = jnp.split(qkv, 3, axis=-1)
    q = q.reshape(B, S, num_heads, head_size)
    k = k.reshape(B, S, num_heads, head_size)
    v = v.reshape(B, S, num_heads, head_size)
    s = jnp.einsum('bqnd,bknd->bnqk', q, k) / (math.sqrt(head_size) * q_scaling)
    p = jax.nn.softmax(s, axis=-1)
    ctx = jnp.einsum('bnqk,bknd->bqnd', p, v).reshape(B, S, H)
    h1 = residual + ctx @ wo
    residual2 = h1 * residual_scaling
    h2 = ln(h1, ln2_g[0], ln2_b[0])
    mlp = jnp.maximum(h2 @ w1, 0.0) @ w2
    return residual2 + mlp


if __name__ == "__main__":
    # Small, forward-consistent shapes.
    B, S = 2, 8
    hidden_size = 32
    num_heads = 4
    head_size = hidden_size // num_heads
    ffn_hidden_size = 64

    key = jax.random.PRNGKey(0)
    kx, kqkv, ko, k1, k2 = jax.random.split(key, 5)

    x = jax.random.normal(kx, (B, S, hidden_size), dtype=jnp.float32)

    params = (
        jnp.ones((1, hidden_size), jnp.float32),                                      # ln1 gamma
        jnp.zeros((1, hidden_size), jnp.float32),                                     # ln1 beta
        0.05 * jax.random.normal(kqkv, (hidden_size, 3 * hidden_size), jnp.float32),  # Wqkv
        0.05 * jax.random.normal(ko, (hidden_size, hidden_size), jnp.float32),        # Wo
        jnp.ones((1, hidden_size), jnp.float32),                                      # ln2 gamma
        jnp.zeros((1, hidden_size), jnp.float32),                                     # ln2 beta
        0.05 * jax.random.normal(k1, (hidden_size, ffn_hidden_size), jnp.float32),    # mlp fc
        0.05 * jax.random.normal(k2, (ffn_hidden_size, hidden_size), jnp.float32),    # mlp proj
    )

    out = encoder_layer(x, params, num_heads=num_heads, head_size=head_size)
    out = jax.block_until_ready(out)

    ref = encoder_layer_ref(x, params, num_heads=num_heads, head_size=head_size)
    assert out.shape == (B, S, hidden_size)
    # bf16 matmuls (+ optional bf16 exp) + approximate reciprocal vs an f32
    # reference: errors are bounded well below 2e-2 at these magnitudes.
    assert jnp.allclose(out, ref, rtol=2e-2, atol=2e-2), "mismatch vs JAX reference"

    # TODO(synk): LanguageAdapter / relative-attention / attention_mask /
    # fp16_clamping / LoRA branches are disabled by the module defaults and
    # are not implemented here.
    print("KERNEL_OK")
</pallas_src>

<mosaic_0001>
module attributes {stable_mosaic.version = 11 : i64} {
  func.func @encoder_layer_kernel(%arg0: i32, %arg1: i32, %arg2: memref<2x8x32xf32, #tpu.memory_space<vmem>>, %arg3: memref<1x32xf32, #tpu.memory_space<vmem>>, %arg4: memref<1x32xf32, #tpu.memory_space<vmem>>, %arg5: memref<32x96xbf16, #tpu.memory_space<vmem>>, %arg6: memref<32x32xbf16, #tpu.memory_space<vmem>>, %arg7: memref<1x32xf32, #tpu.memory_space<vmem>>, %arg8: memref<1x32xf32, #tpu.memory_space<vmem>>, %arg9: memref<32x64xbf16, #tpu.memory_space<vmem>>, %arg10: memref<64x32xbf16, #tpu.memory_space<vmem>>, %arg11: memref<2x8x32xf32, #tpu.memory_space<vmem>>, %arg12: memref<16x32xbf16, #tpu.memory_space<vmem>>, %arg13: memref<16x32xf32, #tpu.memory_space<vmem>>) attributes {dimension_semantics = [#tpu.dimension_semantics<parallel>, #tpu.dimension_semantics<arbitrary>], iteration_bounds = array<i64: 1, 1>, scalar_prefetch = 0 : i64, scratch_operands = 2 : i64, tpu.core_type = #tpu.core_type<tc>, window_params = [{transform_indices = @transform_0, window_bounds = array<i64: 2, 8, 32>}, {pipeline_mode = #tpu.pipeline_mode<synchronous>, transform_indices = @transform_1, window_bounds = array<i64: 1, 32>}, {pipeline_mode = #tpu.pipeline_mode<synchronous>, transform_indices = @transform_2, window_bounds = array<i64: 1, 32>}, {pipeline_mode = #tpu.pipeline_mode<synchronous>, transform_indices = @transform_3, window_bounds = array<i64: 32, 96>}, {pipeline_mode = #tpu.pipeline_mode<synchronous>, transform_indices = @transform_4, window_bounds = array<i64: 32, 32>}, {pipeline_mode = #tpu.pipeline_mode<synchronous>, transform_indices = @transform_5, window_bounds = array<i64: 1, 32>}, {pipeline_mode = #tpu.pipeline_mode<synchronous>, transform_indices = @transform_6, window_bounds = array<i64: 1, 32>}, {transform_indices = @transform_7, window_bounds = array<i64: 32, 64>}, {transform_indices = @transform_8, window_bounds = array<i64: 64, 32>}, {transform_indices = @transform_9, window_bounds = array<i64: 2, 8, 32>}]} {
    %c0_i32 = arith.constant 0 : i32
    %0 = arith.cmpi eq, %arg1, %c0_i32 : i32
    %1 = arith.extui %0 : i1 to i32
    %c0_i32_0 = arith.constant 0 : i32
    %2 = arith.cmpi ne, %1, %c0_i32_0 : i32
    scf.if %2 {
      %c0_14 = arith.constant 0 : index
      %c0_15 = arith.constant 0 : index
      %c0_16 = arith.constant 0 : index
      %17 = vector.load %arg2[%c0_14, %c0_15, %c0_16] : memref<2x8x32xf32, #tpu.memory_space<vmem>>, vector<2x8x32xf32>
      %18 = vector.shape_cast %17 : vector<2x8x32xf32> to vector<16x32xf32>
      %c0_17 = arith.constant 0 : index
      %c0_18 = arith.constant 0 : index
      %19 = vector.load %arg3[%c0_17, %c0_18] : memref<1x32xf32, #tpu.memory_space<vmem>>, vector<1x32xf32>
      %c0_19 = arith.constant 0 : index
      %c0_20 = arith.constant 0 : index
      %20 = vector.load %arg4[%c0_19, %c0_20] : memref<1x32xf32, #tpu.memory_space<vmem>>, vector<1x32xf32>
      %cst_21 = arith.constant dense<0.000000e+00> : vector<16xf32>
      %21 = vector.multi_reduction <add>, %18, %cst_21 [1] : vector<16x32xf32> to vector<16xf32>
      %22 = vector.shape_cast %21 : vector<16xf32> to vector<16x1xf32>
      %cst_22 = arith.constant 3.200000e+01 : f32
      %23 = vector.broadcast %cst_22 : f32 to vector<16x1xf32>
      %24 = arith.divf %22, %23 : vector<16x1xf32>
      %25 = vector.broadcast %24 : vector<16x1xf32> to vector<16x32xf32>
      %26 = arith.subf %18, %25 : vector<16x32xf32>
      %27 = arith.mulf %26, %26 : vector<16x32xf32>
      %cst_23 = arith.constant dense<0.000000e+00> : vector<16xf32>
      %28 = vector.multi_reduction <add>, %27, %cst_23 [1] : vector<16x32xf32> to vector<16xf32>
      %29 = vector.shape_cast %28 : vector<16xf32> to vector<16x1xf32>
      %cst_24 = arith.constant 3.200000e+01 : f32
      %30 = vector.broadcast %cst_24 : f32 to vector<16x1xf32>
      %31 = arith.divf %29, %30 : vector<16x1xf32>
      %32 = vector.broadcast %24 : vector<16x1xf32> to vector<16x32xf32>
      %33 = arith.subf %18, %32 : vector<16x32xf32>
      %cst_25 = arith.constant 9.99999974E-6 : f32
      %34 = vector.broadcast %cst_25 : f32 to vector<16x1xf32>
      %35 = arith.addf %31, %34 : vector<16x1xf32>
      %36 = math.rsqrt %35 : vector<16x1xf32>
      %37 = vector.broadcast %36 : vector<16x1xf32> to vector<16x32xf32>
      %38 = arith.mulf %33, %37 : vector<16x32xf32>
      %39 = vector.broadcast %19 : vector<1x32xf32> to vector<16x32xf32>
      %40 = arith.mulf %38, %39 : vector<16x32xf32>
      %41 = vector.broadcast %20 : vector<1x32xf32> to vector<16x32xf32>
      %42 = arith.addf %40, %41 : vector<16x32xf32>
      %43 = arith.truncf %42 : vector<16x32xf32> to vector<16x32xbf16>
      %c0_26 = arith.constant 0 : index
      %c0_27 = arith.constant 0 : index
      %44 = vector.load %arg5[%c0_26, %c0_27] : memref<32x96xbf16, #tpu.memory_space<vmem>>, vector<32x96xbf16>
      %cst_28 = arith.constant dense<0.000000e+00> : vector<16x96xf32>
      %45 = tpu.matmul %43, %44, %cst_28 {dimension_numbers = #tpu.dot_dimension_numbers<[1], [0], [0], [1], [0, 0, 1, 1], [], []>} : vector<16x32xbf16>, vector<32x96xbf16>, vector<16x96xf32> -> vector<16x96xf32>
      %46 = vector.extract_strided_slice %45 {offsets = [0, 0], sizes = [16, 32], strides = [1, 1]} : vector<16x96xf32> to vector<16x32xf32>
      %47 = arith.truncf %46 : vector<16x32xf32> to vector<16x32xbf16>
      %48 = vector.extract_strided_slice %45 {offsets = [0, 32], sizes = [16, 32], strides = [1, 1]} : vector<16x96xf32> to vector<16x32xf32>
      %49 = arith.truncf %48 : vector<16x32xf32> to vector<16x32xbf16>
      %50 = vector.extract_strided_slice %45 {offsets = [0, 64], sizes = [16, 32], strides = [1, 1]} : vector<16x96xf32> to vector<16x32xf32>
      %51 = arith.truncf %50 : vector<16x32xf32> to vector<16x32xbf16>
      %52 = vector.extract_strided_slice %47 {offsets = [0, 0], sizes = [8, 32], strides = [1, 1]} : vector<16x32xbf16> to vector<8x32xbf16>
      %53 = vector.shape_cast %52 : vector<8x32xbf16> to vector<8x4x8xbf16>
      %54 = tpu.transpose %53, [1, 0, 2] : vector<8x4x8xbf16> -> vector<4x8x8xbf16>
      %55 = vector.extract_strided_slice %49 {offsets = [0, 0], sizes = [8, 32], strides = [1, 1]} : vector<16x32xbf16> to vector<8x32xbf16>
      %56 = vector.shape_cast %55 : vector<8x32xbf16> to vector<8x4x8xbf16>
      %57 = tpu.transpose %56, [1, 0, 2] : vector<8x4x8xbf16> -> vector<4x8x8xbf16>
      %58 = vector.extract_strided_slice %51 {offsets = [0, 0], sizes = [8, 32], strides = [1, 1]} : vector<16x32xbf16> to vector<8x32xbf16>
      %59 = vector.shape_cast %58 : vector<8x32xbf16> to vector<8x4x8xbf16>
      %60 = tpu.transpose %59, [1, 0, 2] : vector<8x4x8xbf16> -> vector<4x8x8xbf16>
      "tpu.trace_start"() <{level = 10 : i32, message = "nqd,nkd->nqk"}> : () -> ()
      %cst_29 = arith.constant dense<0.000000e+00> : vector<4x8x8xf32>
      %61 = tpu.matmul %54, %57, %cst_29 {dimension_numbers = #tpu.dot_dimension_numbers<[2], [2], [1], [1], [0, 0, 0, 1, 1, 1], [0], [0]>} : vector<4x8x8xbf16>, vector<4x8x8xbf16>, vector<4x8x8xf32> -> vector<4x8x8xf32>
      "tpu.trace_stop"() : () -> ()
      %cst_30 = arith.constant dense<0xFF800000> : vector<4x8xf32>
      %62 = vector.multi_reduction <maximumf>, %61, %cst_30 [2] : vector<4x8x8xf32> to vector<4x8xf32>
      %63 = vector.shape_cast %62 : vector<4x8xf32> to vector<4x8x1xf32>
      %64 = vector.broadcast %63 : vector<4x8x1xf32> to vector<4x8x8xf32>
      %65 = arith.subf %61, %64 : vector<4x8x8xf32>
      %66 = math.exp %65 : vector<4x8x8xf32>
      %cst_31 = arith.constant dense<0.000000e+00> : vector<4x8xf32>
      %67 = vector.multi_reduction <add>, %66, %cst_31 [2] : vector<4x8x8xf32> to vector<4x8xf32>
      %68 = vector.shape_cast %67 : vector<4x8xf32> to vector<4x8x1xf32>
      %69 = arith.truncf %66 : vector<4x8x8xf32> to vector<4x8x8xbf16>
      "tpu.trace_start"() <{level = 10 : i32, message = "nqk,nkd->nqd"}> : () -> ()
      %cst_32 = arith.constant dense<0.000000e+00> : vector<4x8x8xf32>
      %70 = tpu.matmul %69, %60, %cst_32 {dimension_numbers = #tpu.dot_dimension_numbers<[2], [1], [1], [2], [0, 0, 0, 1, 1, 2], [0], [0]>} : vector<4x8x8xbf16>, vector<4x8x8xbf16>, vector<4x8x8xf32> -> vector<4x8x8xf32>
      "tpu.trace_stop"() : () -> ()
      %71 = tpu.reciprocal %68 {approx = true} : vector<4x8x1xf32> -> vector<4x8x1xf32>
      %72 = vector.broadcast %71 : vector<4x8x1xf32> to vector<4x8x8xf32>
      %73 = arith.mulf %70, %72 : vector<4x8x8xf32>
      %74 = tpu.transpose %73, [1, 0, 2] : vector<4x8x8xf32> -> vector<8x4x8xf32>
      %75 = vector.shape_cast %74 : vector<8x4x8xf32> to vector<8x32xf32>
      %76 = vector.extract_strided_slice %47 {offsets = [8, 0], sizes = [8, 32], strides = [1, 1]} : vector<16x32xbf16> to vector<8x32xbf16>
      %77 = vector.shape_cast %76 : vector<8x32xbf16> to vector<8x4x8xbf16>
      %78 = tpu.transpose %77, [1, 0, 2] : vector<8x4x8xbf16> -> vector<4x8x8xbf16>
      %79 = vector.extract_strided_slice %49 {offsets = [8, 0], sizes = [8, 32], strides = [1, 1]} : vector<16x32xbf16> to vector<8x32xbf16>
      %80 = vector.shape_cast %79 : vector<8x32xbf16> to vector<8x4x8xbf16>
      %81 = tpu.transpose %80, [1, 0, 2] : vector<8x4x8xbf16> -> vector<4x8x8xbf16>
      %82 = vector.extract_strided_slice %51 {offsets = [8, 0], sizes = [8, 32], strides = [1, 1]} : vector<16x32xbf16> to vector<8x32xbf16>
      %83 = vector.shape_cast %82 : vector<8x32xbf16> to vector<8x4x8xbf16>
      %84 = tpu.transpose %83, [1, 0, 2] : vector<8x4x8xbf16> -> vector<4x8x8xbf16>
      "tpu.trace_start"() <{level = 10 : i32, message = "nqd,nkd->nqk"}> : () -> ()
      %cst_33 = arith.constant dense<0.000000e+00> : vector<4x8x8xf32>
      %85 = tpu.matmul %78, %81, %cst_33 {dimension_numbers = #tpu.dot_dimension_numbers<[2], [2], [1], [1], [0, 0, 0, 1, 1, 1], [0], [0]>} : vector<4x8x8xbf16>, vector<4x8x8xbf16>, vector<4x8x8xf32> -> vector<4x8x8xf32>
      "tpu.trace_stop"() : () -> ()
      %cst_34 = arith.constant dense<0xFF800000> : vector<4x8xf32>
      %86 = vector.multi_reduction <maximumf>, %85, %cst_34 [2] : vector<4x8x8xf32> to vector<4x8xf32>
      %87 = vector.shape_cast %86 : vector<4x8xf32> to vector<4x8x1xf32>
      %88 = vector.broadcast %87 : vector<4x8x1xf32> to vector<4x8x8xf32>
      %89 = arith.subf %85, %88 : vector<4x8x8xf32>
      %90 = math.exp %89 : vector<4x8x8xf32>
      %cst_35 = arith.constant dense<0.000000e+00> : vector<4x8xf32>
      %91 = vector.multi_reduction <add>, %90, %cst_35 [2] : vector<4x8x8xf32> to vector<4x8xf32>
      %92 = vector.shape_cast %91 : vector<4x8xf32> to vector<4x8x1xf32>
      %93 = arith.truncf %90 : vector<4x8x8xf32> to vector<4x8x8xbf16>
      "tpu.trace_start"() <{level = 10 : i32, message = "nqk,nkd->nqd"}> : () -> ()
      %cst_36 = arith.constant dense<0.000000e+00> : vector<4x8x8xf32>
      %94 = tpu.matmul %93, %84, %cst_36 {dimension_numbers = #tpu.dot_dimension_numbers<[2], [1], [1], [2], [0, 0, 0, 1, 1, 2], [0], [0]>} : vector<4x8x8xbf16>, vector<4x8x8xbf16>, vector<4x8x8xf32> -> vector<4x8x8xf32>
      "tpu.trace_stop"() : () -> ()
      %95 = tpu.reciprocal %92 {approx = true} : vector<4x8x1xf32> -> vector<4x8x1xf32>
      %96 = vector.broadcast %95 : vector<4x8x1xf32> to vector<4x8x8xf32>
      %97 = arith.mulf %94, %96 : vector<4x8x8xf32>
      %98 = tpu.transpose %97, [1, 0, 2] : vector<4x8x8xf32> -> vector<8x4x8xf32>
      %99 = vector.shape_cast %98 : vector<8x4x8xf32> to vector<8x32xf32>
      %100 = tpu.concatenate %75, %99 in 0 : vector<8x32xf32>, vector<8x32xf32> -> vector<16x32xf32>
      %101 = arith.truncf %100 : vector<16x32xf32> to vector<16x32xbf16>
      %c0_37 = arith.constant 0 : index
      %c0_38 = arith.constant 0 : index
      %102 = vector.load %arg6[%c0_37, %c0_38] : memref<32x32xbf16, #tpu.memory_space<vmem>>, vector<32x32xbf16>
      %cst_39 = arith.constant dense<0.000000e+00> : vector<16x32xf32>
      %103 = tpu.matmul %101, %102, %cst_39 {dimension_numbers = #tpu.dot_dimension_numbers<[1], [0], [0], [1], [0, 0, 1, 1], [], []>} : vector<16x32xbf16>, vector<32x32xbf16>, vector<16x32xf32> -> vector<16x32xf32>
      %104 = arith.addf %18, %103 : vector<16x32xf32>
      %c0_40 = arith.constant 0 : index
      %c0_41 = arith.constant 0 : index
      %105 = vector.load %arg7[%c0_40, %c0_41] : memref<1x32xf32, #tpu.memory_space<vmem>>, vector<1x32xf32>
      %c0_42 = arith.constant 0 : index
      %c0_43 = arith.constant 0 : index
      %106 = vector.load %arg8[%c0_42, %c0_43] : memref<1x32xf32, #tpu.memory_space<vmem>>, vector<1x32xf32>
      %cst_44 = arith.constant dense<0.000000e+00> : vector<16xf32>
      %107 = vector.multi_reduction <add>, %104, %cst_44 [1] : vector<16x32xf32> to vector<16xf32>
      %108 = vector.shape_cast %107 : vector<16xf32> to vector<16x1xf32>
      %cst_45 = arith.constant 3.200000e+01 : f32
      %109 = vector.broadcast %cst_45 : f32 to vector<16x1xf32>
      %110 = arith.divf %108, %109 : vector<16x1xf32>
      %111 = vector.broadcast %110 : vector<16x1xf32> to vector<16x32xf32>
      %112 = arith.subf %104, %111 : vector<16x32xf32>
      %113 = arith.mulf %112, %112 : vector<16x32xf32>
      %cst_46 = arith.constant dense<0.000000e+00> : vector<16xf32>
      %114 = vector.multi_reduction <add>, %113, %cst_46 [1] : vector<16x32xf32> to vector<16xf32>
      %115 = vector.shape_cast %114 : vector<16xf32> to vector<16x1xf32>
      %cst_47 = arith.constant 3.200000e+01 : f32
      %116 = vector.broadcast %cst_47 : f32 to vector<16x1xf32>
      %117 = arith.divf %115, %116 : vector<16x1xf32>
      %118 = vector.broadcast %110 : vector<16x1xf32> to vector<16x32xf32>
      %119 = arith.subf %104, %118 : vector<16x32xf32>
      %cst_48 = arith.constant 9.99999974E-6 : f32
      %120 = vector.broadcast %cst_48 : f32 to vector<16x1xf32>
      %121 = arith.addf %117, %120 : vector<16x1xf32>
      %122 = math.rsqrt %121 : vector<16x1xf32>
      %123 = vector.broadcast %122 : vector<16x1xf32> to vector<16x32xf32>
      %124 = arith.mulf %119, %123 : vector<16x32xf32>
      %125 = vector.broadcast %105 : vector<1x32xf32> to vector<16x32xf32>
      %126 = arith.mulf %124, %125 : vector<16x32xf32>
      %127 = vector.broadcast %106 : vector<1x32xf32> to vector<16x32xf32>
      %128 = arith.addf %126, %127 : vector<16x32xf32>
      %129 = arith.truncf %128 : vector<16x32xf32> to vector<16x32xbf16>
      %c0_49 = arith.constant 0 : index
      %c0_50 = arith.constant 0 : index
      %130 = vector.load %arg12[%c0_49, %c0_50] : memref<16x32xbf16, #tpu.memory_space<vmem>>, vector<16x32xbf16>
      tpu.vector_store %arg12[%c0_49, %c0_50], %129 {strides = array<i32>} : memref<16x32xbf16, #tpu.memory_space<vmem>>, vector<16x32xbf16>,
      %c0_51 = arith.constant 0 : index
      %c0_52 = arith.constant 0 : index
      %131 = vector.load %arg13[%c0_51, %c0_52] : memref<16x32xf32, #tpu.memory_space<vmem>>, vector<16x32xf32>
      tpu.vector_store %arg13[%c0_51, %c0_52], %104 {strides = array<i32>} : memref<16x32xf32, #tpu.memory_space<vmem>>, vector<16x32xf32>,
    } else {
    }
    %c0 = arith.constant 0 : index
    %c0_1 = arith.constant 0 : index
    %3 = vector.load %arg12[%c0, %c0_1] : memref<16x32xbf16, #tpu.memory_space<vmem>>, vector<16x32xbf16>
    %c0_2 = arith.constant 0 : index
    %c0_3 = arith.constant 0 : index
    %4 = vector.load %arg9[%c0_2, %c0_3] : memref<32x64xbf16, #tpu.memory_space<vmem>>, vector<32x64xbf16>
    %cst = arith.constant dense<0.000000e+00> : vector<16x64xf32>
    %5 = tpu.matmul %3, %4, %cst {dimension_numbers = #tpu.dot_dimension_numbers<[1], [0], [0], [1], [0, 0, 1, 1], [], []>} : vector<16x32xbf16>, vector<32x64xbf16>, vector<16x64xf32> -> vector<16x64xf32>
    %cst_4 = arith.constant 0.000000e+00 : f32
    %6 = vector.broadcast %cst_4 : f32 to vector<16x64xf32>
    %7 = arith.maximumf %5, %6 : vector<16x64xf32>
    %8 = arith.truncf %7 : vector<16x64xf32> to vector<16x64xbf16>
    %c0_5 = arith.constant 0 : index
    %c0_6 = arith.constant 0 : index
    %9 = vector.load %arg13[%c0_5, %c0_6] : memref<16x32xf32, #tpu.memory_space<vmem>>, vector<16x32xf32>
    %c0_7 = arith.constant 0 : index
    %c0_8 = arith.constant 0 : index
    %10 = vector.load %arg10[%c0_7, %c0_8] : memref<64x32xbf16, #tpu.memory_space<vmem>>, vector<64x32xbf16>
    %cst_9 = arith.constant dense<0.000000e+00> : vector<16x32xf32>
    %11 = tpu.matmul %8, %10, %cst_9 {dimension_numbers = #tpu.dot_dimension_numbers<[1], [0], [0], [1], [0, 0, 1, 1], [], []>} : vector<16x64xbf16>, vector<64x32xbf16>, vector<16x32xf32> -> vector<16x32xf32>
    %12 = arith.addf %9, %11 : vector<16x32xf32>
    %c0_10 = arith.constant 0 : index
    %c0_11 = arith.constant 0 : index
    %13 = vector.load %arg13[%c0_10, %c0_11] : memref<16x32xf32, #tpu.memory_space<vmem>>, vector<16x32xf32>
    tpu.vector_store %arg13[%c0_10, %c0_11], %12 {strides = array<i32>} : memref<16x32xf32, #tpu.memory_space<vmem>>, vector<16x32xf32>,
    %c0_i32_12 = arith.constant 0 : i32
    %14 = arith.cmpi eq, %arg1, %c0_i32_12 : i32
    %15 = arith.extui %14 : i1 to i32
    %c0_i32_13 = arith.constant 0 : i32
    %16 = arith.cmpi ne, %15, %c0_i32_13 : i32
    scf.if %16 {
      %c0_14 = arith.constant 0 : index
      %c0_15 = arith.constant 0 : index
      %17 = vector.load %arg13[%c0_14, %c0_15] : memref<16x32xf32, #tpu.memory_space<vmem>>, vector<16x32xf32>
      %18 = vector.shape_cast %17 : vector<16x32xf32> to vector<2x8x32xf32>
      %c0_16 = arith.constant 0 : index
      %c0_17 = arith.constant 0 : index
      %c0_18 = arith.constant 0 : index
      %19 = vector.load %arg11[%c0_16, %c0_17, %c0_18] : memref<2x8x32xf32, #tpu.memory_space<vmem>>, vector<2x8x32xf32>
      tpu.vector_store %arg11[%c0_16, %c0_17, %c0_18], %18 {strides = array<i32>} : memref<2x8x32xf32, #tpu.memory_space<vmem>>, vector<2x8x32xf32>,
    } else {
    }
    return
  }
  func.func @transform_0(%arg0: i32, %arg1: i32) -> (i32, i32, i32) {
    %c0_i32 = arith.constant 0 : i32
    %c0_i32_0 = arith.constant 0 : i32
    %c0_i32_1 = arith.constant 0 : i32
    return %arg0, %c0_i32, %c0_i32_0 : i32, i32, i32
  }
  func.func @transform_1(%arg0: i32, %arg1: i32) -> (i32, i32) {
    %c0_i32 = arith.constant 0 : i32
    %c0_i32_0 = arith.constant 0 : i32
    %c0_i32_1 = arith.constant 0 : i32
    return %c0_i32, %c0_i32_0 : i32, i32
  }
  func.func @transform_2(%arg0: i32, %arg1: i32) -> (i32, i32) {
    %c0_i32 = arith.constant 0 : i32
    %c0_i32_0 = arith.constant 0 : i32
    %c0_i32_1 = arith.constant 0 : i32
    return %c0_i32, %c0_i32_0 : i32, i32
  }
  func.func @transform_3(%arg0: i32, %arg1: i32) -> (i32, i32) {
    %c0_i32 = arith.constant 0 : i32
    %c0_i32_0 = arith.constant 0 : i32
    %c0_i32_1 = arith.constant 0 : i32
    return %c0_i32, %c0_i32_0 : i32, i32
  }
  func.func @transform_4(%arg0: i32, %arg1: i32) -> (i32, i32) {
    %c0_i32 = arith.constant 0 : i32
    %c0_i32_0 = arith.constant 0 : i32
    %c0_i32_1 = arith.constant 0 : i32
    return %c0_i32, %c0_i32_0 : i32, i32
  }
  func.func @transform_5(%arg0: i32, %arg1: i32) -> (i32, i32) {
    %c0_i32 = arith.constant 0 : i32
    %c0_i32_0 = arith.constant 0 : i32
    %c0_i32_1 = arith.constant 0 : i32
    return %c0_i32, %c0_i32_0 : i32, i32
  }
  func.func @transform_6(%arg0: i32, %arg1: i32) -> (i32, i32) {
    %c0_i32 = arith.constant 0 : i32
    %c0_i32_0 = arith.constant 0 : i32
    %c0_i32_1 = arith.constant 0 : i32
    return %c0_i32, %c0_i32_0 : i32, i32
  }
  func.func @transform_7(%arg0: i32, %arg1: i32) -> (i32, i32) {
    %c0_i32 = arith.constant 0 : i32
    %c0_i32_0 = arith.constant 0 : i32
    return %c0_i32, %arg1 : i32, i32
  }
  func.func @transform_8(%arg0: i32, %arg1: i32) -> (i32, i32) {
    %c0_i32 = arith.constant 0 : i32
    %c0_i32_0 = arith.constant 0 : i32
    return %arg1, %c0_i32 : i32, i32
  }
  func.func @transform_9(%arg0: i32, %arg1: i32) -> (i32, i32, i32) {
    %c0_i32 = arith.constant 0 : i32
    %c0_i32_0 = arith.constant 0 : i32
    %c0_i32_1 = arith.constant 0 : i32
    return %arg0, %c0_i32, %c0_i32_0 : i32, i32, i32
  }
}

module attributes {stable_mosaic.version = 11 : i64} {
  func.func @encoder_layer_kernel(%arg0: i32, %arg1: i32, %arg2: memref<2x8x32xf32, #tpu.memory_space<vmem>>, %arg3: memref<1x32xf32, #tpu.memory_space<vmem>>, %arg4: memref<1x32xf32, #tpu.memory_space<vmem>>, %arg5: memref<32x96xbf16, #tpu.memory_space<vmem>>, %arg6: memref<32x32xbf16, #tpu.memory_space<vmem>>, %arg7: memref<1x32xf32, #tpu.memory_space<vmem>>, %arg8: memref<1x32xf32, #tpu.memory_space<vmem>>, %arg9: memref<32x64xbf16, #tpu.memory_space<vmem>>, %arg10: memref<64x32xbf16, #tpu.memory_space<vmem>>, %arg11: memref<2x8x32xf32, #tpu.memory_space<vmem>>, %arg12: memref<16x32xbf16, #tpu.memory_space<vmem>>, %arg13: memref<16x32xf32, #tpu.memory_space<vmem>>) attributes {dimension_semantics = [#tpu.dimension_semantics<parallel>, #tpu.dimension_semantics<arbitrary>], iteration_bounds = array<i64: 1, 1>, scalar_prefetch = 0 : i64, scratch_operands = 2 : i64, tpu.core_type = #tpu.core_type<tc>, window_params = [{transform_indices = @transform_0, window_bounds = array<i64: 2, 8, 32>}, {pipeline_mode = #tpu.pipeline_mode<synchronous>, transform_indices = @transform_1, window_bounds = array<i64: 1, 32>}, {pipeline_mode = #tpu.pipeline_mode<synchronous>, transform_indices = @transform_2, window_bounds = array<i64: 1, 32>}, {pipeline_mode = #tpu.pipeline_mode<synchronous>, transform_indices = @transform_3, window_bounds = array<i64: 32, 96>}, {pipeline_mode = #tpu.pipeline_mode<synchronous>, transform_indices = @transform_4, window_bounds = array<i64: 32, 32>}, {pipeline_mode = #tpu.pipeline_mode<synchronous>, transform_indices = @transform_5, window_bounds = array<i64: 1, 32>}, {pipeline_mode = #tpu.pipeline_mode<synchronous>, transform_indices = @transform_6, window_bounds = array<i64: 1, 32>}, {transform_indices = @transform_7, window_bounds = array<i64: 32, 64>}, {transform_indices = @transform_8, window_bounds = array<i64: 64, 32>}, {transform_indices = @transform_9, window_bounds = array<i64: 2, 8, 32>}]} {
    %c0_i32 = arith.constant 0 : i32
    %0 = arith.cmpi eq, %arg1, %c0_i32 : i32
    %1 = arith.extui %0 : i1 to i32
    %c0_i32_0 = arith.constant 0 : i32
    %2 = arith.cmpi ne, %1, %c0_i32_0 : i32
    scf.if %2 {
      %c0_14 = arith.constant 0 : index
      %c0_15 = arith.constant 0 : index
      %c0_16 = arith.constant 0 : index
      %17 = vector.load %arg2[%c0_14, %c0_15, %c0_16] : memref<2x8x32xf32, #tpu.memory_space<vmem>>, vector<2x8x32xf32>
      %18 = vector.shape_cast %17 : vector<2x8x32xf32> to vector<16x32xf32>
      %c0_17 = arith.constant 0 : index
      %c0_18 = arith.constant 0 : index
      %19 = vector.load %arg3[%c0_17, %c0_18] : memref<1x32xf32, #tpu.memory_space<vmem>>, vector<1x32xf32>
      %c0_19 = arith.constant 0 : index
      %c0_20 = arith.constant 0 : index
      %20 = vector.load %arg4[%c0_19, %c0_20] : memref<1x32xf32, #tpu.memory_space<vmem>>, vector<1x32xf32>
      %cst_21 = arith.constant dense<0.000000e+00> : vector<16xf32>
      %21 = vector.multi_reduction <add>, %18, %cst_21 [1] : vector<16x32xf32> to vector<16xf32>
      %22 = vector.shape_cast %21 : vector<16xf32> to vector<16x1xf32>
      %cst_22 = arith.constant 3.200000e+01 : f32
      %23 = vector.broadcast %cst_22 : f32 to vector<16x1xf32>
      %24 = arith.divf %22, %23 : vector<16x1xf32>
      %25 = vector.broadcast %24 : vector<16x1xf32> to vector<16x32xf32>
      %26 = arith.subf %18, %25 : vector<16x32xf32>
      %27 = arith.mulf %26, %26 : vector<16x32xf32>
      %cst_23 = arith.constant dense<0.000000e+00> : vector<16xf32>
      %28 = vector.multi_reduction <add>, %27, %cst_23 [1] : vector<16x32xf32> to vector<16xf32>
      %29 = vector.shape_cast %28 : vector<16xf32> to vector<16x1xf32>
      %cst_24 = arith.constant 3.200000e+01 : f32
      %30 = vector.broadcast %cst_24 : f32 to vector<16x1xf32>
      %31 = arith.divf %29, %30 : vector<16x1xf32>
      %32 = vector.broadcast %24 : vector<16x1xf32> to vector<16x32xf32>
      %33 = arith.subf %18, %32 : vector<16x32xf32>
      %cst_25 = arith.constant 9.99999974E-6 : f32
      %34 = vector.broadcast %cst_25 : f32 to vector<16x1xf32>
      %35 = arith.addf %31, %34 : vector<16x1xf32>
      %36 = math.rsqrt %35 : vector<16x1xf32>
      %37 = vector.broadcast %36 : vector<16x1xf32> to vector<16x32xf32>
      %38 = arith.mulf %33, %37 : vector<16x32xf32>
      %39 = vector.broadcast %19 : vector<1x32xf32> to vector<16x32xf32>
      %40 = arith.mulf %38, %39 : vector<16x32xf32>
      %41 = vector.broadcast %20 : vector<1x32xf32> to vector<16x32xf32>
      %42 = arith.addf %40, %41 : vector<16x32xf32>
      %43 = arith.truncf %42 : vector<16x32xf32> to vector<16x32xbf16>
      %c0_26 = arith.constant 0 : index
      %c0_27 = arith.constant 0 : index
      %44 = vector.load %arg5[%c0_26, %c0_27] : memref<32x96xbf16, #tpu.memory_space<vmem>>, vector<32x96xbf16>
      %cst_28 = arith.constant dense<0.000000e+00> : vector<16x96xf32>
      %45 = tpu.matmul %43, %44, %cst_28 {dimension_numbers = #tpu.dot_dimension_numbers<[1], [0], [0], [1], [0, 0, 1, 1], [], []>} : vector<16x32xbf16>, vector<32x96xbf16>, vector<16x96xf32> -> vector<16x96xf32>
      %46 = vector.extract_strided_slice %45 {offsets = [0, 0], sizes = [16, 32], strides = [1, 1]} : vector<16x96xf32> to vector<16x32xf32>
      %47 = arith.truncf %46 : vector<16x32xf32> to vector<16x32xbf16>
      %48 = vector.extract_strided_slice %45 {offsets = [0, 32], sizes = [16, 32], strides = [1, 1]} : vector<16x96xf32> to vector<16x32xf32>
      %49 = arith.truncf %48 : vector<16x32xf32> to vector<16x32xbf16>
      %50 = vector.extract_strided_slice %45 {offsets = [0, 64], sizes = [16, 32], strides = [1, 1]} : vector<16x96xf32> to vector<16x32xf32>
      %51 = arith.truncf %50 : vector<16x32xf32> to vector<16x32xbf16>
      %52 = vector.extract_strided_slice %47 {offsets = [0, 0], sizes = [8, 32], strides = [1, 1]} : vector<16x32xbf16> to vector<8x32xbf16>
      %53 = vector.shape_cast %52 : vector<8x32xbf16> to vector<8x4x8xbf16>
      %54 = tpu.transpose %53, [1, 0, 2] : vector<8x4x8xbf16> -> vector<4x8x8xbf16>
      %55 = vector.extract_strided_slice %49 {offsets = [0, 0], sizes = [8, 32], strides = [1, 1]} : vector<16x32xbf16> to vector<8x32xbf16>
      %56 = vector.shape_cast %55 : vector<8x32xbf16> to vector<8x4x8xbf16>
      %57 = tpu.transpose %56, [1, 0, 2] : vector<8x4x8xbf16> -> vector<4x8x8xbf16>
      %58 = vector.extract_strided_slice %51 {offsets = [0, 0], sizes = [8, 32], strides = [1, 1]} : vector<16x32xbf16> to vector<8x32xbf16>
      %59 = vector.shape_cast %58 : vector<8x32xbf16> to vector<8x4x8xbf16>
      %60 = tpu.transpose %59, [1, 0, 2] : vector<8x4x8xbf16> -> vector<4x8x8xbf16>
      "tpu.trace_start"() <{level = 10 : i32, message = "nqd,nkd->nqk"}> : () -> ()
      %cst_29 = arith.constant dense<0.000000e+00> : vector<4x8x8xf32>
      %61 = tpu.matmul %54, %57, %cst_29 {dimension_numbers = #tpu.dot_dimension_numbers<[2], [2], [1], [1], [0, 0, 0, 1, 1, 1], [0], [0]>} : vector<4x8x8xbf16>, vector<4x8x8xbf16>, vector<4x8x8xf32> -> vector<4x8x8xf32>
      "tpu.trace_stop"() : () -> ()
      %cst_30 = arith.constant dense<0xFF800000> : vector<4x8xf32>
      %62 = vector.multi_reduction <maximumf>, %61, %cst_30 [2] : vector<4x8x8xf32> to vector<4x8xf32>
      %63 = vector.shape_cast %62 : vector<4x8xf32> to vector<4x8x1xf32>
      %64 = vector.broadcast %63 : vector<4x8x1xf32> to vector<4x8x8xf32>
      %65 = arith.subf %61, %64 : vector<4x8x8xf32>
      %66 = math.exp %65 : vector<4x8x8xf32>
      %cst_31 = arith.constant dense<0.000000e+00> : vector<4x8xf32>
      %67 = vector.multi_reduction <add>, %66, %cst_31 [2] : vector<4x8x8xf32> to vector<4x8xf32>
      %68 = vector.shape_cast %67 : vector<4x8xf32> to vector<4x8x1xf32>
      %69 = arith.truncf %66 : vector<4x8x8xf32> to vector<4x8x8xbf16>
      "tpu.trace_start"() <{level = 10 : i32, message = "nqk,nkd->nqd"}> : () -> ()
      %cst_32 = arith.constant dense<0.000000e+00> : vector<4x8x8xf32>
      %70 = tpu.matmul %69, %60, %cst_32 {dimension_numbers = #tpu.dot_dimension_numbers<[2], [1], [1], [2], [0, 0, 0, 1, 1, 2], [0], [0]>} : vector<4x8x8xbf16>, vector<4x8x8xbf16>, vector<4x8x8xf32> -> vector<4x8x8xf32>
      "tpu.trace_stop"() : () -> ()
      %71 = tpu.reciprocal %68 {approx = true} : vector<4x8x1xf32> -> vector<4x8x1xf32>
      %72 = vector.broadcast %71 : vector<4x8x1xf32> to vector<4x8x8xf32>
      %73 = arith.mulf %70, %72 : vector<4x8x8xf32>
      %74 = tpu.transpose %73, [1, 0, 2] : vector<4x8x8xf32> -> vector<8x4x8xf32>
      %75 = vector.shape_cast %74 : vector<8x4x8xf32> to vector<8x32xf32>
      %76 = vector.extract_strided_slice %47 {offsets = [8, 0], sizes = [8, 32], strides = [1, 1]} : vector<16x32xbf16> to vector<8x32xbf16>
      %77 = vector.shape_cast %76 : vector<8x32xbf16> to vector<8x4x8xbf16>
      %78 = tpu.transpose %77, [1, 0, 2] : vector<8x4x8xbf16> -> vector<4x8x8xbf16>
      %79 = vector.extract_strided_slice %49 {offsets = [8, 0], sizes = [8, 32], strides = [1, 1]} : vector<16x32xbf16> to vector<8x32xbf16>
      %80 = vector.shape_cast %79 : vector<8x32xbf16> to vector<8x4x8xbf16>
      %81 = tpu.transpose %80, [1, 0, 2] : vector<8x4x8xbf16> -> vector<4x8x8xbf16>
      %82 = vector.extract_strided_slice %51 {offsets = [8, 0], sizes = [8, 32], strides = [1, 1]} : vector<16x32xbf16> to vector<8x32xbf16>
      %83 = vector.shape_cast %82 : vector<8x32xbf16> to vector<8x4x8xbf16>
      %84 = tpu.transpose %83, [1, 0, 2] : vector<8x4x8xbf16> -> vector<4x8x8xbf16>
      "tpu.trace_start"() <{level = 10 : i32, message = "nqd,nkd->nqk"}> : () -> ()
      %cst_33 = arith.constant dense<0.000000e+00> : vector<4x8x8xf32>
      %85 = tpu.matmul %78, %81, %cst_33 {dimension_numbers = #tpu.dot_dimension_numbers<[2], [2], [1], [1], [0, 0, 0, 1, 1, 1], [0], [0]>} : vector<4x8x8xbf16>, vector<4x8x8xbf16>, vector<4x8x8xf32> -> vector<4x8x8xf32>
      "tpu.trace_stop"() : () -> ()
      %cst_34 = arith.constant dense<0xFF800000> : vector<4x8xf32>
      %86 = vector.multi_reduction <maximumf>, %85, %cst_34 [2] : vector<4x8x8xf32> to vector<4x8xf32>
      %87 = vector.shape_cast %86 : vector<4x8xf32> to vector<4x8x1xf32>
      %88 = vector.broadcast %87 : vector<4x8x1xf32> to vector<4x8x8xf32>
      %89 = arith.subf %85, %88 : vector<4x8x8xf32>
      %90 = math.exp %89 : vector<4x8x8xf32>
      %cst_35 = arith.constant dense<0.000000e+00> : vector<4x8xf32>
      %91 = vector.multi_reduction <add>, %90, %cst_35 [2] : vector<4x8x8xf32> to vector<4x8xf32>
      %92 = vector.shape_cast %91 : vector<4x8xf32> to vector<4x8x1xf32>
      %93 = arith.truncf %90 : vector<4x8x8xf32> to vector<4x8x8xbf16>
      "tpu.trace_start"() <{level = 10 : i32, message = "nqk,nkd->nqd"}> : () -> ()
      %cst_36 = arith.constant dense<0.000000e+00> : vector<4x8x8xf32>
      %94 = tpu.matmul %93, %84, %cst_36 {dimension_numbers = #tpu.dot_dimension_numbers<[2], [1], [1], [2], [0, 0, 0, 1, 1, 2], [0], [0]>} : vector<4x8x8xbf16>, vector<4x8x8xbf16>, vector<4x8x8xf32> -> vector<4x8x8xf32>
      "tpu.trace_stop"() : () -> ()
      %95 = tpu.reciprocal %92 {approx = true} : vector<4x8x1xf32> -> vector<4x8x1xf32>
      %96 = vector.broadcast %95 : vector<4x8x1xf32> to vector<4x8x8xf32>
      %97 = arith.mulf %94, %96 : vector<4x8x8xf32>
      %98 = tpu.transpose %97, [1, 0, 2] : vector<4x8x8xf32> -> vector<8x4x8xf32>
      %99 = vector.shape_cast %98 : vector<8x4x8xf32> to vector<8x32xf32>
      %100 = tpu.concatenate %75, %99 in 0 : vector<8x32xf32>, vector<8x32xf32> -> vector<16x32xf32>
      %101 = arith.truncf %100 : vector<16x32xf32> to vector<16x32xbf16>
      %c0_37 = arith.constant 0 : index
      %c0_38 = arith.constant 0 : index
      %102 = vector.load %arg6[%c0_37, %c0_38] : memref<32x32xbf16, #tpu.memory_space<vmem>>, vector<32x32xbf16>
      %cst_39 = arith.constant dense<0.000000e+00> : vector<16x32xf32>
      %103 = tpu.matmul %101, %102, %cst_39 {dimension_numbers = #tpu.dot_dimension_numbers<[1], [0], [0], [1], [0, 0, 1, 1], [], []>} : vector<16x32xbf16>, vector<32x32xbf16>, vector<16x32xf32> -> vector<16x32xf32>
      %104 = arith.addf %18, %103 : vector<16x32xf32>
      %c0_40 = arith.constant 0 : index
      %c0_41 = arith.constant 0 : index
      %105 = vector.load %arg7[%c0_40, %c0_41] : memref<1x32xf32, #tpu.memory_space<vmem>>, vector<1x32xf32>
      %c0_42 = arith.constant 0 : index
      %c0_43 = arith.constant 0 : index
      %106 = vector.load %arg8[%c0_42, %c0_43] : memref<1x32xf32, #tpu.memory_space<vmem>>, vector<1x32xf32>
      %cst_44 = arith.constant dense<0.000000e+00> : vector<16xf32>
      %107 = vector.multi_reduction <add>, %104, %cst_44 [1] : vector<16x32xf32> to vector<16xf32>
      %108 = vector.shape_cast %107 : vector<16xf32> to vector<16x1xf32>
      %cst_45 = arith.constant 3.200000e+01 : f32
      %109 = vector.broadcast %cst_45 : f32 to vector<16x1xf32>
      %110 = arith.divf %108, %109 : vector<16x1xf32>
      %111 = vector.broadcast %110 : vector<16x1xf32> to vector<16x32xf32>
      %112 = arith.subf %104, %111 : vector<16x32xf32>
      %113 = arith.mulf %112, %112 : vector<16x32xf32>
      %cst_46 = arith.constant dense<0.000000e+00> : vector<16xf32>
      %114 = vector.multi_reduction <add>, %113, %cst_46 [1] : vector<16x32xf32> to vector<16xf32>
      %115 = vector.shape_cast %114 : vector<16xf32> to vector<16x1xf32>
      %cst_47 = arith.constant 3.200000e+01 : f32
      %116 = vector.broadcast %cst_47 : f32 to vector<16x1xf32>
      %117 = arith.divf %115, %116 : vector<16x1xf32>
      %118 = vector.broadcast %110 : vector<16x1xf32> to vector<16x32xf32>
      %119 = arith.subf %104, %118 : vector<16x32xf32>
      %cst_48 = arith.constant 9.99999974E-6 : f32
      %120 = vector.broadcast %cst_48 : f32 to vector<16x1xf32>
      %121 = arith.addf %117, %120 : vector<16x1xf32>
      %122 = math.rsqrt %121 : vector<16x1xf32>
      %123 = vector.broadcast %122 : vector<16x1xf32> to vector<16x32xf32>
      %124 = arith.mulf %119, %123 : vector<16x32xf32>
      %125 = vector.broadcast %105 : vector<1x32xf32> to vector<16x32xf32>
      %126 = arith.mulf %124, %125 : vector<16x32xf32>
      %127 = vector.broadcast %106 : vector<1x32xf32> to vector<16x32xf32>
      %128 = arith.addf %126, %127 : vector<16x32xf32>
      %129 = arith.truncf %128 : vector<16x32xf32> to vector<16x32xbf16>
      %c0_49 = arith.constant 0 : index
      %c0_50 = arith.constant 0 : index
      %130 = vector.load %arg12[%c0_49, %c0_50] : memref<16x32xbf16, #tpu.memory_space<vmem>>, vector<16x32xbf16>
      tpu.vector_store %arg12[%c0_49, %c0_50], %129 {strides = array<i32>} : memref<16x32xbf16, #tpu.memory_space<vmem>>, vector<16x32xbf16>,
      %c0_51 = arith.constant 0 : index
      %c0_52 = arith.constant 0 : index
      %131 = vector.load %arg13[%c0_51, %c0_52] : memref<16x32xf32, #tpu.memory_space<vmem>>, vector<16x32xf32>
      tpu.vector_store %arg13[%c0_51, %c0_52], %104 {strides = array<i32>} : memref<16x32xf32, #tpu.memory_space<vmem>>, vector<16x32xf32>,
    } else {
    }
    %c0 = arith.constant 0 : index
    %c0_1 = arith.constant 0 : index
    %3 = vector.load %arg12[%c0, %c0_1] : memref<16x32xbf16, #tpu.memory_space<vmem>>, vector<16x32xbf16>
    %c0_2 = arith.constant 0 : index
    %c0_3 = arith.constant 0 : index
    %4 = vector.load %arg9[%c0_2, %c0_3] : memref<32x64xbf16, #tpu.memory_space<vmem>>, vector<32x64xbf16>
    %cst = arith.constant dense<0.000000e+00> : vector<16x64xf32>
    %5 = tpu.matmul %3, %4, %cst {dimension_numbers = #tpu.dot_dimension_numbers<[1], [0], [0], [1], [0, 0, 1, 1], [], []>} : vector<16x32xbf16>, vector<32x64xbf16>, vector<16x64xf32> -> vector<16x64xf32>
    %cst_4 = arith.constant 0.000000e+00 : f32
    %6 = vector.broadcast %cst_4 : f32 to vector<16x64xf32>
    %7 = arith.maximumf %5, %6 : vector<16x64xf32>
    %8 = arith.truncf %7 : vector<16x64xf32> to vector<16x64xbf16>
    %c0_5 = arith.constant 0 : index
    %c0_6 = arith.constant 0 : index
    %9 = vector.load %arg13[%c0_5, %c0_6] : memref<16x32xf32, #tpu.memory_space<vmem>>, vector<16x32xf32>
    %c0_7 = arith.constant 0 : index
    %c0_8 = arith.constant 0 : index
    %10 = vector.load %arg10[%c0_7, %c0_8] : memref<64x32xbf16, #tpu.memory_space<vmem>>, vector<64x32xbf16>
    %cst_9 = arith.constant dense<0.000000e+00> : vector<16x32xf32>
    %11 = tpu.matmul %8, %10, %cst_9 {dimension_numbers = #tpu.dot_dimension_numbers<[1], [0], [0], [1], [0, 0, 1, 1], [], []>} : vector<16x64xbf16>, vector<64x32xbf16>, vector<16x32xf32> -> vector<16x32xf32>
    %12 = arith.addf %9, %11 : vector<16x32xf32>
    %c0_10 = arith.constant 0 : index
    %c0_11 = arith.constant 0 : index
    %13 = vector.load %arg13[%c0_10, %c0_11] : memref<16x32xf32, #tpu.memory_space<vmem>>, vector<16x32xf32>
    tpu.vector_store %arg13[%c0_10, %c0_11], %12 {strides = array<i32>} : memref<16x32xf32, #tpu.memory_space<vmem>>, vector<16x32xf32>,
    %c0_i32_12 = arith.constant 0 : i32
    %14 = arith.cmpi eq, %arg1, %c0_i32_12 : i32
    %15 = arith.extui %14 : i1 to i32
    %c0_i32_13 = arith.constant 0 : i32
    %16 = arith.cmpi ne, %15, %c0_i32_13 : i32
    scf.if %16 {
      %c0_14 = arith.constant 0 : index
      %c0_15 = arith.constant 0 : index
      %17 = vector.load %arg13[%c0_14, %c0_15] : memref<16x32xf32, #tpu.memory_space<vmem>>, vector<16x32xf32>
      %18 = vector.shape_cast %17 : vector<16x32xf32> to vector<2x8x32xf32>
      %c0_16 = arith.constant 0 : index
      %c0_17 = arith.constant 0 : index
      %c0_18 = arith.constant 0 : index
      %19 = vector.load %arg11[%c0_16, %c0_17, %c0_18] : memref<2x8x32xf32, #tpu.memory_space<vmem>>, vector<2x8x32xf32>
      tpu.vector_store %arg11[%c0_16, %c0_17, %c0_18], %18 {strides = array<i32>} : memref<2x8x32xf32, #tpu.memory_space<vmem>>, vector<2x8x32xf32>,
    } else {
    }
    return
  }
  func.func @transform_0(%arg0: i32, %arg1: i32) -> (i32, i32, i32) {
    %c0_i32 = arith.constant 0 : i32
    %c0_i32_0 = arith.constant 0 : i32
    %c0_i32_1 = arith.constant 0 : i32
    return %arg0, %c0_i32, %c0_i32_0 : i32, i32, i32
  }
  func.func @transform_1(%arg0: i32, %arg1: i32) -> (i32, i32) {
    %c0_i32 = arith.constant 0 : i32
    %c0_i32_0 = arith.constant 0 : i32
    %c0_i32_1 = arith.constant 0 : i32
    return %c0_i32, %c0_i32_0 : i32, i32
  }
  func.func @transform_2(%arg0: i32, %arg1: i32) -> (i32, i32) {
    %c0_i32 = arith.constant 0 : i32
    %c0_i32_0 = arith.constant 0 : i32
    %c0_i32_1 = arith.constant 0 : i32
    return %c0_i32, %c0_i32_0 : i32, i32
  }
  func.func @transform_3(%arg0: i32, %arg1: i32) -> (i32, i32) {
    %c0_i32 = arith.constant 0 : i32
    %c0_i32_0 = arith.constant 0 : i32
    %c0_i32_1 = arith.constant 0 : i32
    return %c0_i32, %c0_i32_0 : i32, i32
  }
  func.func @transform_4(%arg0: i32, %arg1: i32) -> (i32, i32) {
    %c0_i32 = arith.constant 0 : i32
    %c0_i32_0 = arith.constant 0 : i32
    %c0_i32_1 = arith.constant 0 : i32
    return %c0_i32, %c0_i32_0 : i32, i32
  }
  func.func @transform_5(%arg0: i32, %arg1: i32) -> (i32, i32) {
    %c0_i32 = arith.constant 0 : i32
    %c0_i32_0 = arith.constant 0 : i32
    %c0_i32_1 = arith.constant 0 : i32
    return %c0_i32, %c0_i32_0 : i32, i32
  }
  func.func @transform_6(%arg0: i32, %arg1: i32) -> (i32, i32) {
    %c0_i32 = arith.constant 0 : i32
    %c0_i32_0 = arith.constant 0 : i32
    %c0_i32_1 = arith.constant 0 : i32
    return %c0_i32, %c0_i32_0 : i32, i32
  }
  func.func @transform_7(%arg0: i32, %arg1: i32) -> (i32, i32) {
    %c0_i32 = arith.constant 0 : i32
    %c0_i32_0 = arith.constant 0 : i32
    return %c0_i32, %arg1 : i32, i32
  }
  func.func @transform_8(%arg0: i32, %arg1: i32) -> (i32, i32) {
    %c0_i32 = arith.constant 0 : i32
    %c0_i32_0 = arith.constant 0 : i32
    return %arg1, %c0_i32 : i32, i32
  }
  func.func @transform_9(%arg0: i32, %arg1: i32) -> (i32, i32, i32) {
    %c0_i32 = arith.constant 0 : i32
    %c0_i32_0 = arith.constant 0 : i32
    %c0_i32_1 = arith.constant 0 : i32
    return %arg0, %c0_i32, %c0_i32_0 : i32, i32, i32
  }
}

</mosaic_0001>

<llo_original>
// kernel: tpu_custom_call.1
$region0: #{tpu_custom_call.1}
  #allocation0 [shape = 'u32[]', space=smem, size = 0x4, offset = 0x4, fixed_abs, tag = 'smem constant byte address 0x4 - core index']
  #allocation1 [shape = 'u32[144,128]{1,0:T(1,128)}', space=vmem, size = 0x12000, scoped, tag = 'internal scratch']
  #allocation2 [shape = 'bf16[16,32]{1,0:T(16,128)(2,1)}', space=vmem, size = 0x1000, scoped, tag = 'scratch operand']
  #allocation3 [shape = 'f32[16,32]{1,0:T(8,128)}', space=vmem, size = 0x2000, scoped, tag = 'scratch operand']
  %s0 = inlined_call_operand.vmem [shape: f32[2,8,32], index: 0, kind: input, shape index: {}]
  %s1 = inlined_call_operand.vmem [shape: f32[1,32], index: 1, kind: input, shape index: {}]
  %s2 = inlined_call_operand.vmem [shape: f32[1,32], index: 2, kind: input, shape index: {}]
  %s3 = inlined_call_operand.vmem [shape: bf16[32,96], index: 3, kind: input, shape index: {}]
  %s4 = inlined_call_operand.vmem [shape: bf16[32,32], index: 4, kind: input, shape index: {}]
  %s5 = inlined_call_operand.vmem [shape: f32[1,32], index: 5, kind: input, shape index: {}]
  %s6 = inlined_call_operand.vmem [shape: f32[1,32], index: 6, kind: input, shape index: {}]
  %s7 = inlined_call_operand.hbm [shape: bf16[32,64], index: 7, kind: input, shape index: {}]
  %s8 = inlined_call_operand.vmem [shape: bf16[64,32], index: 8, kind: input, shape index: {}]
  %s9 = inlined_call_operand.hbm [shape: f32[2,8,32], index: 9, kind: output, shape index: {}]
  %s10 = sld [smem:[#allocation0]]
  $region58: #{tpu_custom_call.1} parent=0
    _
  %s12 = ssub.s32 1, %s10
  %s13 = scalar_select 0, %s12, %s10
  $region1: #{tpu_custom_call.1} parent=0
    #allocation4 [shape = 'u8[8192]{0}', space=vmem, size = 0x2000, scoped, tag = 'input window, operand 7, single buffered']
    #allocation5 [shape = 's32[1]{0}', space=sflag, size = 0x4, scoped, tag = 'scoped memory for tpu_custom_call.1']
    #allocation6 [shape = 's32[1]{0}', space=sflag, size = 0x4, scoped, tag = 'scoped memory for tpu_custom_call.1']
    #allocation7 [shape = 'u8[8192]{0}', space=vmem, size = 0x2000, scoped, tag = 'output window, operand 0, single buffered']
    %14 = vsyncpa [#allocation5], 0
    %15 = vsyncpa [#allocation6], 0
    // Predicated region
    $region2: #{tpu_custom_call.1} parent=1 // pred_check
      _
    $region3: #{tpu_custom_call.1} parent=1 // pred_check_branch
      %17 = sbr.rel (0) target = $region5
    $region4: #{tpu_custom_call.1} parent=1 // pred_region
      _
    $region5: #{tpu_custom_call.1} parent=1 // pred_fallthru
      _
    // Predicated region
    $region6: #{tpu_custom_call.1} parent=1 // pred_check
      _
    $region7: #{tpu_custom_call.1} parent=1 // pred_check_branch
      %19 = sbr.rel (0) target = $region9
    $region8: #{tpu_custom_call.1} parent=1 // pred_region
      _
    $region9: #{tpu_custom_call.1} parent=1 // pred_fallthru
      _
    // Predicated region
    $region10: #{tpu_custom_call.1} parent=1 // pred_check
      _
    $region11: #{tpu_custom_call.1} parent=1 // pred_check_branch
      %21 = sbr.rel (0) target = $region13
    $region12: #{tpu_custom_call.1} parent=1 // pred_region
      _
    $region13: #{tpu_custom_call.1} parent=1 // pred_fallthru
      _
    // Predicated region
    $region14: #{tpu_custom_call.1} parent=1 // pred_check
      _
    $region15: #{tpu_custom_call.1} parent=1 // pred_check_branch
      %23 = sbr.rel (0) target = $region17
    $region16: #{tpu_custom_call.1} parent=1 // pred_region
      _
    $region17: #{tpu_custom_call.1} parent=1 // pred_fallthru
      _
    // Predicated region
    $region18: #{tpu_custom_call.1} parent=1 // pred_check
      _
    $region19: #{tpu_custom_call.1} parent=1 // pred_check_branch
      %25 = sbr.rel (0) target = $region21
    $region20: #{tpu_custom_call.1} parent=1 // pred_region
      _
    $region21: #{tpu_custom_call.1} parent=1 // pred_fallthru
      _
    // Predicated region
    $region22: #{tpu_custom_call.1} parent=1 // pred_check
      _
    $region23: #{tpu_custom_call.1} parent=1 // pred_check_branch
      %27 = sbr.rel (0) target = $region25
    $region24: #{tpu_custom_call.1} parent=1 // pred_region
      _
    $region25: #{tpu_custom_call.1} parent=1 // pred_fallthru
      _
    // Predicated region
    $region26: #{tpu_custom_call.1} parent=1 // pred_check
      _
    $region27: #{tpu_custom_call.1} parent=1 // pred_check_branch
      %29 = sbr.rel (0) target = $region29
    $region28: #{tpu_custom_call.1} parent=1 // pred_region
      _
    $region29: #{tpu_custom_call.1} parent=1 // pred_fallthru
      _
    // Predicated region
    $region30: #{tpu_custom_call.1} parent=1 // pred_check
      _
    $region31: #{tpu_custom_call.1} parent=1 // pred_check_branch
      %31 = sbr.rel (0) target = $region33
    $region32: #{tpu_custom_call.1} parent=1 // pred_region
      %s33 = ssub.s32 256, 256
      %34 = vsyncadd [#allocation5], %s33
      %s35 = sshll.u32 [#allocation4], 4
      %s36 = int_to_ptr.vmem [resolvable:$true] %s35
      %41 = dma.hbm_to_vmem [thread:$0]  %s7, 256, %s36, [#allocation5], 64, 64, 4
    $region33: #{tpu_custom_call.1} parent=1 // pred_fallthru
      _
    // Predicated region
    $region34: #{tpu_custom_call.1} parent=1 // pred_check
      _
    $region35: #{tpu_custom_call.1} parent=1 // pred_check_branch
      %43 = sbr.rel (0) target = $region37
    $region36: #{tpu_custom_call.1} parent=1 // pred_region
      _
    $region37: #{tpu_custom_call.1} parent=1 // pred_fallthru
      _
    // Predicated region
    $region38: #{tpu_custom_call.1} parent=1 // pred_check
      _
    $region39: #{tpu_custom_call.1} parent=1 // pred_check_branch
      %45 = sbr.rel (0) target = $region41
    $region40: #{tpu_custom_call.1} parent=1 // pred_region
      %46 = dma.done [#allocation5], 256
    $region41: #{tpu_custom_call.1} parent=1 // pred_fallthru
      _
    %p48 = scmp.eq.s32.totalorder 0, 0
    // Predicated region
    $region42: #{tpu_custom_call.1} parent=1 // pred_check
      %p49 = pneg %p48
    $region43: #{tpu_custom_call.1} parent=1 // pred_check_branch
      %51 = sbr.rel (%p49) target = $region45
    $region44: #{tpu_custom_call.1} parent=1 // pred_region
      %v52 = vld [vmem:[%s0] sm:$0xff]
      %v53 = vld [vmem:[%s0 + $0x8] sm:$0xff]
      %v54 = vld [vmem:[%s1] sm:$0x1]
      %v55 = vld [vmem:[%s2] sm:$0x1]
      %vm56 = vcmask 261120
      %v57 = vsel %vm56, %v52, 0.0
      %58 = vadd.xlane.f32.xlu0 %v57
      %v59 = vpop.xlane.xlu0 %58
      %v60 = vsel %vm56, %v53, 0.0
      %61 = vadd.xlane.f32.xlu0 %v60
      %v62 = vpop.xlane.xlu0 %61
      %v63 = vrcp.pop 32.0
      %v64 = vmul.f32 %v59, %v63
      %v65 = vmul.f32 %v62, %v63
      %v66 = vsub.f32 %v52, %v64
      %v67 = vsub.f32 %v53, %v65
      %v68 = vmul.f32 %v66, %v66
      %v69 = vmul.f32 %v67, %v67
      %v70 = vsel %vm56, %v68, 0.0
      %71 = vadd.xlane.f32.xlu0 %v70
      %v72 = vpop.xlane.xlu0 %71
      %v73 = vsel %vm56, %v69, 0.0
      %74 = vadd.xlane.f32.xlu0 %v73
      %v75 = vpop.xlane.xlu0 %74
      %v76 = vmul.f32 %v72, %v63
      %v77 = vmul.f32 %v75, %v63
      %v78 = vadd.f32 %v76, 1e-05
      %v79 = vadd.f32 %v77, 1e-05
      %v80 = vrsqrt.pop %v78
      %v81 = vrsqrt.pop %v79
      %v82 = vmul.f32 %v66, %v80
      %v83 = vmul.f32 %v67, %v81
      %v85 = vlaneseq
      %v86 = vshrl.u32 %v85, 7
      %v87 = vsub.s32 0, %v86
      %v88 = vrot.slane %v54, %v87
      %v90 = vmul.f32 %v82, %v88
      %v91 = vmul.f32 %v83, %v88
      %v93 = vlaneseq
      %v94 = vshrl.u32 %v93, 7
      %v95 = vsub.s32 0, %v94
      %v96 = vrot.slane %v55, %v95
      %v98 = vadd.f32 %v90, %v96
      %v99 = vadd.f32 %v91, %v96
      %v100 = vpack.c.bf16 %v99, %v98
      %v101 = vld [vmem:[%s3] sm:$0xf]
      %v102 = vld [vmem:[%s3 + $0x4] sm:$0xf]
      %v103 = vld [vmem:[%s3 + $0x8] sm:$0xf]
      %v104 = vld [vmem:[%s3 + $0xc] sm:$0xf]
      %v109 = vunpack.c.l.b16 %v101
      %v110 = vunpack.c.l.b16 %v102
      %v111 = vunpack.c.l.b16 %v103
      %v112 = vunpack.c.l.b16 %v104
      %v113 = vpack.c.b16 %v110, %v109
      %v114 = vpack.c.b16 %v112, %v111
      %v118 = vsel %vm56, %v100, 0
      %120 = vmatprep.subr.bf16.mxu0 0
      %121 = vmatpush1.bf16.msra.mxu0 %v113
      %122 = vmatprep.subr.bf16.mxu0 0
      %123 = vmatpush1.bf16.msra.mxu0 %v114
      %124 = vmatprep.subr.bf16.mxu0 0
      %125 = vmatpush1.bf16.msra.mxu0 0
      %126 = vmatprep.subr.bf16.mxu0 0
      %127 = vmatpush1.bf16.msra.mxu0 0
      %128 = vmatprep.subr.bf16.mxu0 0
      %129 = vmatpush1.bf16.msra.mxu0 0
      %130 = vmatprep.subr.bf16.mxu0 0
      %131 = vmatpush1.bf16.msra.mxu0 0
      %132 = vmatprep.subr.bf16.mxu0 0
      %133 = vmatpush1.bf16.msra.mxu0 0
      %134 = vmatprep.subr.bf16.mxu0 0
      %135 = vmatpush1.bf16.msra.mxu0 0
      %136 = vmatprep.subr.bf16.mxu0 0
      %137 = vmatpush1.bf16.msra.mxu0 0
      %138 = vmatprep.subr.bf16.mxu0 0
      %139 = vmatpush1.bf16.msra.mxu0 0
      %140 = vmatprep.subr.bf16.mxu0 0
      %141 = vmatpush1.bf16.msra.mxu0 0
      %142 = vmatprep.subr.bf16.mxu0 0
      %143 = vmatpush1.bf16.msra.mxu0 0
      %144 = vmatprep.subr.bf16.mxu0 0
      %145 = vmatpush1.bf16.msra.mxu0 0
      %146 = vmatprep.subr.bf16.mxu0 0
      %147 = vmatpush1.bf16.msra.mxu0 0
      %148 = vmatprep.subr.bf16.mxu0 0
      %149 = vmatpush1.bf16.msra.mxu0 0
      %150 = vmatprep.subr.bf16.mxu0 0
      %151 = vmatpush1.bf16.msra.mxu0 0
      %152 = vmatprep.mubr.bf16.mxu0 0
      %153 = vmatmul.mubr.bf16.gmra.mrb[0].mxu0 %v118
      %v154 = vpop.f32.mrb[0].mxu0
      %v155 = vadd.f32 0.0, %v154
      %v156 = vpop.f32.mrb[0].mxu0
      %v157 = vpop.f32.mrb[0].mxu0
      %v158 = vadd.f32 0.0, %v157
      %v159 = vpop.f32.mrb[0].mxu0
      %160 = vdwg.mxu0
      %v161 = vpack.c.bf16 %v158, %v155
      %163 = vrot.lane.b32.xlu0 %v161, 120
      %v164 = vpop.permute.xlu0 %163
      %165 = vrot.lane.b32.xlu0 %v161, 112
      %v166 = vpop.permute.xlu0 %165
      %167 = vrot.lane.b32.xlu0 %v161, 104
      %v168 = vpop.permute.xlu0 %167
      %v170 = vunpack.c.l.s4 1983009808
      %v171 = vunpack.c.0.s8 %v170
      %v172 = vlaneseq
      %v173 = vshrl.u32 %v172, 7
      %v174 = vsub.s32 %v171, %v173
      %v175 = vrot.slane %v161, %v174
      %v178 = vunpack.c.l.s4 1983009808
      %v179 = vunpack.c.0.s8 %v178
      %v180 = vlaneseq
      %v181 = vshrl.u32 %v180, 7
      %v182 = vsub.s32 %v179, %v181
      %v183 = vrot.slane %v166, %v182
      %v184 = vcombine.low %v175, %v183
      %v185 = vcombine.high %v175, %v183
      %v187 = vunpack.c.l.s4 1934713408
      %v188 = vunpack.c.0.s8 %v187
      %v189 = vlaneseq
      %v190 = vshrl.u32 %v189, 7
      %v191 = vsub.s32 %v188, %v190
      %v192 = vrot.slane %v184, %v191
      %v194 = vunpack.c.l.s4 1934713408
      %v195 = vunpack.c.0.s8 %v194
      %v196 = vlaneseq
      %v197 = vshrl.u32 %v196, 7
      %v198 = vsub.s32 %v195, %v197
      %v199 = vrot.slane %v185, %v198
      %v200 = vcombine.high %v192, 0
      %v201 = vcombine.high %v199, 0
      %v204 = vunpack.c.l.s4 1983009808
      %v205 = vunpack.c.0.s8 %v204
      %v206 = vlaneseq
      %v207 = vshrl.u32 %v206, 7
      %v208 = vsub.s32 %v205, %v207
      %v209 = vrot.slane %v164, %v208
      %v212 = vunpack.c.l.s4 1983009808
      %v213 = vunpack.c.0.s8 %v212
      %v214 = vlaneseq
      %v215 = vshrl.u32 %v214, 7
      %v216 = vsub.s32 %v213, %v215
      %v217 = vrot.slane %v168, %v216
      %v218 = vcombine.low %v209, %v217
      %v219 = vcombine.high %v209, %v217
      %v221 = vunpack.c.l.s4 1934713408
      %v222 = vunpack.c.0.s8 %v221
      %v223 = vlaneseq
      %v224 = vshrl.u32 %v223, 7
      %v225 = vsub.s32 %v222, %v224
      %v226 = vrot.slane %v218, %v225
      %v228 = vunpack.c.l.s4 1934713408
      %v229 = vunpack.c.0.s8 %v228
      %v230 = vlaneseq
      %v231 = vshrl.u32 %v230, 7
      %v232 = vsub.s32 %v229, %v231
      %v233 = vrot.slane %v219, %v232
      %v234 = vcombine.high %v226, 0
      %v235 = vcombine.high %v233, 0
      %v238 = vpack.i.b16 %v226, %v192
      %v240 = vshrl.u32 %v192, 16
      %v241 = vshrl.u32 %v226, 16
      %v242 = vpack.i.b16 %v241, %v240
      %v246 = vpack.i.b16 %v234, %v200
      %v248 = vshrl.u32 %v200, 16
      %v249 = vshrl.u32 %v234, 16
      %v250 = vpack.i.b16 %v249, %v248
      %v254 = vpack.i.b16 %v233, %v199
      %v256 = vshrl.u32 %v199, 16
      %v257 = vshrl.u32 %v233, 16
      %v258 = vpack.i.b16 %v257, %v256
      %v262 = vpack.i.b16 %v235, %v201
      %v264 = vshrl.u32 %v201, 16
      %v265 = vshrl.u32 %v235, 16
      %v266 = vpack.i.b16 %v265, %v264
      %v268 = vcombine.low %v238, %v254
      %v270 = vunpack.c.l.s4 1983009808
      %v271 = vunpack.c.0.s8 %v270
      %v272 = vlaneseq
      %v273 = vshrl.u32 %v272, 7
      %v274 = vsub.s32 %v271, %v273
      %v275 = vrot.slane %v268, %v274
      %v276 = vcombine.low %v246, %v262
      %v278 = vunpack.c.l.s4 1983009808
      %v279 = vunpack.c.0.s8 %v278
      %v280 = vlaneseq
      %v281 = vshrl.u32 %v280, 7
      %v282 = vsub.s32 %v279, %v281
      %v283 = vrot.slane %v276, %v282
      %v284 = vcombine.low %v275, %v283
      %v286 = vunpack.c.l.s4 1934713408
      %v287 = vunpack.c.0.s8 %v286
      %v288 = vlaneseq
      %v289 = vshrl.u32 %v288, 7
      %v290 = vsub.s32 %v287, %v289
      %v291 = vrot.slane %v284, %v290
      %v292 = vcombine.high %v291, 0
      %v293 = vcombine.low %v242, %v258
      %v295 = vunpack.c.l.s4 1983009808
      %v296 = vunpack.c.0.s8 %v295
      %v297 = vlaneseq
      %v298 = vshrl.u32 %v297, 7
      %v299 = vsub.s32 %v296, %v298
      %v300 = vrot.slane %v293, %v299
      %v301 = vcombine.low %v250, %v266
      %v303 = vunpack.c.l.s4 1983009808
      %v304 = vunpack.c.0.s8 %v303
      %v305 = vlaneseq
      %v306 = vshrl.u32 %v305, 7
      %v307 = vsub.s32 %v304, %v306
      %v308 = vrot.slane %v301, %v307
      %v309 = vcombine.low %v300, %v308
      %v311 = vunpack.c.l.s4 1934713408
      %v312 = vunpack.c.0.s8 %v311
      %v313 = vlaneseq
      %v314 = vshrl.u32 %v313, 7
      %v315 = vsub.s32 %v312, %v314
      %v316 = vrot.slane %v309, %v315
      %v317 = vcombine.high %v316, 0
      %v320 = vpack.i.b16 %v316, %v291
      %v321 = vshrl.u32 %v291, 16
      %v322 = vshrl.u32 %v316, 16
      %v323 = vpack.i.b16 %v322, %v321
      %v326 = vpack.i.b16 %v317, %v292
      %v327 = vshrl.u32 %v292, 16
      %v328 = vshrl.u32 %v317, 16
      %v329 = vpack.i.b16 %v328, %v327
      %330 = vrot.lane.b32.xlu0 %v161, 96
      %v331 = vpop.permute.xlu0 %330
      %332 = vrot.lane.b32.xlu0 %v164, 96
      %v333 = vpop.permute.xlu0 %332
      %334 = vrot.lane.b32.xlu0 %v166, 96
      %v335 = vpop.permute.xlu0 %334
      %336 = vrot.lane.b32.xlu0 %v168, 96
      %v337 = vpop.permute.xlu0 %336
      %v340 = vunpack.c.l.s4 1983009808
      %v341 = vunpack.c.0.s8 %v340
      %v342 = vlaneseq
      %v343 = vshrl.u32 %v342, 7
      %v344 = vsub.s32 %v341, %v343
      %v345 = vrot.slane %v331, %v344
      %v348 = vunpack.c.l.s4 1983009808
      %v349 = vunpack.c.0.s8 %v348
      %v350 = vlaneseq
      %v351 = vshrl.u32 %v350, 7
      %v352 = vsub.s32 %v349, %v351
      %v353 = vrot.slane %v335, %v352
      %v354 = vcombine.low %v345, %v353
      %v355 = vcombine.high %v345, %v353
      %v357 = vunpack.c.l.s4 1934713408
      %v358 = vunpack.c.0.s8 %v357
      %v359 = vlaneseq
      %v360 = vshrl.u32 %v359, 7
      %v361 = vsub.s32 %v358, %v360
      %v362 = vrot.slane %v354, %v361
      %v364 = vunpack.c.l.s4 1934713408
      %v365 = vunpack.c.0.s8 %v364
      %v366 = vlaneseq
      %v367 = vshrl.u32 %v366, 7
      %v368 = vsub.s32 %v365, %v367
      %v369 = vrot.slane %v355, %v368
      %v370 = vcombine.high %v362, 0
      %v371 = vcombine.high %v369, 0
      %v374 = vunpack.c.l.s4 1983009808
      %v375 = vunpack.c.0.s8 %v374
      %v376 = vlaneseq
      %v377 = vshrl.u32 %v376, 7
      %v378 = vsub.s32 %v375, %v377
      %v379 = vrot.slane %v333, %v378
      %v382 = vunpack.c.l.s4 1983009808
      %v383 = vunpack.c.0.s8 %v382
      %v384 = vlaneseq
      %v385 = vshrl.u32 %v384, 7
      %v386 = vsub.s32 %v383, %v385
      %v387 = vrot.slane %v337, %v386
      %v388 = vcombine.low %v379, %v387
      %v389 = vcombine.high %v379, %v387
      %v391 = vunpack.c.l.s4 1934713408
      %v392 = vunpack.c.0.s8 %v391
      %v393 = vlaneseq
      %v394 = vshrl.u32 %v393, 7
      %v395 = vsub.s32 %v392, %v394
      %v396 = vrot.slane %v388, %v395
      %v398 = vunpack.c.l.s4 1934713408
      %v399 = vunpack.c.0.s8 %v398
      %v400 = vlaneseq
      %v401 = vshrl.u32 %v400, 7
      %v402 = vsub.s32 %v399, %v401
      %v403 = vrot.slane %v389, %v402
      %v404 = vcombine.high %v396, 0
      %v405 = vcombine.high %v403, 0
      %v408 = vpack.i.b16 %v396, %v362
      %v410 = vshrl.u32 %v362, 16
      %v411 = vshrl.u32 %v396, 16
      %v412 = vpack.i.b16 %v411, %v410
      %v416 = vpack.i.b16 %v404, %v370
      %v418 = vshrl.u32 %v370, 16
      %v419 = vshrl.u32 %v404, 16
      %v420 = vpack.i.b16 %v419, %v418
      %v424 = vpack.i.b16 %v403, %v369
      %v426 = vshrl.u32 %v369, 16
      %v427 = vshrl.u32 %v403, 16
      %v428 = vpack.i.b16 %v427, %v426
      %v432 = vpack.i.b16 %v405, %v371
      %v434 = vshrl.u32 %v371, 16
      %v435 = vshrl.u32 %v405, 16
      %v436 = vpack.i.b16 %v435, %v434
      %v438 = vcombine.low %v408, %v424
      %v440 = vunpack.c.l.s4 1983009808
      %v441 = vunpack.c.0.s8 %v440
      %v442 = vlaneseq
      %v443 = vshrl.u32 %v442, 7
      %v444 = vsub.s32 %v441, %v443
      %v445 = vrot.slane %v438, %v444
      %v446 = vcombine.low %v416, %v432
      %v448 = vunpack.c.l.s4 1983009808
      %v449 = vunpack.c.0.s8 %v448
      %v450 = vlaneseq
      %v451 = vshrl.u32 %v450, 7
      %v452 = vsub.s32 %v449, %v451
      %v453 = vrot.slane %v446, %v452
      %v454 = vcombine.low %v445, %v453
      %v456 = vunpack.c.l.s4 1934713408
      %v457 = vunpack.c.0.s8 %v456
      %v458 = vlaneseq
      %v459 = vshrl.u32 %v458, 7
      %v460 = vsub.s32 %v457, %v459
      %v461 = vrot.slane %v454, %v460
      %v462 = vcombine.high %v461, 0
      %v463 = vcombine.low %v412, %v428
      %v465 = vunpack.c.l.s4 1983009808
      %v466 = vunpack.c.0.s8 %v465
      %v467 = vlaneseq
      %v468 = vshrl.u32 %v467, 7
      %v469 = vsub.s32 %v466, %v468
      %v470 = vrot.slane %v463, %v469
      %v471 = vcombine.low %v420, %v436
      %v473 = vunpack.c.l.s4 1983009808
      %v474 = vunpack.c.0.s8 %v473
      %v475 = vlaneseq
      %v476 = vshrl.u32 %v475, 7
      %v477 = vsub.s32 %v474, %v476
      %v478 = vrot.slane %v471, %v477
      %v479 = vcombine.low %v470, %v478
      %v481 = vunpack.c.l.s4 1934713408
      %v482 = vunpack.c.0.s8 %v481
      %v483 = vlaneseq
      %v484 = vshrl.u32 %v483, 7
      %v485 = vsub.s32 %v482, %v484
      %v486 = vrot.slane %v479, %v485
      %v487 = vcombine.high %v486, 0
      %v490 = vpack.i.b16 %v486, %v461
      %v491 = vshrl.u32 %v461, 16
      %v492 = vshrl.u32 %v486, 16
      %v493 = vpack.i.b16 %v492, %v491
      %v496 = vpack.i.b16 %v487, %v462
      %v497 = vshrl.u32 %v462, 16
      %v498 = vshrl.u32 %v487, 16
      %v499 = vpack.i.b16 %v498, %v497
      %500 = vrot.lane.b32.xlu0 %v161, 64
      %v501 = vpop.permute.xlu0 %500
      %502 = vrot.lane.b32.xlu0 %v164, 64
      %v503 = vpop.permute.xlu0 %502
      %504 = vrot.lane.b32.xlu0 %v166, 64
      %v505 = vpop.permute.xlu0 %504
      %506 = vrot.lane.b32.xlu0 %v168, 64
      %v507 = vpop.permute.xlu0 %506
      %v510 = vunpack.c.l.s4 1983009808
      %v511 = vunpack.c.0.s8 %v510
      %v512 = vlaneseq
      %v513 = vshrl.u32 %v512, 7
      %v514 = vsub.s32 %v511, %v513
      %v515 = vrot.slane %v501, %v514
      %v518 = vunpack.c.l.s4 1983009808
      %v519 = vunpack.c.0.s8 %v518
      %v520 = vlaneseq
      %v521 = vshrl.u32 %v520, 7
      %v522 = vsub.s32 %v519, %v521
      %v523 = vrot.slane %v505, %v522
      %v524 = vcombine.low %v515, %v523
      %v525 = vcombine.high %v515, %v523
      %v527 = vunpack.c.l.s4 1934713408
      %v528 = vunpack.c.0.s8 %v527
      %v529 = vlaneseq
      %v530 = vshrl.u32 %v529, 7
      %v531 = vsub.s32 %v528, %v530
      %v532 = vrot.slane %v524, %v531
      %v534 = vunpack.c.l.s4 1934713408
      %v535 = vunpack.c.0.s8 %v534
      %v536 = vlaneseq
      %v537 = vshrl.u32 %v536, 7
      %v538 = vsub.s32 %v535, %v537
      %v539 = vrot.slane %v525, %v538
      %v540 = vcombine.high %v532, 0
      %v541 = vcombine.high %v539, 0
      %v544 = vunpack.c.l.s4 1983009808
      %v545 = vunpack.c.0.s8 %v544
      %v546 = vlaneseq
      %v547 = vshrl.u32 %v546, 7
      %v548 = vsub.s32 %v545, %v547
      %v549 = vrot.slane %v503, %v548
      %v552 = vunpack.c.l.s4 1983009808
      %v553 = vunpack.c.0.s8 %v552
      %v554 = vlaneseq
      %v555 = vshrl.u32 %v554, 7
      %v556 = vsub.s32 %v553, %v555
      %v557 = vrot.slane %v507, %v556
      %v558 = vcombine.low %v549, %v557
      %v559 = vcombine.high %v549, %v557
      %v561 = vunpack.c.l.s4 1934713408
      %v562 = vunpack.c.0.s8 %v561
      %v563 = vlaneseq
      %v564 = vshrl.u32 %v563, 7
      %v565 = vsub.s32 %v562, %v564
      %v566 = vrot.slane %v558, %v565
      %v568 = vunpack.c.l.s4 1934713408
      %v569 = vunpack.c.0.s8 %v568
      %v570 = vlaneseq
      %v571 = vshrl.u32 %v570, 7
      %v572 = vsub.s32 %v569, %v571
      %v573 = vrot.slane %v559, %v572
      %v574 = vcombine.high %v566, 0
      %v575 = vcombine.high %v573, 0
      %v578 = vpack.i.b16 %v566, %v532
      %v580 = vshrl.u32 %v532, 16
      %v581 = vshrl.u32 %v566, 16
      %v582 = vpack.i.b16 %v581, %v580
      %v586 = vpack.i.b16 %v574, %v540
      %v588 = vshrl.u32 %v540, 16
      %v589 = vshrl.u32 %v574, 16
      %v590 = vpack.i.b16 %v589, %v588
      %v594 = vpack.i.b16 %v573, %v539
      %v596 = vshrl.u32 %v539, 16
      %v597 = vshrl.u32 %v573, 16
      %v598 = vpack.i.b16 %v597, %v596
      %v602 = vpack.i.b16 %v575, %v541
      %v604 = vshrl.u32 %v541, 16
      %v605 = vshrl.u32 %v575, 16
      %v606 = vpack.i.b16 %v605, %v604
      %v608 = vcombine.low %v578, %v594
      %v610 = vunpack.c.l.s4 1983009808
      %v611 = vunpack.c.0.s8 %v610
      %v612 = vlaneseq
      %v613 = vshrl.u32 %v612, 7
      %v614 = vsub.s32 %v611, %v613
      %v615 = vrot.slane %v608, %v614
      %v616 = vcombine.low %v586, %v602
      %v618 = vunpack.c.l.s4 1983009808
      %v619 = vunpack.c.0.s8 %v618
      %v620 = vlaneseq
      %v621 = vshrl.u32 %v620, 7
      %v622 = vsub.s32 %v619, %v621
      %v623 = vrot.slane %v616, %v622
      %v624 = vcombine.low %v615, %v623
      %v626 = vunpack.c.l.s4 1934713408
      %v627 = vunpack.c.0.s8 %v626
      %v628 = vlaneseq
      %v629 = vshrl.u32 %v628, 7
      %v630 = vsub.s32 %v627, %v629
      %v631 = vrot.slane %v624, %v630
      %v632 = vcombine.high %v631, 0
      %v633 = vcombine.low %v582, %v598
      %v635 = vunpack.c.l.s4 1983009808
      %v636 = vunpack.c.0.s8 %v635
      %v637 = vlaneseq
      %v638 = vshrl.u32 %v637, 7
      %v639 = vsub.s32 %v636, %v638
      %v640 = vrot.slane %v633, %v639
      %v641 = vcombine.low %v590, %v606
      %v643 = vunpack.c.l.s4 1983009808
      %v644 = vunpack.c.0.s8 %v643
      %v645 = vlaneseq
      %v646 = vshrl.u32 %v645, 7
      %v647 = vsub.s32 %v644, %v646
      %v648 = vrot.slane %v641, %v647
      %v649 = vcombine.low %v640, %v648
      %v651 = vunpack.c.l.s4 1934713408
      %v652 = vunpack.c.0.s8 %v651
      %v653 = vlaneseq
      %v654 = vshrl.u32 %v653, 7
      %v655 = vsub.s32 %v652, %v654
      %v656 = vrot.slane %v649, %v655
      %v657 = vcombine.high %v656, 0
      %v660 = vpack.i.b16 %v656, %v631
      %v661 = vshrl.u32 %v631, 16
      %v662 = vshrl.u32 %v656, 16
      %v663 = vpack.i.b16 %v662, %v661
      %v666 = vpack.i.b16 %v657, %v632
      %v667 = vshrl.u32 %v632, 16
      %v668 = vshrl.u32 %v657, 16
      %v669 = vpack.i.b16 %v668, %v667
      %vm670 = vcmask 64512
      %v672 = vsel %vm670, %v320, 0
      %v675 = vsel %vm670, %v490, 0
      %677 = vmatprep.subr.bf16.mxu0 0
      %678 = vmatpush1.bf16.xpose.msra.mxu0 %v675
      %679 = vmatprep.subr.bf16.mxu0 0
      %680 = vmatpush1.bf16.xpose.msra.mxu0 0
      %681 = vmatprep.subr.bf16.mxu0 0
      %682 = vmatpush1.bf16.xpose.msra.mxu0 0
      %683 = vmatprep.subr.bf16.mxu0 0
      %684 = vmatpush1.bf16.xpose.msra.mxu0 0
      %685 = vmatprep.subr.bf16.mxu0 0
      %686 = vmatpush1.bf16.xpose.msra.mxu0 0
      %687 = vmatprep.subr.bf16.mxu0 0
      %688 = vmatpush1.bf16.xpose.msra.mxu0 0
      %689 = vmatprep.subr.bf16.mxu0 0
      %690 = vmatpush1.bf16.xpose.msra.mxu0 0
      %691 = vmatprep.subr.bf16.mxu0 0
      %692 = vmatpush1.bf16.xpose.msra.mxu0 0
      %693 = vmatprep.subr.bf16.mxu0 0
      %694 = vmatpush1.bf16.xpose.msra.mxu0 0
      %695 = vmatprep.subr.bf16.mxu0 0
      %696 = vmatpush1.bf16.xpose.msra.mxu0 0
      %697 = vmatprep.subr.bf16.mxu0 0
      %698 = vmatpush1.bf16.xpose.msra.mxu0 0
      %699 = vmatprep.subr.bf16.mxu0 0
      %700 = vmatpush1.bf16.xpose.msra.mxu0 0
      %701 = vmatprep.subr.bf16.mxu0 0
      %702 = vmatpush1.bf16.xpose.msra.mxu0 0
      %703 = vmatprep.subr.bf16.mxu0 0
      %704 = vmatpush1.bf16.xpose.msra.mxu0 0
      %705 = vmatprep.subr.bf16.mxu0 0
      %706 = vmatpush1.bf16.xpose.msra.mxu0 0
      %707 = vmatprep.subr.bf16.mxu0 0
      %708 = vmatpush1.bf16.xpose.msra.mxu0 0
      %709 = vmatprep.mubr.bf16.mxu0 0
      %710 = vmatmul.mubr.bf16.gmra.mrb[0].mxu0 %v672
      %v711 = vpop.f32.mrb[0].mxu0
      %v712 = vadd.f32 0.0, %v711
      %v713 = vpop.f32.mrb[0].mxu0
      %v714 = vpop.f32.mrb[0].mxu0
      %v715 = vpop.f32.mrb[0].mxu0
      %716 = vdwg.mxu0
      %v718 = vsel %vm670, %v323, 0
      %v721 = vsel %vm670, %v493, 0
      %723 = vmatprep.subr.bf16.mxu0 0
      %724 = vmatpush1.bf16.xpose.msra.mxu0 %v721
      %725 = vmatprep.subr.bf16.mxu0 0
      %726 = vmatpush1.bf16.xpose.msra.mxu0 0
      %727 = vmatprep.subr.bf16.mxu0 0
      %728 = vmatpush1.bf16.xpose.msra.mxu0 0
      %729 = vmatprep.subr.bf16.mxu0 0
      %730 = vmatpush1.bf16.xpose.msra.mxu0 0
      %731 = vmatprep.subr.bf16.mxu0 0
      %732 = vmatpush1.bf16.xpose.msra.mxu0 0
      %733 = vmatprep.subr.bf16.mxu0 0
      %734 = vmatpush1.bf16.xpose.msra.mxu0 0
      %735 = vmatprep.subr.bf16.mxu0 0
      %736 = vmatpush1.bf16.xpose.msra.mxu0 0
      %737 = vmatprep.subr.bf16.mxu0 0
      %738 = vmatpush1.bf16.xpose.msra.mxu0 0
      %739 = vmatprep.subr.bf16.mxu0 0
      %740 = vmatpush1.bf16.xpose.msra.mxu0 0
      %741 = vmatprep.subr.bf16.mxu0 0
      %742 = vmatpush1.bf16.xpose.msra.mxu0 0
      %743 = vmatprep.subr.bf16.mxu0 0
      %744 = vmatpush1.bf16.xpose.msra.mxu0 0
      %745 = vmatprep.subr.bf16.mxu0 0
      %746 = vmatpush1.bf16.xpose.msra.mxu0 0
      %747 = vmatprep.subr.bf16.mxu0 0
      %748 = vmatpush1.bf16.xpose.msra.mxu0 0
      %749 = vmatprep.subr.bf16.mxu0 0
      %750 = vmatpush1.bf16.xpose.msra.mxu0 0
      %751 = vmatprep.subr.bf16.mxu0 0
      %752 = vmatpush1.bf16.xpose.msra.mxu0 0
      %753 = vmatprep.subr.bf16.mxu0 0
      %754 = vmatpush1.bf16.xpose.msra.mxu0 0
      %755 = vmatprep.mubr.bf16.mxu0 0
      %756 = vmatmul.mubr.bf16.gmra.mrb[0].mxu0 %v718
      %v757 = vpop.f32.mrb[0].mxu0
      %v758 = vadd.f32 0.0, %v757
      %v759 = vpop.f32.mrb[0].mxu0
      %v760 = vpop.f32.mrb[0].mxu0
      %v761 = vpop.f32.mrb[0].mxu0
      %762 = vdwg.mxu0
      %v764 = vsel %vm670, %v326, 0
      %v767 = vsel %vm670, %v496, 0
      %769 = vmatprep.subr.bf16.mxu0 0
      %770 = vmatpush1.bf16.xpose.msra.mxu0 %v767
      %771 = vmatprep.subr.bf16.mxu0 0
      %772 = vmatpush1.bf16.xpose.msra.mxu0 0
      %773 = vmatprep.subr.bf16.mxu0 0
      %774 = vmatpush1.bf16.xpose.msra.mxu0 0
      %775 = vmatprep.subr.bf16.mxu0 0
      %776 = vmatpush1.bf16.xpose.msra.mxu0 0
      %777 = vmatprep.subr.bf16.mxu0 0
      %778 = vmatpush1.bf16.xpose.msra.mxu0 0
      %779 = vmatprep.subr.bf16.mxu0 0
      %780 = vmatpush1.bf16.xpose.msra.mxu0 0
      %781 = vmatprep.subr.bf16.mxu0 0
      %782 = vmatpush1.bf16.xpose.msra.mxu0 0
      %783 = vmatprep.subr.bf16.mxu0 0
      %784 = vmatpush1.bf16.xpose.msra.mxu0 0
      %785 = vmatprep.subr.bf16.mxu0 0
      %786 = vmatpush1.bf16.xpose.msra.mxu0 0
      %787 = vmatprep.subr.bf16.mxu0 0
      %788 = vmatpush1.bf16.xpose.msra.mxu0 0
      %789 = vmatprep.subr.bf16.mxu0 0
      %790 = vmatpush1.bf16.xpose.msra.mxu0 0
      %791 = vmatprep.subr.bf16.mxu0 0
      %792 = vmatpush1.bf16.xpose.msra.mxu0 0
      %793 = vmatprep.subr.bf16.mxu0 0
      %794 = vmatpush1.bf16.xpose.msra.mxu0 0
      %795 = vmatprep.subr.bf16.mxu0 0
      %796 = vmatpush1.bf16.xpose.msra.mxu0 0
      %797 = vmatprep.subr.bf16.mxu0 0
      %798 = vmatpush1.bf16.xpose.msra.mxu0 0
      %799 = vmatprep.subr.bf16.mxu0 0
      %800 = vmatpush1.bf16.xpose.msra.mxu0 0
      %801 = vmatprep.mubr.bf16.mxu0 0
      %802 = vmatmul.mubr.bf16.gmra.mrb[0].mxu0 %v764
      %v803 = vpop.f32.mrb[0].mxu0
      %v804 = vadd.f32 0.0, %v803
      %v805 = vpop.f32.mrb[0].mxu0
      %v806 = vpop.f32.mrb[0].mxu0
      %v807 = vpop.f32.mrb[0].mxu0
      %808 = vdwg.mxu0
      %v810 = vsel %vm670, %v329, 0
      %v813 = vsel %vm670, %v499, 0
      %815 = vmatprep.subr.bf16.mxu0 0
      %816 = vmatpush1.bf16.xpose.msra.mxu0 %v813
      %817 = vmatprep.subr.bf16.mxu0 0
      %818 = vmatpush1.bf16.xpose.msra.mxu0 0
      %819 = vmatprep.subr.bf16.mxu0 0
      %820 = vmatpush1.bf16.xpose.msra.mxu0 0
      %821 = vmatprep.subr.bf16.mxu0 0
      %822 = vmatpush1.bf16.xpose.msra.mxu0 0
      %823 = vmatprep.subr.bf16.mxu0 0
      %824 = vmatpush1.bf16.xpose.msra.mxu0 0
      %825 = vmatprep.subr.bf16.mxu0 0
      %826 = vmatpush1.bf16.xpose.msra.mxu0 0
      %827 = vmatprep.subr.bf16.mxu0 0
      %828 = vmatpush1.bf16.xpose.msra.mxu0 0
      %829 = vmatprep.subr.bf16.mxu0 0
      %830 = vmatpush1.bf16.xpose.msra.mxu0 0
      %831 = vmatprep.subr.bf16.mxu0 0
      %832 = vmatpush1.bf16.xpose.msra.mxu0 0
      %833 = vmatprep.subr.bf16.mxu0 0
      %834 = vmatpush1.bf16.xpose.msra.mxu0 0
      %835 = vmatprep.subr.bf16.mxu0 0
      %836 = vmatpush1.bf16.xpose.msra.mxu0 0
      %837 = vmatprep.subr.bf16.mxu0 0
      %838 = vmatpush1.bf16.xpose.msra.mxu0 0
      %839 = vmatprep.subr.bf16.mxu0 0
      %840 = vmatpush1.bf16.xpose.msra.mxu0 0
      %841 = vmatprep.subr.bf16.mxu0 0
      %842 = vmatpush1.bf16.xpose.msra.mxu0 0
      %843 = vmatprep.subr.bf16.mxu0 0
      %844 = vmatpush1.bf16.xpose.msra.mxu0 0
      %845 = vmatprep.subr.bf16.mxu0 0
      %846 = vmatpush1.bf16.xpose.msra.mxu0 0
      %847 = vmatprep.mubr.bf16.mxu0 0
      %848 = vmatmul.mubr.bf16.gmra.mrb[0].mxu0 %v810
      %v849 = vpop.f32.mrb[0].mxu0
      %v850 = vadd.f32 0.0, %v849
      %v851 = vpop.f32.mrb[0].mxu0
      %v852 = vpop.f32.mrb[0].mxu0
      %v853 = vpop.f32.mrb[0].mxu0
      %854 = vdwg.mxu0
      %v855 = vsel %vm670, %v712, -inf
      %856 = vmax.xlane.f32.xlu0 %v855
      %v857 = vpop.xlane.xlu0 %856
      %v858 = vsel %vm670, %v758, -inf
      %859 = vmax.xlane.f32.xlu0 %v858
      %v860 = vpop.xlane.xlu0 %859
      %v861 = vsel %vm670, %v804, -inf
      %862 = vmax.xlane.f32.xlu0 %v861
      %v863 = vpop.xlane.xlu0 %862
      %v864 = vsel %vm670, %v850, -inf
      %865 = vmax.xlane.f32.xlu0 %v864
      %v866 = vpop.xlane.xlu0 %865
      %v867 = vsub.f32 %v712, %v857
      %v868 = vsub.f32 %v758, %v860
      %v869 = vsub.f32 %v804, %v863
      %v870 = vsub.f32 %v850, %v866
      %v871 = vmul.f32 %v867, 1.442695
      %v872 = vpow.pop %v871
      %v873 = vmul.f32 %v868, 1.442695
      %v874 = vpow.pop %v873
      %v875 = vmul.f32 %v869, 1.442695
      %v876 = vpow.pop %v875
      %v877 = vmul.f32 %v870, 1.442695
      %v878 = vpow.pop %v877
      %v879 = vsel %vm670, %v872, 0.0
      %880 = vadd.xlane.f32.xlu0 %v879
      %v881 = vpop.xlane.xlu0 %880
      %v882 = vsel %vm670, %v874, 0.0
      %883 = vadd.xlane.f32.xlu0 %v882
      %v884 = vpop.xlane.xlu0 %883
      %v885 = vsel %vm670, %v876, 0.0
      %886 = vadd.xlane.f32.xlu0 %v885
      %v887 = vpop.xlane.xlu0 %886
      %v888 = vsel %vm670, %v878, 0.0
      %889 = vadd.xlane.f32.xlu0 %v888
      %v890 = vpop.xlane.xlu0 %889
      %v891 = vpack.c.bf16 %v872, %v872
      %v892 = vpack.c.bf16 %v874, %v874
      %v893 = vpack.c.bf16 %v876, %v876
      %v894 = vpack.c.bf16 %v878, %v878
      %v896 = vsel %vm670, %v891, 0
      %vm898 = vcmask 1043456
      %v900 = vsel %vm898, %v660, 0
      %902 = vmatprep.subr.bf16.mxu0 0
      %903 = vmatpush1.bf16.msra.mxu0 %v900
      %904 = vmatprep.subr.bf16.mxu0 0
      %905 = vmatpush1.bf16.msra.mxu0 0
      %906 = vmatprep.subr.bf16.mxu0 0
      %907 = vmatpush1.bf16.msra.mxu0 0
      %908 = vmatprep.subr.bf16.mxu0 0
      %909 = vmatpush1.bf16.msra.mxu0 0
      %910 = vmatprep.subr.bf16.mxu0 0
      %911 = vmatpush1.bf16.msra.mxu0 0
      %912 = vmatprep.subr.bf16.mxu0 0
      %913 = vmatpush1.bf16.msra.mxu0 0
      %914 = vmatprep.subr.bf16.mxu0 0
      %915 = vmatpush1.bf16.msra.mxu0 0
      %916 = vmatprep.subr.bf16.mxu0 0
      %917 = vmatpush1.bf16.msra.mxu0 0
      %918 = vmatprep.subr.bf16.mxu0 0
      %919 = vmatpush1.bf16.msra.mxu0 0
      %920 = vmatprep.subr.bf16.mxu0 0
      %921 = vmatpush1.bf16.msra.mxu0 0
      %922 = vmatprep.subr.bf16.mxu0 0
      %923 = vmatpush1.bf16.msra.mxu0 0
      %924 = vmatprep.subr.bf16.mxu0 0
      %925 = vmatpush1.bf16.msra.mxu0 0
      %926 = vmatprep.subr.bf16.mxu0 0
      %927 = vmatpush1.bf16.msra.mxu0 0
      %928 = vmatprep.subr.bf16.mxu0 0
      %929 = vmatpush1.bf16.msra.mxu0 0
      %930 = vmatprep.subr.bf16.mxu0 0
      %931 = vmatpush1.bf16.msra.mxu0 0
      %932 = vmatprep.subr.bf16.mxu0 0
      %933 = vmatpush1.bf16.msra.mxu0 0
      %934 = vmatprep.mubr.bf16.mxu0 0
      %935 = vmatmul.mubr.bf16.gmra.mrb[0].mxu0 %v896
      %v936 = vpop.f32.mrb[0].mxu0
      %v937 = vadd.f32 0.0, %v936
      %v938 = vpop.f32.mrb[0].mxu0
      %v939 = vpop.f32.mrb[0].mxu0
      %v940 = vpop.f32.mrb[0].mxu0
      %941 = vdwg.mxu0
      %v943 = vsel %vm670, %v892, 0
      %v946 = vsel %vm898, %v663, 0
      %948 = vmatprep.subr.bf16.mxu0 0
      %949 = vmatpush1.bf16.msra.mxu0 %v946
      %950 = vmatprep.subr.bf16.mxu0 0
      %951 = vmatpush1.bf16.msra.mxu0 0
      %952 = vmatprep.subr.bf16.mxu0 0
      %953 = vmatpush1.bf16.msra.mxu0 0
      %954 = vmatprep.subr.bf16.mxu0 0
      %955 = vmatpush1.bf16.msra.mxu0 0
      %956 = vmatprep.subr.bf16.mxu0 0
      %957 = vmatpush1.bf16.msra.mxu0 0
      %958 = vmatprep.subr.bf16.mxu0 0
      %959 = vmatpush1.bf16.msra.mxu0 0
      %960 = vmatprep.subr.bf16.mxu0 0
      %961 = vmatpush1.bf16.msra.mxu0 0
      %962 = vmatprep.subr.bf16.mxu0 0
      %963 = vmatpush1.bf16.msra.mxu0 0
      %964 = vmatprep.subr.bf16.mxu0 0
      %965 = vmatpush1.bf16.msra.mxu0 0
      %966 = vmatprep.subr.bf16.mxu0 0
      %967 = vmatpush1.bf16.msra.mxu0 0
      %968 = vmatprep.subr.bf16.mxu0 0
      %969 = vmatpush1.bf16.msra.mxu0 0
      %970 = vmatprep.subr.bf16.mxu0 0
      %971 = vmatpush1.bf16.msra.mxu0 0
      %972 = vmatprep.subr.bf16.mxu0 0
      %973 = vmatpush1.bf16.msra.mxu0 0
      %974 = vmatprep.subr.bf16.mxu0 0
      %975 = vmatpush1.bf16.msra.mxu0 0
      %976 = vmatprep.subr.bf16.mxu0 0
      %977 = vmatpush1.bf16.msra.mxu0 0
      %978 = vmatprep.subr.bf16.mxu0 0
      %979 = vmatpush1.bf16.msra.mxu0 0
      %980 = vmatprep.mubr.bf16.mxu0 0
      %981 = vmatmul.mubr.bf16.gmra.mrb[0].mxu0 %v943
      %v982 = vpop.f32.mrb[0].mxu0
      %v983 = vadd.f32 0.0, %v982
      %v984 = vpop.f32.mrb[0].mxu0
      %v985 = vpop.f32.mrb[0].mxu0
      %v986 = vpop.f32.mrb[0].mxu0
      %987 = vdwg.mxu0
      %v989 = vsel %vm670, %v893, 0
      %v992 = vsel %vm898, %v666, 0
      %994 = vmatprep.subr.bf16.mxu0 0
      %995 = vmatpush1.bf16.msra.mxu0 %v992
      %996 = vmatprep.subr.bf16.mxu0 0
      %997 = vmatpush1.bf16.msra.mxu0 0
      %998 = vmatprep.subr.bf16.mxu0 0
      %999 = vmatpush1.bf16.msra.mxu0 0
      %1000 = vmatprep.subr.bf16.mxu0 0
      %1001 = vmatpush1.bf16.msra.mxu0 0
      %1002 = vmatprep.subr.bf16.mxu0 0
      %1003 = vmatpush1.bf16.msra.mxu0 0
      %1004 = vmatprep.subr.bf16.mxu0 0
      %1005 = vmatpush1.bf16.msra.mxu0 0
      %1006 = vmatprep.subr.bf16.mxu0 0
      %1007 = vmatpush1.bf16.msra.mxu0 0
      %1008 = vmatprep.subr.bf16.mxu0 0
      %1009 = vmatpush1.bf16.msra.mxu0 0
      %1010 = vmatprep.subr.bf16.mxu0 0
      %1011 = vmatpush1.bf16.msra.mxu0 0
      %1012 = vmatprep.subr.bf16.mxu0 0
      %1013 = vmatpush1.bf16.msra.mxu0 0
      %1014 = vmatprep.subr.bf16.mxu0 0
      %1015 = vmatpush1.bf16.msra.mxu0 0
      %1016 = vmatprep.subr.bf16.mxu0 0
      %1017 = vmatpush1.bf16.msra.mxu0 0
      %1018 = vmatprep.subr.bf16.mxu0 0
      %1019 = vmatpush1.bf16.msra.mxu0 0
      %1020 = vmatprep.subr.bf16.mxu0 0
      %1021 = vmatpush1.bf16.msra.mxu0 0
      %1022 = vmatprep.subr.bf16.mxu0 0
      %1023 = vmatpush1.bf16.msra.mxu0 0
      %1024 = vmatprep.subr.bf16.mxu0 0
      %1025 = vmatpush1.bf16.msra.mxu0 0
      %1026 = vmatprep.mubr.bf16.mxu0 0
      %1027 = vmatmul.mubr.bf16.gmra.mrb[0].mxu0 %v989
      %v1028 = vpop.f32.mrb[0].mxu0
      %v1029 = vadd.f32 0.0, %v1028
      %v1030 = vpop.f32.mrb[0].mxu0
      %v1031 = vpop.f32.mrb[0].mxu0
      %v1032 = vpop.f32.mrb[0].mxu0
      %1033 = vdwg.mxu0
      %v1035 = vsel %vm670, %v894, 0
      %v1038 = vsel %vm898, %v669, 0
      %1040 = vmatprep.subr.bf16.mxu0 0
      %1041 = vmatpush1.bf16.msra.mxu0 %v1038
      %1042 = vmatprep.subr.bf16.mxu0 0
      %1043 = vmatpush1.bf16.msra.mxu0 0
      %1044 = vmatprep.subr.bf16.mxu0 0
      %1045 = vmatpush1.bf16.msra.mxu0 0
      %1046 = vmatprep.subr.bf16.mxu0 0
      %1047 = vmatpush1.bf16.msra.mxu0 0
      %1048 = vmatprep.subr.bf16.mxu0 0
      %1049 = vmatpush1.bf16.msra.mxu0 0
      %1050 = vmatprep.subr.bf16.mxu0 0
      %1051 = vmatpush1.bf16.msra.mxu0 0
      %1052 = vmatprep.subr.bf16.mxu0 0
      %1053 = vmatpush1.bf16.msra.mxu0 0
      %1054 = vmatprep.subr.bf16.mxu0 0
      %1055 = vmatpush1.bf16.msra.mxu0 0
      %1056 = vmatprep.subr.bf16.mxu0 0
      %1057 = vmatpush1.bf16.msra.mxu0 0
      %1058 = vmatprep.subr.bf16.mxu0 0
      %1059 = vmatpush1.bf16.msra.mxu0 0
      %1060 = vmatprep.subr.bf16.mxu0 0
      %1061 = vmatpush1.bf16.msra.mxu0 0
      %1062 = vmatprep.subr.bf16.mxu0 0
      %1063 = vmatpush1.bf16.msra.mxu0 0
      %1064 = vmatprep.subr.bf16.mxu0 0
      %1065 = vmatpush1.bf16.msra.mxu0 0
      %1066 = vmatprep.subr.bf16.mxu0 0
      %1067 = vmatpush1.bf16.msra.mxu0 0
      %1068 = vmatprep.subr.bf16.mxu0 0
      %1069 = vmatpush1.bf16.msra.mxu0 0
      %1070 = vmatprep.subr.bf16.mxu0 0
      %1071 = vmatpush1.bf16.msra.mxu0 0
      %1072 = vmatprep.mubr.bf16.mxu0 0
      %1073 = vmatmul.mubr.bf16.gmra.mrb[0].mxu0 %v1035
      %v1074 = vpop.f32.mrb[0].mxu0
      %v1075 = vadd.f32 0.0, %v1074
      %v1076 = vpop.f32.mrb[0].mxu0
      %v1077 = vpop.f32.mrb[0].mxu0
      %v1078 = vpop.f32.mrb[0].mxu0
      %1079 = vdwg.mxu0
      %v1080 = vrcp.pop %v881
      %v1081 = vrcp.pop %v884
      %v1082 = vrcp.pop %v887
      %v1083 = vrcp.pop %v890
      %v1084 = vmul.f32 %v937, %v1080
      %v1085 = vmul.f32 %v983, %v1081
      %v1086 = vmul.f32 %v1029, %v1082
      %v1087 = vmul.f32 %v1075, %v1083
      %v1088 = vcombine.low %v1084, %v1086
      %v1089 = vcombine.high %v1084, %v1086
      %v1091 = vunpack.c.l.s4 1983009808
      %v1092 = vunpack.c.0.s8 %v1091
      %v1093 = vlaneseq
      %v1094 = vshrl.u32 %v1093, 7
      %v1095 = vsub.s32 %v1092, %v1094
      %v1096 = vrot.slane %v1088, %v1095
      %v1098 = vunpack.c.l.s4 1983009808
      %v1099 = vunpack.c.0.s8 %v1098
      %v1100 = vlaneseq
      %v1101 = vshrl.u32 %v1100, 7
      %v1102 = vsub.s32 %v1099, %v1101
      %v1103 = vrot.slane %v1089, %v1102
      %v1104 = vcombine.low %v1085, %v1087
      %v1105 = vcombine.high %v1085, %v1087
      %v1107 = vunpack.c.l.s4 1983009808
      %v1108 = vunpack.c.0.s8 %v1107
      %v1109 = vlaneseq
      %v1110 = vshrl.u32 %v1109, 7
      %v1111 = vsub.s32 %v1108, %v1110
      %v1112 = vrot.slane %v1104, %v1111
      %v1114 = vunpack.c.l.s4 1983009808
      %v1115 = vunpack.c.0.s8 %v1114
      %v1116 = vlaneseq
      %v1117 = vshrl.u32 %v1116, 7
      %v1118 = vsub.s32 %v1115, %v1117
      %v1119 = vrot.slane %v1105, %v1118
      %v1120 = vcombine.low %v1096, %v1112
      %v1121 = vcombine.high %v1096, %v1112
      %v1123 = vunpack.c.l.s4 1934713408
      %v1124 = vunpack.c.0.s8 %v1123
      %v1125 = vlaneseq
      %v1126 = vshrl.u32 %v1125, 7
      %v1127 = vsub.s32 %v1124, %v1126
      %v1128 = vrot.slane %v1120, %v1127
      %v1130 = vunpack.c.l.s4 1934713408
      %v1131 = vunpack.c.0.s8 %v1130
      %v1132 = vlaneseq
      %v1133 = vshrl.u32 %v1132, 7
      %v1134 = vsub.s32 %v1131, %v1133
      %v1135 = vrot.slane %v1121, %v1134
      %v1136 = vcombine.low %v1103, %v1119
      %v1137 = vcombine.high %v1103, %v1119
      %v1139 = vunpack.c.l.s4 1934713408
      %v1140 = vunpack.c.0.s8 %v1139
      %v1141 = vlaneseq
      %v1142 = vshrl.u32 %v1141, 7
      %v1143 = vsub.s32 %v1140, %v1142
      %v1144 = vrot.slane %v1136, %v1143
      %v1146 = vunpack.c.l.s4 1934713408
      %v1147 = vunpack.c.0.s8 %v1146
      %v1148 = vlaneseq
      %v1149 = vshrl.u32 %v1148, 7
      %v1150 = vsub.s32 %v1147, %v1149
      %v1151 = vrot.slane %v1137, %v1150
      %v1152 = vcombine.high %v1128, 0.0
      %v1153 = vcombine.high %v1135, 0.0
      %v1154 = vcombine.high %v1144, 0.0
      %v1155 = vcombine.high %v1151, 0.0
      %v1156 = vcombine.low %v1128, %v1135
      %v1158 = vunpack.c.l.s4 1983009808
      %v1159 = vunpack.c.0.s8 %v1158
      %v1160 = vlaneseq
      %v1161 = vshrl.u32 %v1160, 7
      %v1162 = vsub.s32 %v1159, %v1161
      %v1163 = vrot.slane %v1156, %v1162
      %v1164 = vcombine.low %v1152, %v1153
      %v1166 = vunpack.c.l.s4 1983009808
      %v1167 = vunpack.c.0.s8 %v1166
      %v1168 = vlaneseq
      %v1169 = vshrl.u32 %v1168, 7
      %v1170 = vsub.s32 %v1167, %v1169
      %v1171 = vrot.slane %v1164, %v1170
      %v1172 = vcombine.low %v1144, %v1151
      %v1174 = vunpack.c.l.s4 1983009808
      %v1175 = vunpack.c.0.s8 %v1174
      %v1176 = vlaneseq
      %v1177 = vshrl.u32 %v1176, 7
      %v1178 = vsub.s32 %v1175, %v1177
      %v1179 = vrot.slane %v1172, %v1178
      %v1180 = vcombine.low %v1154, %v1155
      %v1182 = vunpack.c.l.s4 1983009808
      %v1183 = vunpack.c.0.s8 %v1182
      %v1184 = vlaneseq
      %v1185 = vshrl.u32 %v1184, 7
      %v1186 = vsub.s32 %v1183, %v1185
      %v1187 = vrot.slane %v1180, %v1186
      %v1188 = vcombine.low %v1163, %v1171
      %v1189 = vcombine.high %v1163, %v1171
      %v1191 = vunpack.c.l.s4 1934713408
      %v1192 = vunpack.c.0.s8 %v1191
      %v1193 = vlaneseq
      %v1194 = vshrl.u32 %v1193, 7
      %v1195 = vsub.s32 %v1192, %v1194
      %v1196 = vrot.slane %v1188, %v1195
      %v1198 = vunpack.c.l.s4 1934713408
      %v1199 = vunpack.c.0.s8 %v1198
      %v1200 = vlaneseq
      %v1201 = vshrl.u32 %v1200, 7
      %v1202 = vsub.s32 %v1199, %v1201
      %v1203 = vrot.slane %v1189, %v1202
      %v1204 = vcombine.low %v1179, %v1187
      %v1205 = vcombine.high %v1179, %v1187
      %v1207 = vunpack.c.l.s4 1934713408
      %v1208 = vunpack.c.0.s8 %v1207
      %v1209 = vlaneseq
      %v1210 = vshrl.u32 %v1209, 7
      %v1211 = vsub.s32 %v1208, %v1210
      %v1212 = vrot.slane %v1204, %v1211
      %v1214 = vunpack.c.l.s4 1934713408
      %v1215 = vunpack.c.0.s8 %v1214
      %v1216 = vlaneseq
      %v1217 = vshrl.u32 %v1216, 7
      %v1218 = vsub.s32 %v1215, %v1217
      %v1219 = vrot.slane %v1205, %v1218
      %v1220 = vcombine.low %v1196, %v1212
      %v1221 = vcombine.high %v1196, %v1212
      %v1222 = vcombine.low %v1203, %v1219
      %v1223 = vcombine.high %v1203, %v1219
      %1225 = vrot.lane.b32.xlu0 %v1221, 8
      %v1226 = vpop.permute.xlu0 %1225
      %1229 = vrot.lane.b32.xlu0 %v1222, 16
      %v1230 = vpop.permute.xlu0 %1229
      %1233 = vrot.lane.b32.xlu0 %v1223, 24
      %v1234 = vpop.permute.xlu0 %1233
      %v1236 = vsel %vm670, %v1220, %v1226
      %vm1237 = vcmask 130048
      %v1238 = vsel %vm1237, %v1236, %v1230
      %vm1239 = vcmask 195584
      %v1240 = vsel %vm1239, %v1238, %v1234
      %v1241 = vrot.slane %v161, 4
      %v1242 = vrot.slane %v164, 4
      %v1243 = vrot.slane %v166, 4
      %v1244 = vrot.slane %v168, 4
      %v1247 = vunpack.c.l.s4 1983009808
      %v1248 = vunpack.c.0.s8 %v1247
      %v1249 = vlaneseq
      %v1250 = vshrl.u32 %v1249, 7
      %v1251 = vsub.s32 %v1248, %v1250
      %v1252 = vrot.slane %v1241, %v1251
      %v1255 = vunpack.c.l.s4 1983009808
      %v1256 = vunpack.c.0.s8 %v1255
      %v1257 = vlaneseq
      %v1258 = vshrl.u32 %v1257, 7
      %v1259 = vsub.s32 %v1256, %v1258
      %v1260 = vrot.slane %v1243, %v1259
      %v1261 = vcombine.low %v1252, %v1260
      %v1262 = vcombine.high %v1252, %v1260
      %v1264 = vunpack.c.l.s4 1934713408
      %v1265 = vunpack.c.0.s8 %v1264
      %v1266 = vlaneseq
      %v1267 = vshrl.u32 %v1266, 7
      %v1268 = vsub.s32 %v1265, %v1267
      %v1269 = vrot.slane %v1261, %v1268
      %v1271 = vunpack.c.l.s4 1934713408
      %v1272 = vunpack.c.0.s8 %v1271
      %v1273 = vlaneseq
      %v1274 = vshrl.u32 %v1273, 7
      %v1275 = vsub.s32 %v1272, %v1274
      %v1276 = vrot.slane %v1262, %v1275
      %v1277 = vcombine.high %v1269, 0
      %v1278 = vcombine.high %v1276, 0
      %v1281 = vunpack.c.l.s4 1983009808
      %v1282 = vunpack.c.0.s8 %v1281
      %v1283 = vlaneseq
      %v1284 = vshrl.u32 %v1283, 7
      %v1285 = vsub.s32 %v1282, %v1284
      %v1286 = vrot.slane %v1242, %v1285
      %v1289 = vunpack.c.l.s4 1983009808
      %v1290 = vunpack.c.0.s8 %v1289
      %v1291 = vlaneseq
      %v1292 = vshrl.u32 %v1291, 7
      %v1293 = vsub.s32 %v1290, %v1292
      %v1294 = vrot.slane %v1244, %v1293
      %v1295 = vcombine.low %v1286, %v1294
      %v1296 = vcombine.high %v1286, %v1294
      %v1298 = vunpack.c.l.s4 1934713408
      %v1299 = vunpack.c.0.s8 %v1298
      %v1300 = vlaneseq
      %v1301 = vshrl.u32 %v1300, 7
      %v1302 = vsub.s32 %v1299, %v1301
      %v1303 = vrot.slane %v1295, %v1302
      %v1305 = vunpack.c.l.s4 1934713408
      %v1306 = vunpack.c.0.s8 %v1305
      %v1307 = vlaneseq
      %v1308 = vshrl.u32 %v1307, 7
      %v1309 = vsub.s32 %v1306, %v1308
      %v1310 = vrot.slane %v1296, %v1309
      %v1311 = vcombine.high %v1303, 0
      %v1312 = vcombine.high %v1310, 0
      %v1315 = vpack.i.b16 %v1303, %v1269
      %v1317 = vshrl.u32 %v1269, 16
      %v1318 = vshrl.u32 %v1303, 16
      %v1319 = vpack.i.b16 %v1318, %v1317
      %v1323 = vpack.i.b16 %v1311, %v1277
      %v1325 = vshrl.u32 %v1277, 16
      %v1326 = vshrl.u32 %v1311, 16
      %v1327 = vpack.i.b16 %v1326, %v1325
      %v1331 = vpack.i.b16 %v1310, %v1276
      %v1333 = vshrl.u32 %v1276, 16
      %v1334 = vshrl.u32 %v1310, 16
      %v1335 = vpack.i.b16 %v1334, %v1333
      %v1339 = vpack.i.b16 %v1312, %v1278
      %v1341 = vshrl.u32 %v1278, 16
      %v1342 = vshrl.u32 %v1312, 16
      %v1343 = vpack.i.b16 %v1342, %v1341
      %v1345 = vcombine.low %v1315, %v1331
      %v1347 = vunpack.c.l.s4 1983009808
      %v1348 = vunpack.c.0.s8 %v1347
      %v1349 = vlaneseq
      %v1350 = vshrl.u32 %v1349, 7
      %v1351 = vsub.s32 %v1348, %v1350
      %v1352 = vrot.slane %v1345, %v1351
      %v1353 = vcombine.low %v1323, %v1339
      %v1355 = vunpack.c.l.s4 1983009808
      %v1356 = vunpack.c.0.s8 %v1355
      %v1357 = vlaneseq
      %v1358 = vshrl.u32 %v1357, 7
      %v1359 = vsub.s32 %v1356, %v1358
      %v1360 = vrot.slane %v1353, %v1359
      %v1361 = vcombine.low %v1352, %v1360
      %v1363 = vunpack.c.l.s4 1934713408
      %v1364 = vunpack.c.0.s8 %v1363
      %v1365 = vlaneseq
      %v1366 = vshrl.u32 %v1365, 7
      %v1367 = vsub.s32 %v1364, %v1366
      %v1368 = vrot.slane %v1361, %v1367
      %v1369 = vcombine.high %v1368, 0
      %v1370 = vcombine.low %v1319, %v1335
      %v1372 = vunpack.c.l.s4 1983009808
      %v1373 = vunpack.c.0.s8 %v1372
      %v1374 = vlaneseq
      %v1375 = vshrl.u32 %v1374, 7
      %v1376 = vsub.s32 %v1373, %v1375
      %v1377 = vrot.slane %v1370, %v1376
      %v1378 = vcombine.low %v1327, %v1343
      %v1380 = vunpack.c.l.s4 1983009808
      %v1381 = vunpack.c.0.s8 %v1380
      %v1382 = vlaneseq
      %v1383 = vshrl.u32 %v1382, 7
      %v1384 = vsub.s32 %v1381, %v1383
      %v1385 = vrot.slane %v1378, %v1384
      %v1386 = vcombine.low %v1377, %v1385
      %v1388 = vunpack.c.l.s4 1934713408
      %v1389 = vunpack.c.0.s8 %v1388
      %v1390 = vlaneseq
      %v1391 = vshrl.u32 %v1390, 7
      %v1392 = vsub.s32 %v1389, %v1391
      %v1393 = vrot.slane %v1386, %v1392
      %v1394 = vcombine.high %v1393, 0
      %v1397 = vpack.i.b16 %v1393, %v1368
      %v1398 = vshrl.u32 %v1368, 16
      %v1399 = vshrl.u32 %v1393, 16
      %v1400 = vpack.i.b16 %v1399, %v1398
      %v1403 = vpack.i.b16 %v1394, %v1369
      %v1404 = vshrl.u32 %v1369, 16
      %v1405 = vshrl.u32 %v1394, 16
      %v1406 = vpack.i.b16 %v1405, %v1404
      %1407 = vrot.lane.b32.xlu0 %v1241, 96
      %v1408 = vpop.permute.xlu0 %1407
      %1409 = vrot.lane.b32.xlu0 %v1242, 96
      %v1410 = vpop.permute.xlu0 %1409
      %1411 = vrot.lane.b32.xlu0 %v1243, 96
      %v1412 = vpop.permute.xlu0 %1411
      %1413 = vrot.lane.b32.xlu0 %v1244, 96
      %v1414 = vpop.permute.xlu0 %1413
      %v1417 = vunpack.c.l.s4 1983009808
      %v1418 = vunpack.c.0.s8 %v1417
      %v1419 = vlaneseq
      %v1420 = vshrl.u32 %v1419, 7
      %v1421 = vsub.s32 %v1418, %v1420
      %v1422 = vrot.slane %v1408, %v1421
      %v1425 = vunpack.c.l.s4 1983009808
      %v1426 = vunpack.c.0.s8 %v1425
      %v1427 = vlaneseq
      %v1428 = vshrl.u32 %v1427, 7
      %v1429 = vsub.s32 %v1426, %v1428
      %v1430 = vrot.slane %v1412, %v1429
      %v1431 = vcombine.low %v1422, %v1430
      %v1432 = vcombine.high %v1422, %v1430
      %v1434 = vunpack.c.l.s4 1934713408
      %v1435 = vunpack.c.0.s8 %v1434
      %v1436 = vlaneseq
      %v1437 = vshrl.u32 %v1436, 7
      %v1438 = vsub.s32 %v1435, %v1437
      %v1439 = vrot.slane %v1431, %v1438
      %v1441 = vunpack.c.l.s4 1934713408
      %v1442 = vunpack.c.0.s8 %v1441
      %v1443 = vlaneseq
      %v1444 = vshrl.u32 %v1443, 7
      %v1445 = vsub.s32 %v1442, %v1444
      %v1446 = vrot.slane %v1432, %v1445
      %v1447 = vcombine.high %v1439, 0
      %v1448 = vcombine.high %v1446, 0
      %v1451 = vunpack.c.l.s4 1983009808
      %v1452 = vunpack.c.0.s8 %v1451
      %v1453 = vlaneseq
      %v1454 = vshrl.u32 %v1453, 7
      %v1455 = vsub.s32 %v1452, %v1454
      %v1456 = vrot.slane %v1410, %v1455
      %v1459 = vunpack.c.l.s4 1983009808
      %v1460 = vunpack.c.0.s8 %v1459
      %v1461 = vlaneseq
      %v1462 = vshrl.u32 %v1461, 7
      %v1463 = vsub.s32 %v1460, %v1462
      %v1464 = vrot.slane %v1414, %v1463
      %v1465 = vcombine.low %v1456, %v1464
      %v1466 = vcombine.high %v1456, %v1464
      %v1468 = vunpack.c.l.s4 1934713408
      %v1469 = vunpack.c.0.s8 %v1468
      %v1470 = vlaneseq
      %v1471 = vshrl.u32 %v1470, 7
      %v1472 = vsub.s32 %v1469, %v1471
      %v1473 = vrot.slane %v1465, %v1472
      %v1475 = vunpack.c.l.s4 1934713408
      %v1476 = vunpack.c.0.s8 %v1475
      %v1477 = vlaneseq
      %v1478 = vshrl.u32 %v1477, 7
      %v1479 = vsub.s32 %v1476, %v1478
      %v1480 = vrot.slane %v1466, %v1479
      %v1481 = vcombine.high %v1473, 0
      %v1482 = vcombine.high %v1480, 0
      %v1485 = vpack.i.b16 %v1473, %v1439
      %v1487 = vshrl.u32 %v1439, 16
      %v1488 = vshrl.u32 %v1473, 16
      %v1489 = vpack.i.b16 %v1488, %v1487
      %v1493 = vpack.i.b16 %v1481, %v1447
      %v1495 = vshrl.u32 %v1447, 16
      %v1496 = vshrl.u32 %v1481, 16
      %v1497 = vpack.i.b16 %v1496, %v1495
      %v1501 = vpack.i.b16 %v1480, %v1446
      %v1503 = vshrl.u32 %v1446, 16
      %v1504 = vshrl.u32 %v1480, 16
      %v1505 = vpack.i.b16 %v1504, %v1503
      %v1509 = vpack.i.b16 %v1482, %v1448
      %v1511 = vshrl.u32 %v1448, 16
      %v1512 = vshrl.u32 %v1482, 16
      %v1513 = vpack.i.b16 %v1512, %v1511
      %v1515 = vcombine.low %v1485, %v1501
      %v1517 = vunpack.c.l.s4 1983009808
      %v1518 = vunpack.c.0.s8 %v1517
      %v1519 = vlaneseq
      %v1520 = vshrl.u32 %v1519, 7
      %v1521 = vsub.s32 %v1518, %v1520
      %v1522 = vrot.slane %v1515, %v1521
      %v1523 = vcombine.low %v1493, %v1509
      %v1525 = vunpack.c.l.s4 1983009808
      %v1526 = vunpack.c.0.s8 %v1525
      %v1527 = vlaneseq
      %v1528 = vshrl.u32 %v1527, 7
      %v1529 = vsub.s32 %v1526, %v1528
      %v1530 = vrot.slane %v1523, %v1529
      %v1531 = vcombine.low %v1522, %v1530
      %v1533 = vunpack.c.l.s4 1934713408
      %v1534 = vunpack.c.0.s8 %v1533
      %v1535 = vlaneseq
      %v1536 = vshrl.u32 %v1535, 7
      %v1537 = vsub.s32 %v1534, %v1536
      %v1538 = vrot.slane %v1531, %v1537
      %v1539 = vcombine.high %v1538, 0
      %v1540 = vcombine.low %v1489, %v1505
      %v1542 = vunpack.c.l.s4 1983009808
      %v1543 = vunpack.c.0.s8 %v1542
      %v1544 = vlaneseq
      %v1545 = vshrl.u32 %v1544, 7
      %v1546 = vsub.s32 %v1543, %v1545
      %v1547 = vrot.slane %v1540, %v1546
      %v1548 = vcombine.low %v1497, %v1513
      %v1550 = vunpack.c.l.s4 1983009808
      %v1551 = vunpack.c.0.s8 %v1550
      %v1552 = vlaneseq
      %v1553 = vshrl.u32 %v1552, 7
      %v1554 = vsub.s32 %v1551, %v1553
      %v1555 = vrot.slane %v1548, %v1554
      %v1556 = vcombine.low %v1547, %v1555
      %v1558 = vunpack.c.l.s4 1934713408
      %v1559 = vunpack.c.0.s8 %v1558
      %v1560 = vlaneseq
      %v1561 = vshrl.u32 %v1560, 7
      %v1562 = vsub.s32 %v1559, %v1561
      %v1563 = vrot.slane %v1556, %v1562
      %v1564 = vcombine.high %v1563, 0
      %v1567 = vpack.i.b16 %v1563, %v1538
      %v1568 = vshrl.u32 %v1538, 16
      %v1569 = vshrl.u32 %v1563, 16
      %v1570 = vpack.i.b16 %v1569, %v1568
      %v1573 = vpack.i.b16 %v1564, %v1539
      %v1574 = vshrl.u32 %v1539, 16
      %v1575 = vshrl.u32 %v1564, 16
      %v1576 = vpack.i.b16 %v1575, %v1574
      %1577 = vrot.lane.b32.xlu0 %v1241, 64
      %v1578 = vpop.permute.xlu0 %1577
      %1579 = vrot.lane.b32.xlu0 %v1242, 64
      %v1580 = vpop.permute.xlu0 %1579
      %1581 = vrot.lane.b32.xlu0 %v1243, 64
      %v1582 = vpop.permute.xlu0 %1581
      %1583 = vrot.lane.b32.xlu0 %v1244, 64
      %v1584 = vpop.permute.xlu0 %1583
      %v1587 = vunpack.c.l.s4 1983009808
      %v1588 = vunpack.c.0.s8 %v1587
      %v1589 = vlaneseq
      %v1590 = vshrl.u32 %v1589, 7
      %v1591 = vsub.s32 %v1588, %v1590
      %v1592 = vrot.slane %v1578, %v1591
      %v1595 = vunpack.c.l.s4 1983009808
      %v1596 = vunpack.c.0.s8 %v1595
      %v1597 = vlaneseq
      %v1598 = vshrl.u32 %v1597, 7
      %v1599 = vsub.s32 %v1596, %v1598
      %v1600 = vrot.slane %v1582, %v1599
      %v1601 = vcombine.low %v1592, %v1600
      %v1602 = vcombine.high %v1592, %v1600
      %v1604 = vunpack.c.l.s4 1934713408
      %v1605 = vunpack.c.0.s8 %v1604
      %v1606 = vlaneseq
      %v1607 = vshrl.u32 %v1606, 7
      %v1608 = vsub.s32 %v1605, %v1607
      %v1609 = vrot.slane %v1601, %v1608
      %v1611 = vunpack.c.l.s4 1934713408
      %v1612 = vunpack.c.0.s8 %v1611
      %v1613 = vlaneseq
      %v1614 = vshrl.u32 %v1613, 7
      %v1615 = vsub.s32 %v1612, %v1614
      %v1616 = vrot.slane %v1602, %v1615
      %v1617 = vcombine.high %v1609, 0
      %v1618 = vcombine.high %v1616, 0
      %v1621 = vunpack.c.l.s4 1983009808
      %v1622 = vunpack.c.0.s8 %v1621
      %v1623 = vlaneseq
      %v1624 = vshrl.u32 %v1623, 7
      %v1625 = vsub.s32 %v1622, %v1624
      %v1626 = vrot.slane %v1580, %v1625
      %v1629 = vunpack.c.l.s4 1983009808
      %v1630 = vunpack.c.0.s8 %v1629
      %v1631 = vlaneseq
      %v1632 = vshrl.u32 %v1631, 7
      %v1633 = vsub.s32 %v1630, %v1632
      %v1634 = vrot.slane %v1584, %v1633
      %v1635 = vcombine.low %v1626, %v1634
      %v1636 = vcombine.high %v1626, %v1634
      %v1638 = vunpack.c.l.s4 1934713408
      %v1639 = vunpack.c.0.s8 %v1638
      %v1640 = vlaneseq
      %v1641 = vshrl.u32 %v1640, 7
      %v1642 = vsub.s32 %v1639, %v1641
      %v1643 = vrot.slane %v1635, %v1642
      %v1645 = vunpack.c.l.s4 1934713408
      %v1646 = vunpack.c.0.s8 %v1645
      %v1647 = vlaneseq
      %v1648 = vshrl.u32 %v1647, 7
      %v1649 = vsub.s32 %v1646, %v1648
      %v1650 = vrot.slane %v1636, %v1649
      %v1651 = vcombine.high %v1643, 0
      %v1652 = vcombine.high %v1650, 0
      %v1655 = vpack.i.b16 %v1643, %v1609
      %v1657 = vshrl.u32 %v1609, 16
      %v1658 = vshrl.u32 %v1643, 16
      %v1659 = vpack.i.b16 %v1658, %v1657
      %v1663 = vpack.i.b16 %v1651, %v1617
      %v1665 = vshrl.u32 %v1617, 16
      %v1666 = vshrl.u32 %v1651, 16
      %v1667 = vpack.i.b16 %v1666, %v1665
      %v1671 = vpack.i.b16 %v1650, %v1616
      %v1673 = vshrl.u32 %v1616, 16
      %v1674 = vshrl.u32 %v1650, 16
      %v1675 = vpack.i.b16 %v1674, %v1673
      %v1679 = vpack.i.b16 %v1652, %v1618
      %v1681 = vshrl.u32 %v1618, 16
      %v1682 = vshrl.u32 %v1652, 16
      %v1683 = vpack.i.b16 %v1682, %v1681
      %v1685 = vcombine.low %v1655, %v1671
      %v1687 = vunpack.c.l.s4 1983009808
      %v1688 = vunpack.c.0.s8 %v1687
      %v1689 = vlaneseq
      %v1690 = vshrl.u32 %v1689, 7
      %v1691 = vsub.s32 %v1688, %v1690
      %v1692 = vrot.slane %v1685, %v1691
      %v1693 = vcombine.low %v1663, %v1679
      %v1695 = vunpack.c.l.s4 1983009808
      %v1696 = vunpack.c.0.s8 %v1695
      %v1697 = vlaneseq
      %v1698 = vshrl.u32 %v1697, 7
      %v1699 = vsub.s32 %v1696, %v1698
      %v1700 = vrot.slane %v1693, %v1699
      %v1701 = vcombine.low %v1692, %v1700
      %v1703 = vunpack.c.l.s4 1934713408
      %v1704 = vunpack.c.0.s8 %v1703
      %v1705 = vlaneseq
      %v1706 = vshrl.u32 %v1705, 7
      %v1707 = vsub.s32 %v1704, %v1706
      %v1708 = vrot.slane %v1701, %v1707
      %v1709 = vcombine.high %v1708, 0
      %v1710 = vcombine.low %v1659, %v1675
      %v1712 = vunpack.c.l.s4 1983009808
      %v1713 = vunpack.c.0.s8 %v1712
      %v1714 = vlaneseq
      %v1715 = vshrl.u32 %v1714, 7
      %v1716 = vsub.s32 %v1713, %v1715
      %v1717 = vrot.slane %v1710, %v1716
      %v1718 = vcombine.low %v1667, %v1683
      %v1720 = vunpack.c.l.s4 1983009808
      %v1721 = vunpack.c.0.s8 %v1720
      %v1722 = vlaneseq
      %v1723 = vshrl.u32 %v1722, 7
      %v1724 = vsub.s32 %v1721, %v1723
      %v1725 = vrot.slane %v1718, %v1724
      %v1726 = vcombine.low %v1717, %v1725
      %v1728 = vunpack.c.l.s4 1934713408
      %v1729 = vunpack.c.0.s8 %v1728
      %v1730 = vlaneseq
      %v1731 = vshrl.u32 %v1730, 7
      %v1732 = vsub.s32 %v1729, %v1731
      %v1733 = vrot.slane %v1726, %v1732
      %v1734 = vcombine.high %v1733, 0
      %v1737 = vpack.i.b16 %v1733, %v1708
      %v1738 = vshrl.u32 %v1708, 16
      %v1739 = vshrl.u32 %v1733, 16
      %v1740 = vpack.i.b16 %v1739, %v1738
      %v1743 = vpack.i.b16 %v1734, %v1709
      %v1744 = vshrl.u32 %v1709, 16
      %v1745 = vshrl.u32 %v1734, 16
      %v1746 = vpack.i.b16 %v1745, %v1744
      %v1748 = vsel %vm670, %v1397, 0
      %v1751 = vsel %vm670, %v1567, 0
      %1753 = vmatprep.subr.bf16.mxu0 0
      %1754 = vmatpush1.bf16.xpose.msra.mxu0 %v1751
      %1755 = vmatprep.subr.bf16.mxu0 0
      %1756 = vmatpush1.bf16.xpose.msra.mxu0 0
      %1757 = vmatprep.subr.bf16.mxu0 0
      %1758 = vmatpush1.bf16.xpose.msra.mxu0 0
      %1759 = vmatprep.subr.bf16.mxu0 0
      %1760 = vmatpush1.bf16.xpose.msra.mxu0 0
      %1761 = vmatprep.subr.bf16.mxu0 0
      %1762 = vmatpush1.bf16.xpose.msra.mxu0 0
      %1763 = vmatprep.subr.bf16.mxu0 0
      %1764 = vmatpush1.bf16.xpose.msra.mxu0 0
      %1765 = vmatprep.subr.bf16.mxu0 0
      %1766 = vmatpush1.bf16.xpose.msra.mxu0 0
      %1767 = vmatprep.subr.bf16.mxu0 0
      %1768 = vmatpush1.bf16.xpose.msra.mxu0 0
      %1769 = vmatprep.subr.bf16.mxu0 0
      %1770 = vmatpush1.bf16.xpose.msra.mxu0 0
      %1771 = vmatprep.subr.bf16.mxu0 0
      %1772 = vmatpush1.bf16.xpose.msra.mxu0 0
      %1773 = vmatprep.subr.bf16.mxu0 0
      %1774 = vmatpush1.bf16.xpose.msra.mxu0 0
      %1775 = vmatprep.subr.bf16.mxu0 0
      %1776 = vmatpush1.bf16.xpose.msra.mxu0 0
      %1777 = vmatprep.subr.bf16.mxu0 0
      %1778 = vmatpush1.bf16.xpose.msra.mxu0 0
      %1779 = vmatprep.subr.bf16.mxu0 0
      %1780 = vmatpush1.bf16.xpose.msra.mxu0 0
      %1781 = vmatprep.subr.bf16.mxu0 0
      %1782 = vmatpush1.bf16.xpose.msra.mxu0 0
      %1783 = vmatprep.subr.bf16.mxu0 0
      %1784 = vmatpush1.bf16.xpose.msra.mxu0 0
      %1785 = vmatprep.mubr.bf16.mxu0 0
      %1786 = vmatmul.mubr.bf16.gmra.mrb[0].mxu0 %v1748
      %v1787 = vpop.f32.mrb[0].mxu0
      %v1788 = vadd.f32 0.0, %v1787
      %v1789 = vpop.f32.mrb[0].mxu0
      %v1790 = vpop.f32.mrb[0].mxu0
      %v1791 = vpop.f32.mrb[0].mxu0
      %1792 = vdwg.mxu0
      %v1794 = vsel %vm670, %v1400, 0
      %v1797 = vsel %vm670, %v1570, 0
      %1799 = vmatprep.subr.bf16.mxu0 0
      %1800 = vmatpush1.bf16.xpose.msra.mxu0 %v1797
      %1801 = vmatprep.subr.bf16.mxu0 0
      %1802 = vmatpush1.bf16.xpose.msra.mxu0 0
      %1803 = vmatprep.subr.bf16.mxu0 0
      %1804 = vmatpush1.bf16.xpose.msra.mxu0 0
      %1805 = vmatprep.subr.bf16.mxu0 0
      %1806 = vmatpush1.bf16.xpose.msra.mxu0 0
      %1807 = vmatprep.subr.bf16.mxu0 0
      %1808 = vmatpush1.bf16.xpose.msra.mxu0 0
      %1809 = vmatprep.subr.bf16.mxu0 0
      %1810 = vmatpush1.bf16.xpose.msra.mxu0 0
      %1811 = vmatprep.subr.bf16.mxu0 0
      %1812 = vmatpush1.bf16.xpose.msra.mxu0 0
      %1813 = vmatprep.subr.bf16.mxu0 0
      %1814 = vmatpush1.bf16.xpose.msra.mxu0 0
      %1815 = vmatprep.subr.bf16.mxu0 0
      %1816 = vmatpush1.bf16.xpose.msra.mxu0 0
      %1817 = vmatprep.subr.bf16.mxu0 0
      %1818 = vmatpush1.bf16.xpose.msra.mxu0 0
      %1819 = vmatprep.subr.bf16.mxu0 0
      %1820 = vmatpush1.bf16.xpose.msra.mxu0 0
      %1821 = vmatprep.subr.bf16.mxu0 0
      %1822 = vmatpush1.bf16.xpose.msra.mxu0 0
      %1823 = vmatprep.subr.bf16.mxu0 0
      %1824 = vmatpush1.bf16.xpose.msra.mxu0 0
      %1825 = vmatprep.subr.bf16.mxu0 0
      %1826 = vmatpush1.bf16.xpose.msra.mxu0 0
      %1827 = vmatprep.subr.bf16.mxu0 0
      %1828 = vmatpush1.bf16.xpose.msra.mxu0 0
      %1829 = vmatprep.subr.bf16.mxu0 0
      %1830 = vmatpush1.bf16.xpose.msra.mxu0 0
      %1831 = vmatprep.mubr.bf16.mxu0 0
      %1832 = vmatmul.mubr.bf16.gmra.mrb[0].mxu0 %v1794
      %v1833 = vpop.f32.mrb[0].mxu0
      %v1834 = vadd.f32 0.0, %v1833
      %v1835 = vpop.f32.mrb[0].mxu0
      %v1836 = vpop.f32.mrb[0].mxu0
      %v1837 = vpop.f32.mrb[0].mxu0
      %1838 = vdwg.mxu0
      %v1840 = vsel %vm670, %v1403, 0
      %v1843 = vsel %vm670, %v1573, 0
      %1845 = vmatprep.subr.bf16.mxu0 0
      %1846 = vmatpush1.bf16.xpose.msra.mxu0 %v1843
      %1847 = vmatprep.subr.bf16.mxu0 0
      %1848 = vmatpush1.bf16.xpose.msra.mxu0 0
      %1849 = vmatprep.subr.bf16.mxu0 0
      %1850 = vmatpush1.bf16.xpose.msra.mxu0 0
      %1851 = vmatprep.subr.bf16.mxu0 0
      %1852 = vmatpush1.bf16.xpose.msra.mxu0 0
      %1853 = vmatprep.subr.bf16.mxu0 0
      %1854 = vmatpush1.bf16.xpose.msra.mxu0 0
      %1855 = vmatprep.subr.bf16.mxu0 0
      %1856 = vmatpush1.bf16.xpose.msra.mxu0 0
      %1857 = vmatprep.subr.bf16.mxu0 0
      %1858 = vmatpush1.bf16.xpose.msra.mxu0 0
      %1859 = vmatprep.subr.bf16.mxu0 0
      %1860 = vmatpush1.bf16.xpose.msra.mxu0 0
      %1861 = vmatprep.subr.bf16.mxu0 0
      %1862 = vmatpush1.bf16.xpose.msra.mxu0 0
      %1863 = vmatprep.subr.bf16.mxu0 0
      %1864 = vmatpush1.bf16.xpose.msra.mxu0 0
      %1865 = vmatprep.subr.bf16.mxu0 0
      %1866 = vmatpush1.bf16.xpose.msra.mxu0 0
      %1867 = vmatprep.subr.bf16.mxu0 0
      %1868 = vmatpush1.bf16.xpose.msra.mxu0 0
      %1869 = vmatprep.subr.bf16.mxu0 0
      %1870 = vmatpush1.bf16.xpose.msra.mxu0 0
      %1871 = vmatprep.subr.bf16.mxu0 0
      %1872 = vmatpush1.bf16.xpose.msra.mxu0 0
      %1873 = vmatprep.subr.bf16.mxu0 0
      %1874 = vmatpush1.bf16.xpose.msra.mxu0 0
      %1875 = vmatprep.subr.bf16.mxu0 0
      %1876 = vmatpush1.bf16.xpose.msra.mxu0 0
      %1877 = vmatprep.mubr.bf16.mxu0 0
      %1878 = vmatmul.mubr.bf16.gmra.mrb[0].mxu0 %v1840
      %v1879 = vpop.f32.mrb[0].mxu0
      %v1880 = vadd.f32 0.0, %v1879
      %v1881 = vpop.f32.mrb[0].mxu0
      %v1882 = vpop.f32.mrb[0].mxu0
      %v1883 = vpop.f32.mrb[0].mxu0
      %1884 = vdwg.mxu0
      %v1886 = vsel %vm670, %v1406, 0
      %v1889 = vsel %vm670, %v1576, 0
      %1891 = vmatprep.subr.bf16.mxu0 0
      %1892 = vmatpush1.bf16.xpose.msra.mxu0 %v1889
      %1893 = vmatprep.subr.bf16.mxu0 0
      %1894 = vmatpush1.bf16.xpose.msra.mxu0 0
      %1895 = vmatprep.subr.bf16.mxu0 0
      %1896 = vmatpush1.bf16.xpose.msra.mxu0 0
      %1897 = vmatprep.subr.bf16.mxu0 0
      %1898 = vmatpush1.bf16.xpose.msra.mxu0 0
      %1899 = vmatprep.subr.bf16.mxu0 0
      %1900 = vmatpush1.bf16.xpose.msra.mxu0 0
      %1901 = vmatprep.subr.bf16.mxu0 0
      %1902 = vmatpush1.bf16.xpose.msra.mxu0 0
      %1903 = vmatprep.subr.bf16.mxu0 0
      %1904 = vmatpush1.bf16.xpose.msra.mxu0 0
      %1905 = vmatprep.subr.bf16.mxu0 0
      %1906 = vmatpush1.bf16.xpose.msra.mxu0 0
      %1907 = vmatprep.subr.bf16.mxu0 0
      %1908 = vmatpush1.bf16.xpose.msra.mxu0 0
      %1909 = vmatprep.subr.bf16.mxu0 0
      %1910 = vmatpush1.bf16.xpose.msra.mxu0 0
      %1911 = vmatprep.subr.bf16.mxu0 0
      %1912 = vmatpush1.bf16.xpose.msra.mxu0 0
      %1913 = vmatprep.subr.bf16.mxu0 0
      %1914 = vmatpush1.bf16.xpose.msra.mxu0 0
      %1915 = vmatprep.subr.bf16.mxu0 0
      %1916 = vmatpush1.bf16.xpose.msra.mxu0 0
      %1917 = vmatprep.subr.bf16.mxu0 0
      %1918 = vmatpush1.bf16.xpose.msra.mxu0 0
      %1919 = vmatprep.subr.bf16.mxu0 0
      %1920 = vmatpush1.bf16.xpose.msra.mxu0 0
      %1921 = vmatprep.subr.bf16.mxu0 0
      %1922 = vmatpush1.bf16.xpose.msra.mxu0 0
      %1923 = vmatprep.mubr.bf16.mxu0 0
      %1924 = vmatmul.mubr.bf16.gmra.mrb[0].mxu0 %v1886
      %v1925 = vpop.f32.mrb[0].mxu0
      %v1926 = vadd.f32 0.0, %v1925
      %v1927 = vpop.f32.mrb[0].mxu0
      %v1928 = vpop.f32.mrb[0].mxu0
      %v1929 = vpop.f32.mrb[0].mxu0
      %1930 = vdwg.mxu0
      %v1931 = vsel %vm670, %v1788, -inf
      %1932 = vmax.xlane.f32.xlu0 %v1931
      %v1933 = vpop.xlane.xlu0 %1932
      %v1934 = vsel %vm670, %v1834, -inf
      %1935 = vmax.xlane.f32.xlu0 %v1934
      %v1936 = vpop.xlane.xlu0 %1935
      %v1937 = vsel %vm670, %v1880, -inf
      %1938 = vmax.xlane.f32.xlu0 %v1937
      %v1939 = vpop.xlane.xlu0 %1938
      %v1940 = vsel %vm670, %v1926, -inf
      %1941 = vmax.xlane.f32.xlu0 %v1940
      %v1942 = vpop.xlane.xlu0 %1941
      %v1943 = vsub.f32 %v1788, %v1933
      %v1944 = vsub.f32 %v1834, %v1936
      %v1945 = vsub.f32 %v1880, %v1939
      %v1946 = vsub.f32 %v1926, %v1942
      %v1947 = vmul.f32 %v1943, 1.442695
      %v1948 = vpow.pop %v1947
      %v1949 = vmul.f32 %v1944, 1.442695
      %v1950 = vpow.pop %v1949
      %v1951 = vmul.f32 %v1945, 1.442695
      %v1952 = vpow.pop %v1951
      %v1953 = vmul.f32 %v1946, 1.442695
      %v1954 = vpow.pop %v1953
      %v1955 = vsel %vm670, %v1948, 0.0
      %1956 = vadd.xlane.f32.xlu0 %v1955
      %v1957 = vpop.xlane.xlu0 %1956
      %v1958 = vsel %vm670, %v1950, 0.0
      %1959 = vadd.xlane.f32.xlu0 %v1958
      %v1960 = vpop.xlane.xlu0 %1959
      %v1961 = vsel %vm670, %v1952, 0.0
      %1962 = vadd.xlane.f32.xlu0 %v1961
      %v1963 = vpop.xlane.xlu0 %1962
      %v1964 = vsel %vm670, %v1954, 0.0
      %1965 = vadd.xlane.f32.xlu0 %v1964
      %v1966 = vpop.xlane.xlu0 %1965
      %v1967 = vpack.c.bf16 %v1948, %v1948
      %v1968 = vpack.c.bf16 %v1950, %v1950
      %v1969 = vpack.c.bf16 %v1952, %v1952
      %v1970 = vpack.c.bf16 %v1954, %v1954
      %v1972 = vsel %vm670, %v1967, 0
      %v1975 = vsel %vm898, %v1737, 0
      %1977 = vmatprep.subr.bf16.mxu0 0
      %1978 = vmatpush1.bf16.msra.mxu0 %v1975
      %1979 = vmatprep.subr.bf16.mxu0 0
      %1980 = vmatpush1.bf16.msra.mxu0 0
      %1981 = vmatprep.subr.bf16.mxu0 0
      %1982 = vmatpush1.bf16.msra.mxu0 0
      %1983 = vmatprep.subr.bf16.mxu0 0
      %1984 = vmatpush1.bf16.msra.mxu0 0
      %1985 = vmatprep.subr.bf16.mxu0 0
      %1986 = vmatpush1.bf16.msra.mxu0 0
      %1987 = vmatprep.subr.bf16.mxu0 0
      %1988 = vmatpush1.bf16.msra.mxu0 0
      %1989 = vmatprep.subr.bf16.mxu0 0
      %1990 = vmatpush1.bf16.msra.mxu0 0
      %1991 = vmatprep.subr.bf16.mxu0 0
      %1992 = vmatpush1.bf16.msra.mxu0 0
      %1993 = vmatprep.subr.bf16.mxu0 0
      %1994 = vmatpush1.bf16.msra.mxu0 0
      %1995 = vmatprep.subr.bf16.mxu0 0
      %1996 = vmatpush1.bf16.msra.mxu0 0
      %1997 = vmatprep.subr.bf16.mxu0 0
      %1998 = vmatpush1.bf16.msra.mxu0 0
      %1999 = vmatprep.subr.bf16.mxu0 0
      %2000 = vmatpush1.bf16.msra.mxu0 0
      %2001 = vmatprep.subr.bf16.mxu0 0
      %2002 = vmatpush1.bf16.msra.mxu0 0
      %2003 = vmatprep.subr.bf16.mxu0 0
      %2004 = vmatpush1.bf16.msra.mxu0 0
      %2005 = vmatprep.subr.bf16.mxu0 0
      %2006 = vmatpush1.bf16.msra.mxu0 0
      %2007 = vmatprep.subr.bf16.mxu0 0
      %2008 = vmatpush1.bf16.msra.mxu0 0
      %2009 = vmatprep.mubr.bf16.mxu0 0
      %2010 = vmatmul.mubr.bf16.gmra.mrb[0].mxu0 %v1972
      %v2011 = vpop.f32.mrb[0].mxu0
      %v2012 = vadd.f32 0.0, %v2011
      %v2013 = vpop.f32.mrb[0].mxu0
      %v2014 = vpop.f32.mrb[0].mxu0
      %v2015 = vpop.f32.mrb[0].mxu0
      %2016 = vdwg.mxu0
      %v2018 = vsel %vm670, %v1968, 0
      %v2021 = vsel %vm898, %v1740, 0
      %2023 = vmatprep.subr.bf16.mxu0 0
      %2024 = vmatpush1.bf16.msra.mxu0 %v2021
      %2025 = vmatprep.subr.bf16.mxu0 0
      %2026 = vmatpush1.bf16.msra.mxu0 0
      %2027 = vmatprep.subr.bf16.mxu0 0
      %2028 = vmatpush1.bf16.msra.mxu0 0
      %2029 = vmatprep.subr.bf16.mxu0 0
      %2030 = vmatpush1.bf16.msra.mxu0 0
      %2031 = vmatprep.subr.bf16.mxu0 0
      %2032 = vmatpush1.bf16.msra.mxu0 0
      %2033 = vmatprep.subr.bf16.mxu0 0
      %2034 = vmatpush1.bf16.msra.mxu0 0
      %2035 = vmatprep.subr.bf16.mxu0 0
      %2036 = vmatpush1.bf16.msra.mxu0 0
      %2037 = vmatprep.subr.bf16.mxu0 0
      %2038 = vmatpush1.bf16.msra.mxu0 0
      %2039 = vmatprep.subr.bf16.mxu0 0
      %2040 = vmatpush1.bf16.msra.mxu0 0
      %2041 = vmatprep.subr.bf16.mxu0 0
      %2042 = vmatpush1.bf16.msra.mxu0 0
      %2043 = vmatprep.subr.bf16.mxu0 0
      %2044 = vmatpush1.bf16.msra.mxu0 0
      %2045 = vmatprep.subr.bf16.mxu0 0
      %2046 = vmatpush1.bf16.msra.mxu0 0
      %2047 = vmatprep.subr.bf16.mxu0 0
      %2048 = vmatpush1.bf16.msra.mxu0 0
      %2049 = vmatprep.subr.bf16.mxu0 0
      %2050 = vmatpush1.bf16.msra.mxu0 0
      %2051 = vmatprep.subr.bf16.mxu0 0
      %2052 = vmatpush1.bf16.msra.mxu0 0
      %2053 = vmatprep.subr.bf16.mxu0 0
      %2054 = vmatpush1.bf16.msra.mxu0 0
      %2055 = vmatprep.mubr.bf16.mxu0 0
      %2056 = vmatmul.mubr.bf16.gmra.mrb[0].mxu0 %v2018
      %v2057 = vpop.f32.mrb[0].mxu0
      %v2058 = vadd.f32 0.0, %v2057
      %v2059 = vpop.f32.mrb[0].mxu0
      %v2060 = vpop.f32.mrb[0].mxu0
      %v2061 = vpop.f32.mrb[0].mxu0
      %2062 = vdwg.mxu0
      %v2064 = vsel %vm670, %v1969, 0
      %v2067 = vsel %vm898, %v1743, 0
      %2069 = vmatprep.subr.bf16.mxu0 0
      %2070 = vmatpush1.bf16.msra.mxu0 %v2067
      %2071 = vmatprep.subr.bf16.mxu0 0
      %2072 = vmatpush1.bf16.msra.mxu0 0
      %2073 = vmatprep.subr.bf16.mxu0 0
      %2074 = vmatpush1.bf16.msra.mxu0 0
      %2075 = vmatprep.subr.bf16.mxu0 0
      %2076 = vmatpush1.bf16.msra.mxu0 0
      %2077 = vmatprep.subr.bf16.mxu0 0
      %2078 = vmatpush1.bf16.msra.mxu0 0
      %2079 = vmatprep.subr.bf16.mxu0 0
      %2080 = vmatpush1.bf16.msra.mxu0 0
      %2081 = vmatprep.subr.bf16.mxu0 0
      %2082 = vmatpush1.bf16.msra.mxu0 0
      %2083 = vmatprep.subr.bf16.mxu0 0
      %2084 = vmatpush1.bf16.msra.mxu0 0
      %2085 = vmatprep.subr.bf16.mxu0 0
      %2086 = vmatpush1.bf16.msra.mxu0 0
      %2087 = vmatprep.subr.bf16.mxu0 0
      %2088 = vmatpush1.bf16.msra.mxu0 0
      %2089 = vmatprep.subr.bf16.mxu0 0
      %2090 = vmatpush1.bf16.msra.mxu0 0
      %2091 = vmatprep.subr.bf16.mxu0 0
      %2092 = vmatpush1.bf16.msra.mxu0 0
      %2093 = vmatprep.subr.bf16.mxu0 0
      %2094 = vmatpush1.bf16.msra.mxu0 0
      %2095 = vmatprep.subr.bf16.mxu0 0
      %2096 = vmatpush1.bf16.msra.mxu0 0
      %2097 = vmatprep.subr.bf16.mxu0 0
      %2098 = vmatpush1.bf16.msra.mxu0 0
      %2099 = vmatprep.subr.bf16.mxu0 0
      %2100 = vmatpush1.bf16.msra.mxu0 0
      %2101 = vmatprep.mubr.bf16.mxu0 0
      %2102 = vmatmul.mubr.bf16.gmra.mrb[0].mxu0 %v2064
      %v2103 = vpop.f32.mrb[0].mxu0
      %v2104 = vadd.f32 0.0, %v2103
      %v2105 = vpop.f32.mrb[0].mxu0
      %v2106 = vpop.f32.mrb[0].mxu0
      %v2107 = vpop.f32.mrb[0].mxu0
      %2108 = vdwg.mxu0
      %v2110 = vsel %vm670, %v1970, 0
      %v2113 = vsel %vm898, %v1746, 0
      %2115 = vmatprep.subr.bf16.mxu0 0
      %2116 = vmatpush1.bf16.msra.mxu0 %v2113
      %2117 = vmatprep.subr.bf16.mxu0 0
      %2118 = vmatpush1.bf16.msra.mxu0 0
      %2119 = vmatprep.subr.bf16.mxu0 0
      %2120 = vmatpush1.bf16.msra.mxu0 0
      %2121 = vmatprep.subr.bf16.mxu0 0
      %2122 = vmatpush1.bf16.msra.mxu0 0
      %2123 = vmatprep.subr.bf16.mxu0 0
      %2124 = vmatpush1.bf16.msra.mxu0 0
      %2125 = vmatprep.subr.bf16.mxu0 0
      %2126 = vmatpush1.bf16.msra.mxu0 0
      %2127 = vmatprep.subr.bf16.mxu0 0
      %2128 = vmatpush1.bf16.msra.mxu0 0
      %2129 = vmatprep.subr.bf16.mxu0 0
      %2130 = vmatpush1.bf16.msra.mxu0 0
      %2131 = vmatprep.subr.bf16.mxu0 0
      %2132 = vmatpush1.bf16.msra.mxu0 0
      %2133 = vmatprep.subr.bf16.mxu0 0
      %2134 = vmatpush1.bf16.msra.mxu0 0
      %2135 = vmatprep.subr.bf16.mxu0 0
      %2136 = vmatpush1.bf16.msra.mxu0 0
      %2137 = vmatprep.subr.bf16.mxu0 0
      %2138 = vmatpush1.bf16.msra.mxu0 0
      %2139 = vmatprep.subr.bf16.mxu0 0
      %2140 = vmatpush1.bf16.msra.mxu0 0
      %2141 = vmatprep.subr.bf16.mxu0 0
      %2142 = vmatpush1.bf16.msra.mxu0 0
      %2143 = vmatprep.subr.bf16.mxu0 0
      %2144 = vmatpush1.bf16.msra.mxu0 0
      %2145 = vmatprep.subr.bf16.mxu0 0
      %2146 = vmatpush1.bf16.msra.mxu0 0
      %2147 = vmatprep.mubr.bf16.mxu0 0
      %2148 = vmatmul.mubr.bf16.gmra.mrb[0].mxu0 %v2110
      %v2149 = vpop.f32.mrb[0].mxu0
      %v2150 = vadd.f32 0.0, %v2149
      %v2151 = vpop.f32.mrb[0].mxu0
      %v2152 = vpop.f32.mrb[0].mxu0
      %v2153 = vpop.f32.mrb[0].mxu0
      %2154 = vdwg.mxu0
      %v2155 = vrcp.pop %v1957
      %v2156 = vrcp.pop %v1960
      %v2157 = vrcp.pop %v1963
      %v2158 = vrcp.pop %v1966
      %v2159 = vmul.f32 %v2012, %v2155
      %v2160 = vmul.f32 %v2058, %v2156
      %v2161 = vmul.f32 %v2104, %v2157
      %v2162 = vmul.f32 %v2150, %v2158
      %v2163 = vcombine.low %v2159, %v2161
      %v2164 = vcombine.high %v2159, %v2161
      %v2166 = vunpack.c.l.s4 1983009808
      %v2167 = vunpack.c.0.s8 %v2166
      %v2168 = vlaneseq
      %v2169 = vshrl.u32 %v2168, 7
      %v2170 = vsub.s32 %v2167, %v2169
      %v2171 = vrot.slane %v2163, %v2170
      %v2173 = vunpack.c.l.s4 1983009808
      %v2174 = vunpack.c.0.s8 %v2173
      %v2175 = vlaneseq
      %v2176 = vshrl.u32 %v2175, 7
      %v2177 = vsub.s32 %v2174, %v2176
      %v2178 = vrot.slane %v2164, %v2177
      %v2179 = vcombine.low %v2160, %v2162
      %v2180 = vcombine.high %v2160, %v2162
      %v2182 = vunpack.c.l.s4 1983009808
      %v2183 = vunpack.c.0.s8 %v2182
      %v2184 = vlaneseq
      %v2185 = vshrl.u32 %v2184, 7
      %v2186 = vsub.s32 %v2183, %v2185
      %v2187 = vrot.slane %v2179, %v2186
      %v2189 = vunpack.c.l.s4 1983009808
      %v2190 = vunpack.c.0.s8 %v2189
      %v2191 = vlaneseq
      %v2192 = vshrl.u32 %v2191, 7
      %v2193 = vsub.s32 %v2190, %v2192
      %v2194 = vrot.slane %v2180, %v2193
      %v2195 = vcombine.low %v2171, %v2187
      %v2196 = vcombine.high %v2171, %v2187
      %v2198 = vunpack.c.l.s4 1934713408
      %v2199 = vunpack.c.0.s8 %v2198
      %v2200 = vlaneseq
      %v2201 = vshrl.u32 %v2200, 7
      %v2202 = vsub.s32 %v2199, %v2201
      %v2203 = vrot.slane %v2195, %v2202
      %v2205 = vunpack.c.l.s4 1934713408
      %v2206 = vunpack.c.0.s8 %v2205
      %v2207 = vlaneseq
      %v2208 = vshrl.u32 %v2207, 7
      %v2209 = vsub.s32 %v2206, %v2208
      %v2210 = vrot.slane %v2196, %v2209
      %v2211 = vcombine.low %v2178, %v2194
      %v2212 = vcombine.high %v2178, %v2194
      %v2214 = vunpack.c.l.s4 1934713408
      %v2215 = vunpack.c.0.s8 %v2214
      %v2216 = vlaneseq
      %v2217 = vshrl.u32 %v2216, 7
      %v2218 = vsub.s32 %v2215, %v2217
      %v2219 = vrot.slane %v2211, %v2218
      %v2221 = vunpack.c.l.s4 1934713408
      %v2222 = vunpack.c.0.s8 %v2221
      %v2223 = vlaneseq
      %v2224 = vshrl.u32 %v2223, 7
      %v2225 = vsub.s32 %v2222, %v2224
      %v2226 = vrot.slane %v2212, %v2225
      %v2227 = vcombine.high %v2203, 0.0
      %v2228 = vcombine.high %v2210, 0.0
      %v2229 = vcombine.high %v2219, 0.0
      %v2230 = vcombine.high %v2226, 0.0
      %v2231 = vcombine.low %v2203, %v2210
      %v2233 = vunpack.c.l.s4 1983009808
      %v2234 = vunpack.c.0.s8 %v2233
      %v2235 = vlaneseq
      %v2236 = vshrl.u32 %v2235, 7
      %v2237 = vsub.s32 %v2234, %v2236
      %v2238 = vrot.slane %v2231, %v2237
      %v2239 = vcombine.low %v2227, %v2228
      %v2241 = vunpack.c.l.s4 1983009808
      %v2242 = vunpack.c.0.s8 %v2241
      %v2243 = vlaneseq
      %v2244 = vshrl.u32 %v2243, 7
      %v2245 = vsub.s32 %v2242, %v2244
      %v2246 = vrot.slane %v2239, %v2245
      %v2247 = vcombine.low %v2219, %v2226
      %v2249 = vunpack.c.l.s4 1983009808
      %v2250 = vunpack.c.0.s8 %v2249
      %v2251 = vlaneseq
      %v2252 = vshrl.u32 %v2251, 7
      %v2253 = vsub.s32 %v2250, %v2252
      %v2254 = vrot.slane %v2247, %v2253
      %v2255 = vcombine.low %v2229, %v2230
      %v2257 = vunpack.c.l.s4 1983009808
      %v2258 = vunpack.c.0.s8 %v2257
      %v2259 = vlaneseq
      %v2260 = vshrl.u32 %v2259, 7
      %v2261 = vsub.s32 %v2258, %v2260
      %v2262 = vrot.slane %v2255, %v2261
      %v2263 = vcombine.low %v2238, %v2246
      %v2264 = vcombine.high %v2238, %v2246
      %v2266 = vunpack.c.l.s4 1934713408
      %v2267 = vunpack.c.0.s8 %v2266
      %v2268 = vlaneseq
      %v2269 = vshrl.u32 %v2268, 7
      %v2270 = vsub.s32 %v2267, %v2269
      %v2271 = vrot.slane %v2263, %v2270
      %v2273 = vunpack.c.l.s4 1934713408
      %v2274 = vunpack.c.0.s8 %v2273
      %v2275 = vlaneseq
      %v2276 = vshrl.u32 %v2275, 7
      %v2277 = vsub.s32 %v2274, %v2276
      %v2278 = vrot.slane %v2264, %v2277
      %v2279 = vcombine.low %v2254, %v2262
      %v2280 = vcombine.high %v2254, %v2262
      %v2282 = vunpack.c.l.s4 1934713408
      %v2283 = vunpack.c.0.s8 %v2282
      %v2284 = vlaneseq
      %v2285 = vshrl.u32 %v2284, 7
      %v2286 = vsub.s32 %v2283, %v2285
      %v2287 = vrot.slane %v2279, %v2286
      %v2289 = vunpack.c.l.s4 1934713408
      %v2290 = vunpack.c.0.s8 %v2289
      %v2291 = vlaneseq
      %v2292 = vshrl.u32 %v2291, 7
      %v2293 = vsub.s32 %v2290, %v2292
      %v2294 = vrot.slane %v2280, %v2293
      %v2295 = vcombine.low %v2271, %v2287
      %v2296 = vcombine.high %v2271, %v2287
      %v2297 = vcombine.low %v2278, %v2294
      %v2298 = vcombine.high %v2278, %v2294
      %2300 = vrot.lane.b32.xlu0 %v2296, 8
      %v2301 = vpop.permute.xlu0 %2300
      %2304 = vrot.lane.b32.xlu0 %v2297, 16
      %v2305 = vpop.permute.xlu0 %2304
      %2308 = vrot.lane.b32.xlu0 %v2298, 24
      %v2309 = vpop.permute.xlu0 %2308
      %v2311 = vsel %vm670, %v2295, %v2301
      %v2312 = vsel %vm1237, %v2311, %v2305
      %v2313 = vsel %vm1239, %v2312, %v2309
      %v2314 = vpack.c.bf16 %v2313, %v1240
      %v2315 = vld [vmem:[%s4] sm:$0xf]
      %v2316 = vld [vmem:[%s4 + $0x4] sm:$0xf]
      %v2317 = vld [vmem:[%s4 + $0x8] sm:$0xf]
      %v2318 = vld [vmem:[%s4 + $0xc] sm:$0xf]
      %v2323 = vunpack.c.l.b16 %v2315
      %v2324 = vunpack.c.l.b16 %v2316
      %v2325 = vunpack.c.l.b16 %v2317
      %v2326 = vunpack.c.l.b16 %v2318
      %v2327 = vpack.c.b16 %v2324, %v2323
      %v2328 = vpack.c.b16 %v2326, %v2325
      %v2332 = vsel %vm56, %v2314, 0
      %2334 = vmatprep.subr.bf16.mxu0 0
      %2335 = vmatpush1.bf16.msra.mxu0 %v2327
      %2336 = vmatprep.subr.bf16.mxu0 0
      %2337 = vmatpush1.bf16.msra.mxu0 %v2328
      %2338 = vmatprep.subr.bf16.mxu0 0
      %2339 = vmatpush1.bf16.msra.mxu0 0
      %2340 = vmatprep.subr.bf16.mxu0 0
      %2341 = vmatpush1.bf16.msra.mxu0 0
      %2342 = vmatprep.subr.bf16.mxu0 0
      %2343 = vmatpush1.bf16.msra.mxu0 0
      %2344 = vmatprep.subr.bf16.mxu0 0
      %2345 = vmatpush1.bf16.msra.mxu0 0
      %2346 = vmatprep.subr.bf16.mxu0 0
      %2347 = vmatpush1.bf16.msra.mxu0 0
      %2348 = vmatprep.subr.bf16.mxu0 0
      %2349 = vmatpush1.bf16.msra.mxu0 0
      %2350 = vmatprep.subr.bf16.mxu0 0
      %2351 = vmatpush1.bf16.msra.mxu0 0
      %2352 = vmatprep.subr.bf16.mxu0 0
      %2353 = vmatpush1.bf16.msra.mxu0 0
      %2354 = vmatprep.subr.bf16.mxu0 0
      %2355 = vmatpush1.bf16.msra.mxu0 0
      %2356 = vmatprep.subr.bf16.mxu0 0
      %2357 = vmatpush1.bf16.msra.mxu0 0
      %2358 = vmatprep.subr.bf16.mxu0 0
      %2359 = vmatpush1.bf16.msra.mxu0 0
      %2360 = vmatprep.subr.bf16.mxu0 0
      %2361 = vmatpush1.bf16.msra.mxu0 0
      %2362 = vmatprep.subr.bf16.mxu0 0
      %2363 = vmatpush1.bf16.msra.mxu0 0
      %2364 = vmatprep.subr.bf16.mxu0 0
      %2365 = vmatpush1.bf16.msra.mxu0 0
      %2366 = vmatprep.mubr.bf16.mxu0 0
      %2367 = vmatmul.mubr.bf16.gmra.mrb[0].mxu0 %v2332
      %v2368 = vpop.f32.mrb[0].mxu0
      %v2369 = vadd.f32 0.0, %v2368
      %v2370 = vpop.f32.mrb[0].mxu0
      %v2371 = vpop.f32.mrb[0].mxu0
      %v2372 = vadd.f32 0.0, %v2371
      %v2373 = vpop.f32.mrb[0].mxu0
      %2374 = vdwg.mxu0
      %v2375 = vadd.f32 %v52, %v2369
      %v2376 = vadd.f32 %v53, %v2372
      %v2377 = vld [vmem:[%s5] sm:$0x1]
      %v2378 = vld [vmem:[%s6] sm:$0x1]
      %v2379 = vsel %vm56, %v2375, 0.0
      %2380 = vadd.xlane.f32.xlu0 %v2379
      %v2381 = vpop.xlane.xlu0 %2380
      %v2382 = vsel %vm56, %v2376, 0.0
      %2383 = vadd.xlane.f32.xlu0 %v2382
      %v2384 = vpop.xlane.xlu0 %2383
      %v2385 = vmul.f32 %v2381, %v63
      %v2386 = vmul.f32 %v2384, %v63
      %v2387 = vsub.f32 %v2375, %v2385
      %v2388 = vsub.f32 %v2376, %v2386
      %v2389 = vmul.f32 %v2387, %v2387
      %v2390 = vmul.f32 %v2388, %v2388
      %v2391 = vsel %vm56, %v2389, 0.0
      %2392 = vadd.xlane.f32.xlu0 %v2391
      %v2393 = vpop.xlane.xlu0 %2392
      %v2394 = vsel %vm56, %v2390, 0.0
      %2395 = vadd.xlane.f32.xlu0 %v2394
      %v2396 = vpop.xlane.xlu0 %2395
      %v2397 = vmul.f32 %v2393, %v63
      %v2398 = vmul.f32 %v2396, %v63
      %v2399 = vadd.f32 %v2397, 1e-05
      %v2400 = vadd.f32 %v2398, 1e-05
      %v2401 = vrsqrt.pop %v2399
      %v2402 = vrsqrt.pop %v2400
      %v2403 = vmul.f32 %v2387, %v2401
      %v2404 = vmul.f32 %v2388, %v2402
      %v2406 = vlaneseq
      %v2407 = vshrl.u32 %v2406, 7
      %v2408 = vsub.s32 0, %v2407
      %v2409 = vrot.slane %v2377, %v2408
      %v2411 = vmul.f32 %v2403, %v2409
      %v2412 = vmul.f32 %v2404, %v2409
      %v2414 = vlaneseq
      %v2415 = vshrl.u32 %v2414, 7
      %v2416 = vsub.s32 0, %v2415
      %v2417 = vrot.slane %v2378, %v2416
      %v2419 = vadd.f32 %v2411, %v2417
      %v2420 = vadd.f32 %v2412, %v2417
      %v2421 = vpack.c.bf16 %v2420, %v2419
      %2422 = vst.msk [vmem:[#allocation2] sm:$0xff] %vm56, %v2421
      %2423 = vst.msk [vmem:[#allocation3] sm:$0xff] %vm56, %v2375
      %2424 = vst.msk [vmem:[#allocation3 + $0x8] sm:$0xff] %vm56, %v2376
    $region45: #{tpu_custom_call.1} parent=1 // pred_fallthru
      _
    %v2425 = vld [vmem:[#allocation2] sm:$0xff]
    %v2426 = vld [vmem:[#allocation4] sm:$0xf]
    %v2427 = vld [vmem:[#allocation4 + $0x4] sm:$0xf]
    %v2428 = vld [vmem:[#allocation4 + $0x8] sm:$0xf]
    %v2429 = vld [vmem:[#allocation4 + $0xc] sm:$0xf]
    %v2434 = vunpack.c.l.b16 %v2426
    %v2435 = vunpack.c.l.b16 %v2427
    %v2436 = vunpack.c.l.b16 %v2428
    %v2437 = vunpack.c.l.b16 %v2429
    %v2438 = vpack.c.b16 %v2435, %v2434
    %v2439 = vpack.c.b16 %v2437, %v2436
    %vm2442 = vcmask 261120
    %v2444 = vsel %vm2442, %v2425, 0
    %2446 = vmatprep.subr.bf16.mxu0 0
    %2447 = vmatpush1.bf16.msra.mxu0 %v2438
    %2448 = vmatprep.subr.bf16.mxu0 0
    %2449 = vmatpush1.bf16.msra.mxu0 %v2439
    %2450 = vmatprep.subr.bf16.mxu0 0
    %2451 = vmatpush1.bf16.msra.mxu0 0
    %2452 = vmatprep.subr.bf16.mxu0 0
    %2453 = vmatpush1.bf16.msra.mxu0 0
    %2454 = vmatprep.subr.bf16.mxu0 0
    %2455 = vmatpush1.bf16.msra.mxu0 0
    %2456 = vmatprep.subr.bf16.mxu0 0
    %2457 = vmatpush1.bf16.msra.mxu0 0
    %2458 = vmatprep.subr.bf16.mxu0 0
    %2459 = vmatpush1.bf16.msra.mxu0 0
    %2460 = vmatprep.subr.bf16.mxu0 0
    %2461 = vmatpush1.bf16.msra.mxu0 0
    %2462 = vmatprep.subr.bf16.mxu0 0
    %2463 = vmatpush1.bf16.msra.mxu0 0
    %2464 = vmatprep.subr.bf16.mxu0 0
    %2465 = vmatpush1.bf16.msra.mxu0 0
    %2466 = vmatprep.subr.bf16.mxu0 0
    %2467 = vmatpush1.bf16.msra.mxu0 0
    %2468 = vmatprep.subr.bf16.mxu0 0
    %2469 = vmatpush1.bf16.msra.mxu0 0
    %2470 = vmatprep.subr.bf16.mxu0 0
    %2471 = vmatpush1.bf16.msra.mxu0 0
    %2472 = vmatprep.subr.bf16.mxu0 0
    %2473 = vmatpush1.bf16.msra.mxu0 0
    %2474 = vmatprep.subr.bf16.mxu0 0
    %2475 = vmatpush1.bf16.msra.mxu0 0
    %2476 = vmatprep.subr.bf16.mxu0 0
    %2477 = vmatpush1.bf16.msra.mxu0 0
    %2478 = vmatprep.mubr.bf16.mxu0 0
    %2479 = vmatmul.mubr.bf16.gmra.mrb[0].mxu0 %v2444
    %v2480 = vpop.f32.mrb[0].mxu0
    %v2481 = vadd.f32 0.0, %v2480
    %v2482 = vpop.f32.mrb[0].mxu0
    %v2483 = vpop.f32.mrb[0].mxu0
    %v2484 = vadd.f32 0.0, %v2483
    %v2485 = vpop.f32.mrb[0].mxu0
    %2486 = vdwg.mxu0
    %v2487 = vmax.f32 %v2481, 0.0
    %v2488 = vmax.f32 %v2484, 0.0
    %v2489 = vpack.c.bf16 %v2488, %v2487
    %v2490 = vld [vmem:[#allocation3] sm:$0xff]
    %v2491 = vld [vmem:[#allocation3 + $0x8] sm:$0xff]
    %v2492 = vld [vmem:[%s8] sm:$0xf]
    %v2493 = vld [vmem:[%s8 + $0x4] sm:$0xf]
    %v2494 = vld [vmem:[%s8 + $0x8] sm:$0xf]
    %v2495 = vld [vmem:[%s8 + $0xc] sm:$0xf]
    %v2496 = vld [vmem:[%s8 + $0x10] sm:$0xf]
    %v2497 = vld [vmem:[%s8 + $0x14] sm:$0xf]
    %v2498 = vld [vmem:[%s8 + $0x18] sm:$0xf]
    %v2499 = vld [vmem:[%s8 + $0x1c] sm:$0xf]
    %v2508 = vunpack.c.l.b16 %v2492
    %v2509 = vunpack.c.l.b16 %v2493
    %v2510 = vunpack.c.l.b16 %v2494
    %v2511 = vunpack.c.l.b16 %v2495
    %v2512 = vunpack.c.l.b16 %v2496
    %v2513 = vunpack.c.l.b16 %v2497
    %v2514 = vunpack.c.l.b16 %v2498
    %v2515 = vunpack.c.l.b16 %v2499
    %v2516 = vpack.c.b16 %v2509, %v2508
    %v2517 = vpack.c.b16 %v2511, %v2510
    %v2518 = vpack.c.b16 %v2513, %v2512
    %v2519 = vpack.c.b16 %v2515, %v2514
    %vm2524 = vcmask 523264
    %v2526 = vsel %vm2524, %v2489, 0
    %2528 = vmatprep.subr.bf16.mxu0 0
    %2529 = vmatpush1.bf16.msra.mxu0 %v2516
    %2530 = vmatprep.subr.bf16.mxu0 0
    %2531 = vmatpush1.bf16.msra.mxu0 %v2517
    %2532 = vmatprep.subr.bf16.mxu0 0
    %2533 = vmatpush1.bf16.msra.mxu0 %v2518
    %2534 = vmatprep.subr.bf16.mxu0 0
    %2535 = vmatpush1.bf16.msra.mxu0 %v2519
    %2536 = vmatprep.subr.bf16.mxu0 0
    %2537 = vmatpush1.bf16.msra.mxu0 0
    %2538 = vmatprep.subr.bf16.mxu0 0
    %2539 = vmatpush1.bf16.msra.mxu0 0
    %2540 = vmatprep.subr.bf16.mxu0 0
    %2541 = vmatpush1.bf16.msra.mxu0 0
    %2542 = vmatprep.subr.bf16.mxu0 0
    %2543 = vmatpush1.bf16.msra.mxu0 0
    %2544 = vmatprep.subr.bf16.mxu0 0
    %2545 = vmatpush1.bf16.msra.mxu0 0
    %2546 = vmatprep.subr.bf16.mxu0 0
    %2547 = vmatpush1.bf16.msra.mxu0 0
    %2548 = vmatprep.subr.bf16.mxu0 0
    %2549 = vmatpush1.bf16.msra.mxu0 0
    %2550 = vmatprep.subr.bf16.mxu0 0
    %2551 = vmatpush1.bf16.msra.mxu0 0
    %2552 = vmatprep.subr.bf16.mxu0 0
    %2553 = vmatpush1.bf16.msra.mxu0 0
    %2554 = vmatprep.subr.bf16.mxu0 0
    %2555 = vmatpush1.bf16.msra.mxu0 0
    %2556 = vmatprep.subr.bf16.mxu0 0
    %2557 = vmatpush1.bf16.msra.mxu0 0
    %2558 = vmatprep.subr.bf16.mxu0 0
    %2559 = vmatpush1.bf16.msra.mxu0 0
    %2560 = vmatprep.mubr.bf16.mxu0 0
    %2561 = vmatmul.mubr.bf16.gmra.mrb[0].mxu0 %v2526
    %v2562 = vpop.f32.mrb[0].mxu0
    %v2563 = vadd.f32 0.0, %v2562
    %v2564 = vpop.f32.mrb[0].mxu0
    %v2565 = vpop.f32.mrb[0].mxu0
    %v2566 = vadd.f32 0.0, %v2565
    %v2567 = vpop.f32.mrb[0].mxu0
    %2568 = vdwg.mxu0
    %v2569 = vadd.f32 %v2490, %v2563
    %v2570 = vadd.f32 %v2491, %v2566
    %2571 = vst.msk [vmem:[#allocation3] sm:$0xff] %vm2442, %v2569
    %2572 = vst.msk [vmem:[#allocation3 + $0x8] sm:$0xff] %vm2442, %v2570
    // Predicated region
    $region46: #{tpu_custom_call.1} parent=1 // pred_check
      %p2573 = pneg %p48
    $region47: #{tpu_custom_call.1} parent=1 // pred_check_branch
      %2575 = sbr.rel (%p2573) target = $region49
    $region48: #{tpu_custom_call.1} parent=1 // pred_region
      %v2576 = vld [vmem:[#allocation3] sm:$0xff]
      %v2577 = vld [vmem:[#allocation3 + $0x8] sm:$0xff]
      %2578 = vst.msk [vmem:[#allocation7] sm:$0xff] %vm2442, %v2576
      %2579 = vst.msk [vmem:[#allocation7 + $0x8] sm:$0xff] %vm2442, %v2577
    $region49: #{tpu_custom_call.1} parent=1 // pred_fallthru
      _
    // Predicated region
    $region50: #{tpu_custom_call.1} parent=1 // pred_check
      _
    $region51: #{tpu_custom_call.1} parent=1 // pred_check_branch
      %2581 = sbr.rel (0) target = $region53
    $region52: #{tpu_custom_call.1} parent=1 // pred_region
      %s2583 = ssub.s32 256, 256
      %2584 = vsyncadd [#allocation6], %s2583
      %s2585 = sshll.u32 [#allocation7], 4
      %s2586 = int_to_ptr.vmem [resolvable:$true] %s2585
      %2591 = dma.vmem_to_hbm [thread:$0]  %s2586, 256, %s9, [#allocation6], 128, 128, 8
    $region53: #{tpu_custom_call.1} parent=1 // pred_fallthru
      _
    // Predicated region
    $region54: #{tpu_custom_call.1} parent=1 // pred_check
      _
    $region55: #{tpu_custom_call.1} parent=1 // pred_check_branch
      %2593 = sbr.rel (0) target = $region57
    $region56: #{tpu_custom_call.1} parent=1 // pred_region
      %2594 = dma.done [#allocation6], 256
    $region57: #{tpu_custom_call.1} parent=1 // pred_fallthru
      _
    %2595 = vsyncpa [#allocation5], 1
    %2596 = vsyncpa [#allocation6], 1

// kernel: tpu_custom_call.1
$region0: #{tpu_custom_call.1}
  #allocation0 [shape = 'u32[]', space=smem, size = 0x4, offset = 0x4, fixed_abs, tag = 'smem constant byte address 0x4 - core index']
  #allocation1 [shape = 'u32[144,128]{1,0:T(1,128)}', space=vmem, size = 0x12000, scoped, tag = 'internal scratch']
  #allocation2 [shape = 'bf16[16,32]{1,0:T(16,128)(2,1)}', space=vmem, size = 0x1000, scoped, tag = 'scratch operand']
  #allocation3 [shape = 'f32[16,32]{1,0:T(8,128)}', space=vmem, size = 0x2000, scoped, tag = 'scratch operand']
  %s0 = inlined_call_operand.vmem [shape: f32[2,8,32], index: 0, kind: input, shape index: {}]
  %s1 = inlined_call_operand.vmem [shape: f32[1,32], index: 1, kind: input, shape index: {}]
  %s2 = inlined_call_operand.vmem [shape: f32[1,32], index: 2, kind: input, shape index: {}]
  %s3 = inlined_call_operand.vmem [shape: bf16[32,96], index: 3, kind: input, shape index: {}]
  %s4 = inlined_call_operand.vmem [shape: bf16[32,32], index: 4, kind: input, shape index: {}]
  %s5 = inlined_call_operand.vmem [shape: f32[1,32], index: 5, kind: input, shape index: {}]
  %s6 = inlined_call_operand.vmem [shape: f32[1,32], index: 6, kind: input, shape index: {}]
  %s7 = inlined_call_operand.hbm [shape: bf16[32,64], index: 7, kind: input, shape index: {}]
  %s8 = inlined_call_operand.vmem [shape: bf16[64,32], index: 8, kind: input, shape index: {}]
  %s9 = inlined_call_operand.hbm [shape: f32[2,8,32], index: 9, kind: output, shape index: {}]
  %s10 = sld [smem:[#allocation0]]
  $region58: #{tpu_custom_call.1} parent=0
    _
  %s12 = ssub.s32 1, %s10
  %s13 = scalar_select 0, %s12, %s10
  $region1: #{tpu_custom_call.1} parent=0
    #allocation4 [shape = 'u8[8192]{0}', space=vmem, size = 0x2000, scoped, tag = 'input window, operand 7, single buffered']
    #allocation5 [shape = 's32[1]{0}', space=sflag, size = 0x4, scoped, tag = 'scoped memory for tpu_custom_call.1']
    #allocation6 [shape = 's32[1]{0}', space=sflag, size = 0x4, scoped, tag = 'scoped memory for tpu_custom_call.1']
    #allocation7 [shape = 'u8[8192]{0}', space=vmem, size = 0x2000, scoped, tag = 'output window, operand 0, single buffered']
    %14 = vsyncpa [#allocation5], 0
    %15 = vsyncpa [#allocation6], 0
    // Predicated region
    $region2: #{tpu_custom_call.1} parent=1 // pred_check
      _
    $region3: #{tpu_custom_call.1} parent=1 // pred_check_branch
      %17 = sbr.rel (0) target = $region5
    $region4: #{tpu_custom_call.1} parent=1 // pred_region
      _
    $region5: #{tpu_custom_call.1} parent=1 // pred_fallthru
      _
    // Predicated region
    $region6: #{tpu_custom_call.1} parent=1 // pred_check
      _
    $region7: #{tpu_custom_call.1} parent=1 // pred_check_branch
      %19 = sbr.rel (0) target = $region9
    $region8: #{tpu_custom_call.1} parent=1 // pred_region
      _
    $region9: #{tpu_custom_call.1} parent=1 // pred_fallthru
      _
    // Predicated region
    $region10: #{tpu_custom_call.1} parent=1 // pred_check
      _
    $region11: #{tpu_custom_call.1} parent=1 // pred_check_branch
      %21 = sbr.rel (0) target = $region13
    $region12: #{tpu_custom_call.1} parent=1 // pred_region
      _
    $region13: #{tpu_custom_call.1} parent=1 // pred_fallthru
      _
    // Predicated region
    $region14: #{tpu_custom_call.1} parent=1 // pred_check
      _
    $region15: #{tpu_custom_call.1} parent=1 // pred_check_branch
      %23 = sbr.rel (0) target = $region17
    $region16: #{tpu_custom_call.1} parent=1 // pred_region
      _
    $region17: #{tpu_custom_call.1} parent=1 // pred_fallthru
      _
    // Predicated region
    $region18: #{tpu_custom_call.1} parent=1 // pred_check
      _
    $region19: #{tpu_custom_call.1} parent=1 // pred_check_branch
      %25 = sbr.rel (0) target = $region21
    $region20: #{tpu_custom_call.1} parent=1 // pred_region
      _
    $region21: #{tpu_custom_call.1} parent=1 // pred_fallthru
      _
    // Predicated region
    $region22: #{tpu_custom_call.1} parent=1 // pred_check
      _
    $region23: #{tpu_custom_call.1} parent=1 // pred_check_branch
      %27 = sbr.rel (0) target = $region25
    $region24: #{tpu_custom_call.1} parent=1 // pred_region
      _
    $region25: #{tpu_custom_call.1} parent=1 // pred_fallthru
      _
    // Predicated region
    $region26: #{tpu_custom_call.1} parent=1 // pred_check
      _
    $region27: #{tpu_custom_call.1} parent=1 // pred_check_branch
      %29 = sbr.rel (0) target = $region29
    $region28: #{tpu_custom_call.1} parent=1 // pred_region
      _
    $region29: #{tpu_custom_call.1} parent=1 // pred_fallthru
      _
    // Predicated region
    $region30: #{tpu_custom_call.1} parent=1 // pred_check
      _
    $region31: #{tpu_custom_call.1} parent=1 // pred_check_branch
      %31 = sbr.rel (0) target = $region33
    $region32: #{tpu_custom_call.1} parent=1 // pred_region
      %s33 = ssub.s32 256, 256
      %34 = vsyncadd [#allocation5], %s33
      %s35 = sshll.u32 [#allocation4], 4
      %s36 = int_to_ptr.vmem [resolvable:$true] %s35
      %41 = dma.hbm_to_vmem [thread:$0]  %s7, 256, %s36, [#allocation5], 64, 64, 4
    $region33: #{tpu_custom_call.1} parent=1 // pred_fallthru
      _
    // Predicated region
    $region34: #{tpu_custom_call.1} parent=1 // pred_check
      _
    $region35: #{tpu_custom_call.1} parent=1 // pred_check_branch
      %43 = sbr.rel (0) target = $region37
    $region36: #{tpu_custom_call.1} parent=1 // pred_region
      _
    $region37: #{tpu_custom_call.1} parent=1 // pred_fallthru
      _
    // Predicated region
    $region38: #{tpu_custom_call.1} parent=1 // pred_check
      _
    $region39: #{tpu_custom_call.1} parent=1 // pred_check_branch
      %45 = sbr.rel (0) target = $region41
    $region40: #{tpu_custom_call.1} parent=1 // pred_region
      %46 = dma.done [#allocation5], 256
    $region41: #{tpu_custom_call.1} parent=1 // pred_fallthru
      _
    %p48 = scmp.eq.s32.totalorder 0, 0
    // Predicated region
    $region42: #{tpu_custom_call.1} parent=1 // pred_check
      %p49 = pneg %p48
    $region43: #{tpu_custom_call.1} parent=1 // pred_check_branch
      %51 = sbr.rel (%p49) target = $region45
    $region44: #{tpu_custom_call.1} parent=1 // pred_region
      %v52 = vld [vmem:[%s0] sm:$0xff]
      %v53 = vld [vmem:[%s0 + $0x8] sm:$0xff]
      %v54 = vld [vmem:[%s1] sm:$0x1]
      %v55 = vld [vmem:[%s2] sm:$0x1]
      %vm56 = vcmask 261120
      %v57 = vsel %vm56, %v52, 0.0
      %58 = vadd.xlane.f32.xlu0 %v57
      %v59 = vpop.xlane.xlu0 %58
      %v60 = vsel %vm56, %v53, 0.0
      %61 = vadd.xlane.f32.xlu0 %v60
      %v62 = vpop.xlane.xlu0 %61
      %v63 = vrcp.pop 32.0
      %v64 = vmul.f32 %v59, %v63
      %v65 = vmul.f32 %v62, %v63
      %v66 = vsub.f32 %v52, %v64
      %v67 = vsub.f32 %v53, %v65
      %v68 = vmul.f32 %v66, %v66
      %v69 = vmul.f32 %v67, %v67
      %v70 = vsel %vm56, %v68, 0.0
      %71 = vadd.xlane.f32.xlu0 %v70
      %v72 = vpop.xlane.xlu0 %71
      %v73 = vsel %vm56, %v69, 0.0
      %74 = vadd.xlane.f32.xlu0 %v73
      %v75 = vpop.xlane.xlu0 %74
      %v76 = vmul.f32 %v72, %v63
      %v77 = vmul.f32 %v75, %v63
      %v78 = vadd.f32 %v76, 1e-05
      %v79 = vadd.f32 %v77, 1e-05
      %v80 = vrsqrt.pop %v78
      %v81 = vrsqrt.pop %v79
      %v82 = vmul.f32 %v66, %v80
      %v83 = vmul.f32 %v67, %v81
      %v85 = vlaneseq
      %v86 = vshrl.u32 %v85, 7
      %v87 = vsub.s32 0, %v86
      %v88 = vrot.slane %v54, %v87
      %v90 = vmul.f32 %v82, %v88
      %v91 = vmul.f32 %v83, %v88
      %v93 = vlaneseq
      %v94 = vshrl.u32 %v93, 7
      %v95 = vsub.s32 0, %v94
      %v96 = vrot.slane %v55, %v95
      %v98 = vadd.f32 %v90, %v96
      %v99 = vadd.f32 %v91, %v96
      %v100 = vpack.c.bf16 %v99, %v98
      %v101 = vld [vmem:[%s3] sm:$0xf]
      %v102 = vld [vmem:[%s3 + $0x4] sm:$0xf]
      %v103 = vld [vmem:[%s3 + $0x8] sm:$0xf]
      %v104 = vld [vmem:[%s3 + $0xc] sm:$0xf]
      %v109 = vunpack.c.l.b16 %v101
      %v110 = vunpack.c.l.b16 %v102
      %v111 = vunpack.c.l.b16 %v103
      %v112 = vunpack.c.l.b16 %v104
      %v113 = vpack.c.b16 %v110, %v109
      %v114 = vpack.c.b16 %v112, %v111
      %v118 = vsel %vm56, %v100, 0
      %120 = vmatprep.subr.bf16.mxu0 0
      %121 = vmatpush1.bf16.msra.mxu0 %v113
      %122 = vmatprep.subr.bf16.mxu0 0
      %123 = vmatpush1.bf16.msra.mxu0 %v114
      %124 = vmatprep.subr.bf16.mxu0 0
      %125 = vmatpush1.bf16.msra.mxu0 0
      %126 = vmatprep.subr.bf16.mxu0 0
      %127 = vmatpush1.bf16.msra.mxu0 0
      %128 = vmatprep.subr.bf16.mxu0 0
      %129 = vmatpush1.bf16.msra.mxu0 0
      %130 = vmatprep.subr.bf16.mxu0 0
      %131 = vmatpush1.bf16.msra.mxu0 0
      %132 = vmatprep.subr.bf16.mxu0 0
      %133 = vmatpush1.bf16.msra.mxu0 0
      %134 = vmatprep.subr.bf16.mxu0 0
      %135 = vmatpush1.bf16.msra.mxu0 0
      %136 = vmatprep.subr.bf16.mxu0 0
      %137 = vmatpush1.bf16.msra.mxu0 0
      %138 = vmatprep.subr.bf16.mxu0 0
      %139 = vmatpush1.bf16.msra.mxu0 0
      %140 = vmatprep.subr.bf16.mxu0 0
      %141 = vmatpush1.bf16.msra.mxu0 0
      %142 = vmatprep.subr.bf16.mxu0 0
      %143 = vmatpush1.bf16.msra.mxu0 0
      %144 = vmatprep.subr.bf16.mxu0 0
      %145 = vmatpush1.bf16.msra.mxu0 0
      %146 = vmatprep.subr.bf16.mxu0 0
      %147 = vmatpush1.bf16.msra.mxu0 0
      %148 = vmatprep.subr.bf16.mxu0 0
      %149 = vmatpush1.bf16.msra.mxu0 0
      %150 = vmatprep.subr.bf16.mxu0 0
      %151 = vmatpush1.bf16.msra.mxu0 0
      %152 = vmatprep.mubr.bf16.mxu0 0
      %153 = vmatmul.mubr.bf16.gmra.mrb[0].mxu0 %v118
      %v154 = vpop.f32.mrb[0].mxu0
      %v155 = vadd.f32 0.0, %v154
      %v156 = vpop.f32.mrb[0].mxu0
      %v157 = vpop.f32.mrb[0].mxu0
      %v158 = vadd.f32 0.0, %v157
      %v159 = vpop.f32.mrb[0].mxu0
      %160 = vdwg.mxu0
      %v161 = vpack.c.bf16 %v158, %v155
      %163 = vrot.lane.b32.xlu0 %v161, 120
      %v164 = vpop.permute.xlu0 %163
      %165 = vrot.lane.b32.xlu0 %v161, 112
      %v166 = vpop.permute.xlu0 %165
      %167 = vrot.lane.b32.xlu0 %v161, 104
      %v168 = vpop.permute.xlu0 %167
      %v170 = vunpack.c.l.s4 1983009808
      %v171 = vunpack.c.0.s8 %v170
      %v172 = vlaneseq
      %v173 = vshrl.u32 %v172, 7
      %v174 = vsub.s32 %v171, %v173
      %v175 = vrot.slane %v161, %v174
      %v178 = vunpack.c.l.s4 1983009808
      %v179 = vunpack.c.0.s8 %v178
      %v180 = vlaneseq
      %v181 = vshrl.u32 %v180, 7
      %v182 = vsub.s32 %v179, %v181
      %v183 = vrot.slane %v166, %v182
      %v184 = vcombine.low %v175, %v183
      %v185 = vcombine.high %v175, %v183
      %v187 = vunpack.c.l.s4 1934713408
      %v188 = vunpack.c.0.s8 %v187
      %v189 = vlaneseq
      %v190 = vshrl.u32 %v189, 7
      %v191 = vsub.s32 %v188, %v190
      %v192 = vrot.slane %v184, %v191
      %v194 = vunpack.c.l.s4 1934713408
      %v195 = vunpack.c.0.s8 %v194
      %v196 = vlaneseq
      %v197 = vshrl.u32 %v196, 7
      %v198 = vsub.s32 %v195, %v197
      %v199 = vrot.slane %v185, %v198
      %v200 = vcombine.high %v192, 0
      %v201 = vcombine.high %v199, 0
      %v204 = vunpack.c.l.s4 1983009808
      %v205 = vunpack.c.0.s8 %v204
      %v206 = vlaneseq
      %v207 = vshrl.u32 %v206, 7
      %v208 = vsub.s32 %v205, %v207
      %v209 = vrot.slane %v164, %v208
      %v212 = vunpack.c.l.s4 1983009808
      %v213 = vunpack.c.0.s8 %v212
      %v214 = vlaneseq
      %v215 = vshrl.u32 %v214, 7
      %v216 = vsub.s32 %v213, %v215
      %v217 = vrot.slane %v168, %v216
      %v218 = vcombine.low %v209, %v217
      %v219 = vcombine.high %v209, %v217
      %v221 = vunpack.c.l.s4 1934713408
      %v222 = vunpack.c.0.s8 %v221
      %v223 = vlaneseq
      %v224 = vshrl.u32 %v223, 7
      %v225 = vsub.s32 %v222, %v224
      %v226 = vrot.slane %v218, %v225
      %v228 = vunpack.c.l.s4 1934713408
      %v229 = vunpack.c.0.s8 %v228
      %v230 = vlaneseq
      %v231 = vshrl.u32 %v230, 7
      %v232 = vsub.s32 %v229, %v231
      %v233 = vrot.slane %v219, %v232
      %v234 = vcombine.high %v226, 0
      %v235 = vcombine.high %v233, 0
      %v238 = vpack.i.b16 %v226, %v192
      %v240 = vshrl.u32 %v192, 16
      %v241 = vshrl.u32 %v226, 16
      %v242 = vpack.i.b16 %v241, %v240
      %v246 = vpack.i.b16 %v234, %v200
      %v248 = vshrl.u32 %v200, 16
      %v249 = vshrl.u32 %v234, 16
      %v250 = vpack.i.b16 %v249, %v248
      %v254 = vpack.i.b16 %v233, %v199
      %v256 = vshrl.u32 %v199, 16
      %v257 = vshrl.u32 %v233, 16
      %v258 = vpack.i.b16 %v257, %v256
      %v262 = vpack.i.b16 %v235, %v201
      %v264 = vshrl.u32 %v201, 16
      %v265 = vshrl.u32 %v235, 16
      %v266 = vpack.i.b16 %v265, %v264
      %v268 = vcombine.low %v238, %v254
      %v270 = vunpack.c.l.s4 1983009808
      %v271 = vunpack.c.0.s8 %v270
      %v272 = vlaneseq
      %v273 = vshrl.u32 %v272, 7
      %v274 = vsub.s32 %v271, %v273
      %v275 = vrot.slane %v268, %v274
      %v276 = vcombine.low %v246, %v262
      %v278 = vunpack.c.l.s4 1983009808
      %v279 = vunpack.c.0.s8 %v278
      %v280 = vlaneseq
      %v281 = vshrl.u32 %v280, 7
      %v282 = vsub.s32 %v279, %v281
      %v283 = vrot.slane %v276, %v282
      %v284 = vcombine.low %v275, %v283
      %v286 = vunpack.c.l.s4 1934713408
      %v287 = vunpack.c.0.s8 %v286
      %v288 = vlaneseq
      %v289 = vshrl.u32 %v288, 7
      %v290 = vsub.s32 %v287, %v289
      %v291 = vrot.slane %v284, %v290
      %v292 = vcombine.high %v291, 0
      %v293 = vcombine.low %v242, %v258
      %v295 = vunpack.c.l.s4 1983009808
      %v296 = vunpack.c.0.s8 %v295
      %v297 = vlaneseq
      %v298 = vshrl.u32 %v297, 7
      %v299 = vsub.s32 %v296, %v298
      %v300 = vrot.slane %v293, %v299
      %v301 = vcombine.low %v250, %v266
      %v303 = vunpack.c.l.s4 1983009808
      %v304 = vunpack.c.0.s8 %v303
      %v305 = vlaneseq
      %v306 = vshrl.u32 %v305, 7
      %v307 = vsub.s32 %v304, %v306
      %v308 = vrot.slane %v301, %v307
      %v309 = vcombine.low %v300, %v308
      %v311 = vunpack.c.l.s4 1934713408
      %v312 = vunpack.c.0.s8 %v311
      %v313 = vlaneseq
      %v314 = vshrl.u32 %v313, 7
      %v315 = vsub.s32 %v312, %v314
      %v316 = vrot.slane %v309, %v315
      %v317 = vcombine.high %v316, 0
      %v320 = vpack.i.b16 %v316, %v291
      %v321 = vshrl.u32 %v291, 16
      %v322 = vshrl.u32 %v316, 16
      %v323 = vpack.i.b16 %v322, %v321
      %v326 = vpack.i.b16 %v317, %v292
      %v327 = vshrl.u32 %v292, 16
      %v328 = vshrl.u32 %v317, 16
      %v329 = vpack.i.b16 %v328, %v327
      %330 = vrot.lane.b32.xlu0 %v161, 96
      %v331 = vpop.permute.xlu0 %330
      %332 = vrot.lane.b32.xlu0 %v164, 96
      %v333 = vpop.permute.xlu0 %332
      %334 = vrot.lane.b32.xlu0 %v166, 96
      %v335 = vpop.permute.xlu0 %334
      %336 = vrot.lane.b32.xlu0 %v168, 96
      %v337 = vpop.permute.xlu0 %336
      %v340 = vunpack.c.l.s4 1983009808
      %v341 = vunpack.c.0.s8 %v340
      %v342 = vlaneseq
      %v343 = vshrl.u32 %v342, 7
      %v344 = vsub.s32 %v341, %v343
      %v345 = vrot.slane %v331, %v344
      %v348 = vunpack.c.l.s4 1983009808
      %v349 = vunpack.c.0.s8 %v348
      %v350 = vlaneseq
      %v351 = vshrl.u32 %v350, 7
      %v352 = vsub.s32 %v349, %v351
      %v353 = vrot.slane %v335, %v352
      %v354 = vcombine.low %v345, %v353
      %v355 = vcombine.high %v345, %v353
      %v357 = vunpack.c.l.s4 1934713408
      %v358 = vunpack.c.0.s8 %v357
      %v359 = vlaneseq
      %v360 = vshrl.u32 %v359, 7
      %v361 = vsub.s32 %v358, %v360
      %v362 = vrot.slane %v354, %v361
      %v364 = vunpack.c.l.s4 1934713408
      %v365 = vunpack.c.0.s8 %v364
      %v366 = vlaneseq
      %v367 = vshrl.u32 %v366, 7
      %v368 = vsub.s32 %v365, %v367
      %v369 = vrot.slane %v355, %v368
      %v370 = vcombine.high %v362, 0
      %v371 = vcombine.high %v369, 0
      %v374 = vunpack.c.l.s4 1983009808
      %v375 = vunpack.c.0.s8 %v374
      %v376 = vlaneseq
      %v377 = vshrl.u32 %v376, 7
      %v378 = vsub.s32 %v375, %v377
      %v379 = vrot.slane %v333, %v378
      %v382 = vunpack.c.l.s4 1983009808
      %v383 = vunpack.c.0.s8 %v382
      %v384 = vlaneseq
      %v385 = vshrl.u32 %v384, 7
      %v386 = vsub.s32 %v383, %v385
      %v387 = vrot.slane %v337, %v386
      %v388 = vcombine.low %v379, %v387
      %v389 = vcombine.high %v379, %v387
      %v391 = vunpack.c.l.s4 1934713408
      %v392 = vunpack.c.0.s8 %v391
      %v393 = vlaneseq
      %v394 = vshrl.u32 %v393, 7
      %v395 = vsub.s32 %v392, %v394
      %v396 = vrot.slane %v388, %v395
      %v398 = vunpack.c.l.s4 1934713408
      %v399 = vunpack.c.0.s8 %v398
      %v400 = vlaneseq
      %v401 = vshrl.u32 %v400, 7
      %v402 = vsub.s32 %v399, %v401
      %v403 = vrot.slane %v389, %v402
      %v404 = vcombine.high %v396, 0
      %v405 = vcombine.high %v403, 0
      %v408 = vpack.i.b16 %v396, %v362
      %v410 = vshrl.u32 %v362, 16
      %v411 = vshrl.u32 %v396, 16
      %v412 = vpack.i.b16 %v411, %v410
      %v416 = vpack.i.b16 %v404, %v370
      %v418 = vshrl.u32 %v370, 16
      %v419 = vshrl.u32 %v404, 16
      %v420 = vpack.i.b16 %v419, %v418
      %v424 = vpack.i.b16 %v403, %v369
      %v426 = vshrl.u32 %v369, 16
      %v427 = vshrl.u32 %v403, 16
      %v428 = vpack.i.b16 %v427, %v426
      %v432 = vpack.i.b16 %v405, %v371
      %v434 = vshrl.u32 %v371, 16
      %v435 = vshrl.u32 %v405, 16
      %v436 = vpack.i.b16 %v435, %v434
      %v438 = vcombine.low %v408, %v424
      %v440 = vunpack.c.l.s4 1983009808
      %v441 = vunpack.c.0.s8 %v440
      %v442 = vlaneseq
      %v443 = vshrl.u32 %v442, 7
      %v444 = vsub.s32 %v441, %v443
      %v445 = vrot.slane %v438, %v444
      %v446 = vcombine.low %v416, %v432
      %v448 = vunpack.c.l.s4 1983009808
      %v449 = vunpack.c.0.s8 %v448
      %v450 = vlaneseq
      %v451 = vshrl.u32 %v450, 7
      %v452 = vsub.s32 %v449, %v451
      %v453 = vrot.slane %v446, %v452
      %v454 = vcombine.low %v445, %v453
      %v456 = vunpack.c.l.s4 1934713408
      %v457 = vunpack.c.0.s8 %v456
      %v458 = vlaneseq
      %v459 = vshrl.u32 %v458, 7
      %v460 = vsub.s32 %v457, %v459
      %v461 = vrot.slane %v454, %v460
      %v462 = vcombine.high %v461, 0
      %v463 = vcombine.low %v412, %v428
      %v465 = vunpack.c.l.s4 1983009808
      %v466 = vunpack.c.0.s8 %v465
      %v467 = vlaneseq
      %v468 = vshrl.u32 %v467, 7
      %v469 = vsub.s32 %v466, %v468
      %v470 = vrot.slane %v463, %v469
      %v471 = vcombine.low %v420, %v436
      %v473 = vunpack.c.l.s4 1983009808
      %v474 = vunpack.c.0.s8 %v473
      %v475 = vlaneseq
      %v476 = vshrl.u32 %v475, 7
      %v477 = vsub.s32 %v474, %v476
      %v478 = vrot.slane %v471, %v477
      %v479 = vcombine.low %v470, %v478
      %v481 = vunpack.c.l.s4 1934713408
      %v482 = vunpack.c.0.s8 %v481
      %v483 = vlaneseq
      %v484 = vshrl.u32 %v483, 7
      %v485 = vsub.s32 %v482, %v484
      %v486 = vrot.slane %v479, %v485
      %v487 = vcombine.high %v486, 0
      %v490 = vpack.i.b16 %v486, %v461
      %v491 = vshrl.u32 %v461, 16
      %v492 = vshrl.u32 %v486, 16
      %v493 = vpack.i.b16 %v492, %v491
      %v496 = vpack.i.b16 %v487, %v462
      %v497 = vshrl.u32 %v462, 16
      %v498 = vshrl.u32 %v487, 16
      %v499 = vpack.i.b16 %v498, %v497
      %500 = vrot.lane.b32.xlu0 %v161, 64
      %v501 = vpop.permute.xlu0 %500
      %502 = vrot.lane.b32.xlu0 %v164, 64
      %v503 = vpop.permute.xlu0 %502
      %504 = vrot.lane.b32.xlu0 %v166, 64
      %v505 = vpop.permute.xlu0 %504
      %506 = vrot.lane.b32.xlu0 %v168, 64
      %v507 = vpop.permute.xlu0 %506
      %v510 = vunpack.c.l.s4 1983009808
      %v511 = vunpack.c.0.s8 %v510
      %v512 = vlaneseq
      %v513 = vshrl.u32 %v512, 7
      %v514 = vsub.s32 %v511, %v513
      %v515 = vrot.slane %v501, %v514
      %v518 = vunpack.c.l.s4 1983009808
      %v519 = vunpack.c.0.s8 %v518
      %v520 = vlaneseq
      %v521 = vshrl.u32 %v520, 7
      %v522 = vsub.s32 %v519, %v521
      %v523 = vrot.slane %v505, %v522
      %v524 = vcombine.low %v515, %v523
      %v525 = vcombine.high %v515, %v523
      %v527 = vunpack.c.l.s4 1934713408
      %v528 = vunpack.c.0.s8 %v527
      %v529 = vlaneseq
      %v530 = vshrl.u32 %v529, 7
      %v531 = vsub.s32 %v528, %v530
      %v532 = vrot.slane %v524, %v531
      %v534 = vunpack.c.l.s4 1934713408
      %v535 = vunpack.c.0.s8 %v534
      %v536 = vlaneseq
      %v537 = vshrl.u32 %v536, 7
      %v538 = vsub.s32 %v535, %v537
      %v539 = vrot.slane %v525, %v538
      %v540 = vcombine.high %v532, 0
      %v541 = vcombine.high %v539, 0
      %v544 = vunpack.c.l.s4 1983009808
      %v545 = vunpack.c.0.s8 %v544
      %v546 = vlaneseq
      %v547 = vshrl.u32 %v546, 7
      %v548 = vsub.s32 %v545, %v547
      %v549 = vrot.slane %v503, %v548
      %v552 = vunpack.c.l.s4 1983009808
      %v553 = vunpack.c.0.s8 %v552
      %v554 = vlaneseq
      %v555 = vshrl.u32 %v554, 7
      %v556 = vsub.s32 %v553, %v555
      %v557 = vrot.slane %v507, %v556
      %v558 = vcombine.low %v549, %v557
      %v559 = vcombine.high %v549, %v557
      %v561 = vunpack.c.l.s4 1934713408
      %v562 = vunpack.c.0.s8 %v561
      %v563 = vlaneseq
      %v564 = vshrl.u32 %v563, 7
      %v565 = vsub.s32 %v562, %v564
      %v566 = vrot.slane %v558, %v565
      %v568 = vunpack.c.l.s4 1934713408
      %v569 = vunpack.c.0.s8 %v568
      %v570 = vlaneseq
      %v571 = vshrl.u32 %v570, 7
      %v572 = vsub.s32 %v569, %v571
      %v573 = vrot.slane %v559, %v572
      %v574 = vcombine.high %v566, 0
      %v575 = vcombine.high %v573, 0
      %v578 = vpack.i.b16 %v566, %v532
      %v580 = vshrl.u32 %v532, 16
      %v581 = vshrl.u32 %v566, 16
      %v582 = vpack.i.b16 %v581, %v580
      %v586 = vpack.i.b16 %v574, %v540
      %v588 = vshrl.u32 %v540, 16
      %v589 = vshrl.u32 %v574, 16
      %v590 = vpack.i.b16 %v589, %v588
      %v594 = vpack.i.b16 %v573, %v539
      %v596 = vshrl.u32 %v539, 16
      %v597 = vshrl.u32 %v573, 16
      %v598 = vpack.i.b16 %v597, %v596
      %v602 = vpack.i.b16 %v575, %v541
      %v604 = vshrl.u32 %v541, 16
      %v605 = vshrl.u32 %v575, 16
      %v606 = vpack.i.b16 %v605, %v604
      %v608 = vcombine.low %v578, %v594
      %v610 = vunpack.c.l.s4 1983009808
      %v611 = vunpack.c.0.s8 %v610
      %v612 = vlaneseq
      %v613 = vshrl.u32 %v612, 7
      %v614 = vsub.s32 %v611, %v613
      %v615 = vrot.slane %v608, %v614
      %v616 = vcombine.low %v586, %v602
      %v618 = vunpack.c.l.s4 1983009808
      %v619 = vunpack.c.0.s8 %v618
      %v620 = vlaneseq
      %v621 = vshrl.u32 %v620, 7
      %v622 = vsub.s32 %v619, %v621
      %v623 = vrot.slane %v616, %v622
      %v624 = vcombine.low %v615, %v623
      %v626 = vunpack.c.l.s4 1934713408
      %v627 = vunpack.c.0.s8 %v626
      %v628 = vlaneseq
      %v629 = vshrl.u32 %v628, 7
      %v630 = vsub.s32 %v627, %v629
      %v631 = vrot.slane %v624, %v630
      %v632 = vcombine.high %v631, 0
      %v633 = vcombine.low %v582, %v598
      %v635 = vunpack.c.l.s4 1983009808
      %v636 = vunpack.c.0.s8 %v635
      %v637 = vlaneseq
      %v638 = vshrl.u32 %v637, 7
      %v639 = vsub.s32 %v636, %v638
      %v640 = vrot.slane %v633, %v639
      %v641 = vcombine.low %v590, %v606
      %v643 = vunpack.c.l.s4 1983009808
      %v644 = vunpack.c.0.s8 %v643
      %v645 = vlaneseq
      %v646 = vshrl.u32 %v645, 7
      %v647 = vsub.s32 %v644, %v646
      %v648 = vrot.slane %v641, %v647
      %v649 = vcombine.low %v640, %v648
      %v651 = vunpack.c.l.s4 1934713408
      %v652 = vunpack.c.0.s8 %v651
      %v653 = vlaneseq
      %v654 = vshrl.u32 %v653, 7
      %v655 = vsub.s32 %v652, %v654
      %v656 = vrot.slane %v649, %v655
      %v657 = vcombine.high %v656, 0
      %v660 = vpack.i.b16 %v656, %v631
      %v661 = vshrl.u32 %v631, 16
      %v662 = vshrl.u32 %v656, 16
      %v663 = vpack.i.b16 %v662, %v661
      %v666 = vpack.i.b16 %v657, %v632
      %v667 = vshrl.u32 %v632, 16
      %v668 = vshrl.u32 %v657, 16
      %v669 = vpack.i.b16 %v668, %v667
      %vm670 = vcmask 64512
      %v672 = vsel %vm670, %v320, 0
      %v675 = vsel %vm670, %v490, 0
      %677 = vmatprep.subr.bf16.mxu0 0
      %678 = vmatpush1.bf16.xpose.msra.mxu0 %v675
      %679 = vmatprep.subr.bf16.mxu0 0
      %680 = vmatpush1.bf16.xpose.msra.mxu0 0
      %681 = vmatprep.subr.bf16.mxu0 0
      %682 = vmatpush1.bf16.xpose.msra.mxu0 0
      %683 = vmatprep.subr.bf16.mxu0 0
      %684 = vmatpush1.bf16.xpose.msra.mxu0 0
      %685 = vmatprep.subr.bf16.mxu0 0
      %686 = vmatpush1.bf16.xpose.msra.mxu0 0
      %687 = vmatprep.subr.bf16.mxu0 0
      %688 = vmatpush1.bf16.xpose.msra.mxu0 0
      %689 = vmatprep.subr.bf16.mxu0 0
      %690 = vmatpush1.bf16.xpose.msra.mxu0 0
      %691 = vmatprep.subr.bf16.mxu0 0
      %692 = vmatpush1.bf16.xpose.msra.mxu0 0
      %693 = vmatprep.subr.bf16.mxu0 0
      %694 = vmatpush1.bf16.xpose.msra.mxu0 0
      %695 = vmatprep.subr.bf16.mxu0 0
      %696 = vmatpush1.bf16.xpose.msra.mxu0 0
      %697 = vmatprep.subr.bf16.mxu0 0
      %698 = vmatpush1.bf16.xpose.msra.mxu0 0
      %699 = vmatprep.subr.bf16.mxu0 0
      %700 = vmatpush1.bf16.xpose.msra.mxu0 0
      %701 = vmatprep.subr.bf16.mxu0 0
      %702 = vmatpush1.bf16.xpose.msra.mxu0 0
      %703 = vmatprep.subr.bf16.mxu0 0
      %704 = vmatpush1.bf16.xpose.msra.mxu0 0
      %705 = vmatprep.subr.bf16.mxu0 0
      %706 = vmatpush1.bf16.xpose.msra.mxu0 0
      %707 = vmatprep.subr.bf16.mxu0 0
      %708 = vmatpush1.bf16.xpose.msra.mxu0 0
      %709 = vmatprep.mubr.bf16.mxu0 0
      %710 = vmatmul.mubr.bf16.gmra.mrb[0].mxu0 %v672
      %v711 = vpop.f32.mrb[0].mxu0
      %v712 = vadd.f32 0.0, %v711
      %v713 = vpop.f32.mrb[0].mxu0
      %v714 = vpop.f32.mrb[0].mxu0
      %v715 = vpop.f32.mrb[0].mxu0
      %716 = vdwg.mxu0
      %v718 = vsel %vm670, %v323, 0
      %v721 = vsel %vm670, %v493, 0
      %723 = vmatprep.subr.bf16.mxu0 0
      %724 = vmatpush1.bf16.xpose.msra.mxu0 %v721
      %725 = vmatprep.subr.bf16.mxu0 0
      %726 = vmatpush1.bf16.xpose.msra.mxu0 0
      %727 = vmatprep.subr.bf16.mxu0 0
      %728 = vmatpush1.bf16.xpose.msra.mxu0 0
      %729 = vmatprep.subr.bf16.mxu0 0
      %730 = vmatpush1.bf16.xpose.msra.mxu0 0
      %731 = vmatprep.subr.bf16.mxu0 0
      %732 = vmatpush1.bf16.xpose.msra.mxu0 0
      %733 = vmatprep.subr.bf16.mxu0 0
      %734 = vmatpush1.bf16.xpose.msra.mxu0 0
      %735 = vmatprep.subr.bf16.mxu0 0
      %736 = vmatpush1.bf16.xpose.msra.mxu0 0
      %737 = vmatprep.subr.bf16.mxu0 0
      %738 = vmatpush1.bf16.xpose.msra.mxu0 0
      %739 = vmatprep.subr.bf16.mxu0 0
      %740 = vmatpush1.bf16.xpose.msra.mxu0 0
      %741 = vmatprep.subr.bf16.mxu0 0
      %742 = vmatpush1.bf16.xpose.msra.mxu0 0
      %743 = vmatprep.subr.bf16.mxu0 0
      %744 = vmatpush1.bf16.xpose.msra.mxu0 0
      %745 = vmatprep.subr.bf16.mxu0 0
      %746 = vmatpush1.bf16.xpose.msra.mxu0 0
      %747 = vmatprep.subr.bf16.mxu0 0
      %748 = vmatpush1.bf16.xpose.msra.mxu0 0
      %749 = vmatprep.subr.bf16.mxu0 0
      %750 = vmatpush1.bf16.xpose.msra.mxu0 0
      %751 = vmatprep.subr.bf16.mxu0 0
      %752 = vmatpush1.bf16.xpose.msra.mxu0 0
      %753 = vmatprep.subr.bf16.mxu0 0
      %754 = vmatpush1.bf16.xpose.msra.mxu0 0
      %755 = vmatprep.mubr.bf16.mxu0 0
      %756 = vmatmul.mubr.bf16.gmra.mrb[0].mxu0 %v718
      %v757 = vpop.f32.mrb[0].mxu0
      %v758 = vadd.f32 0.0, %v757
      %v759 = vpop.f32.mrb[0].mxu0
      %v760 = vpop.f32.mrb[0].mxu0
      %v761 = vpop.f32.mrb[0].mxu0
      %762 = vdwg.mxu0
      %v764 = vsel %vm670, %v326, 0
      %v767 = vsel %vm670, %v496, 0
      %769 = vmatprep.subr.bf16.mxu0 0
      %770 = vmatpush1.bf16.xpose.msra.mxu0 %v767
      %771 = vmatprep.subr.bf16.mxu0 0
      %772 = vmatpush1.bf16.xpose.msra.mxu0 0
      %773 = vmatprep.subr.bf16.mxu0 0
      %774 = vmatpush1.bf16.xpose.msra.mxu0 0
      %775 = vmatprep.subr.bf16.mxu0 0
      %776 = vmatpush1.bf16.xpose.msra.mxu0 0
      %777 = vmatprep.subr.bf16.mxu0 0
      %778 = vmatpush1.bf16.xpose.msra.mxu0 0
      %779 = vmatprep.subr.bf16.mxu0 0
      %780 = vmatpush1.bf16.xpose.msra.mxu0 0
      %781 = vmatprep.subr.bf16.mxu0 0
      %782 = vmatpush1.bf16.xpose.msra.mxu0 0
      %783 = vmatprep.subr.bf16.mxu0 0
      %784 = vmatpush1.bf16.xpose.msra.mxu0 0
      %785 = vmatprep.subr.bf16.mxu0 0
      %786 = vmatpush1.bf16.xpose.msra.mxu0 0
      %787 = vmatprep.subr.bf16.mxu0 0
      %788 = vmatpush1.bf16.xpose.msra.mxu0 0
      %789 = vmatprep.subr.bf16.mxu0 0
      %790 = vmatpush1.bf16.xpose.msra.mxu0 0
      %791 = vmatprep.subr.bf16.mxu0 0
      %792 = vmatpush1.bf16.xpose.msra.mxu0 0
      %793 = vmatprep.subr.bf16.mxu0 0
      %794 = vmatpush1.bf16.xpose.msra.mxu0 0
      %795 = vmatprep.subr.bf16.mxu0 0
      %796 = vmatpush1.bf16.xpose.msra.mxu0 0
      %797 = vmatprep.subr.bf16.mxu0 0
      %798 = vmatpush1.bf16.xpose.msra.mxu0 0
      %799 = vmatprep.subr.bf16.mxu0 0
      %800 = vmatpush1.bf16.xpose.msra.mxu0 0
      %801 = vmatprep.mubr.bf16.mxu0 0
      %802 = vmatmul.mubr.bf16.gmra.mrb[0].mxu0 %v764
      %v803 = vpop.f32.mrb[0].mxu0
      %v804 = vadd.f32 0.0, %v803
      %v805 = vpop.f32.mrb[0].mxu0
      %v806 = vpop.f32.mrb[0].mxu0
      %v807 = vpop.f32.mrb[0].mxu0
      %808 = vdwg.mxu0
      %v810 = vsel %vm670, %v329, 0
      %v813 = vsel %vm670, %v499, 0
      %815 = vmatprep.subr.bf16.mxu0 0
      %816 = vmatpush1.bf16.xpose.msra.mxu0 %v813
      %817 = vmatprep.subr.bf16.mxu0 0
      %818 = vmatpush1.bf16.xpose.msra.mxu0 0
      %819 = vmatprep.subr.bf16.mxu0 0
      %820 = vmatpush1.bf16.xpose.msra.mxu0 0
      %821 = vmatprep.subr.bf16.mxu0 0
      %822 = vmatpush1.bf16.xpose.msra.mxu0 0
      %823 = vmatprep.subr.bf16.mxu0 0
      %824 = vmatpush1.bf16.xpose.msra.mxu0 0
      %825 = vmatprep.subr.bf16.mxu0 0
      %826 = vmatpush1.bf16.xpose.msra.mxu0 0
      %827 = vmatprep.subr.bf16.mxu0 0
      %828 = vmatpush1.bf16.xpose.msra.mxu0 0
      %829 = vmatprep.subr.bf16.mxu0 0
      %830 = vmatpush1.bf16.xpose.msra.mxu0 0
      %831 = vmatprep.subr.bf16.mxu0 0
      %832 = vmatpush1.bf16.xpose.msra.mxu0 0
      %833 = vmatprep.subr.bf16.mxu0 0
      %834 = vmatpush1.bf16.xpose.msra.mxu0 0
      %835 = vmatprep.subr.bf16.mxu0 0
      %836 = vmatpush1.bf16.xpose.msra.mxu0 0
      %837 = vmatprep.subr.bf16.mxu0 0
      %838 = vmatpush1.bf16.xpose.msra.mxu0 0
      %839 = vmatprep.subr.bf16.mxu0 0
      %840 = vmatpush1.bf16.xpose.msra.mxu0 0
      %841 = vmatprep.subr.bf16.mxu0 0
      %842 = vmatpush1.bf16.xpose.msra.mxu0 0
      %843 = vmatprep.subr.bf16.mxu0 0
      %844 = vmatpush1.bf16.xpose.msra.mxu0 0
      %845 = vmatprep.subr.bf16.mxu0 0
      %846 = vmatpush1.bf16.xpose.msra.mxu0 0
      %847 = vmatprep.mubr.bf16.mxu0 0
      %848 = vmatmul.mubr.bf16.gmra.mrb[0].mxu0 %v810
      %v849 = vpop.f32.mrb[0].mxu0
      %v850 = vadd.f32 0.0, %v849
      %v851 = vpop.f32.mrb[0].mxu0
      %v852 = vpop.f32.mrb[0].mxu0
      %v853 = vpop.f32.mrb[0].mxu0
      %854 = vdwg.mxu0
      %v855 = vsel %vm670, %v712, -inf
      %856 = vmax.xlane.f32.xlu0 %v855
      %v857 = vpop.xlane.xlu0 %856
      %v858 = vsel %vm670, %v758, -inf
      %859 = vmax.xlane.f32.xlu0 %v858
      %v860 = vpop.xlane.xlu0 %859
      %v861 = vsel %vm670, %v804, -inf
      %862 = vmax.xlane.f32.xlu0 %v861
      %v863 = vpop.xlane.xlu0 %862
      %v864 = vsel %vm670, %v850, -inf
      %865 = vmax.xlane.f32.xlu0 %v864
      %v866 = vpop.xlane.xlu0 %865
      %v867 = vsub.f32 %v712, %v857
      %v868 = vsub.f32 %v758, %v860
      %v869 = vsub.f32 %v804, %v863
      %v870 = vsub.f32 %v850, %v866
      %v871 = vmul.f32 %v867, 1.442695
      %v872 = vpow.pop %v871
      %v873 = vmul.f32 %v868, 1.442695
      %v874 = vpow.pop %v873
      %v875 = vmul.f32 %v869, 1.442695
      %v876 = vpow.pop %v875
      %v877 = vmul.f32 %v870, 1.442695
      %v878 = vpow.pop %v877
      %v879 = vsel %vm670, %v872, 0.0
      %880 = vadd.xlane.f32.xlu0 %v879
      %v881 = vpop.xlane.xlu0 %880
      %v882 = vsel %vm670, %v874, 0.0
      %883 = vadd.xlane.f32.xlu0 %v882
      %v884 = vpop.xlane.xlu0 %883
      %v885 = vsel %vm670, %v876, 0.0
      %886 = vadd.xlane.f32.xlu0 %v885
      %v887 = vpop.xlane.xlu0 %886
      %v888 = vsel %vm670, %v878, 0.0
      %889 = vadd.xlane.f32.xlu0 %v888
      %v890 = vpop.xlane.xlu0 %889
      %v891 = vpack.c.bf16 %v872, %v872
      %v892 = vpack.c.bf16 %v874, %v874
      %v893 = vpack.c.bf16 %v876, %v876
      %v894 = vpack.c.bf16 %v878, %v878
      %v896 = vsel %vm670, %v891, 0
      %vm898 = vcmask 1043456
      %v900 = vsel %vm898, %v660, 0
      %902 = vmatprep.subr.bf16.mxu0 0
      %903 = vmatpush1.bf16.msra.mxu0 %v900
      %904 = vmatprep.subr.bf16.mxu0 0
      %905 = vmatpush1.bf16.msra.mxu0 0
      %906 = vmatprep.subr.bf16.mxu0 0
      %907 = vmatpush1.bf16.msra.mxu0 0
      %908 = vmatprep.subr.bf16.mxu0 0
      %909 = vmatpush1.bf16.msra.mxu0 0
      %910 = vmatprep.subr.bf16.mxu0 0
      %911 = vmatpush1.bf16.msra.mxu0 0
      %912 = vmatprep.subr.bf16.mxu0 0
      %913 = vmatpush1.bf16.msra.mxu0 0
      %914 = vmatprep.subr.bf16.mxu0 0
      %915 = vmatpush1.bf16.msra.mxu0 0
      %916 = vmatprep.subr.bf16.mxu0 0
      %917 = vmatpush1.bf16.msra.mxu0 0
      %918 = vmatprep.subr.bf16.mxu0 0
      %919 = vmatpush1.bf16.msra.mxu0 0
      %920 = vmatprep.subr.bf16.mxu0 0
      %921 = vmatpush1.bf16.msra.mxu0 0
      %922 = vmatprep.subr.bf16.mxu0 0
      %923 = vmatpush1.bf16.msra.mxu0 0
      %924 = vmatprep.subr.bf16.mxu0 0
      %925 = vmatpush1.bf16.msra.mxu0 0
      %926 = vmatprep.subr.bf16.mxu0 0
      %927 = vmatpush1.bf16.msra.mxu0 0
      %928 = vmatprep.subr.bf16.mxu0 0
      %929 = vmatpush1.bf16.msra.mxu0 0
      %930 = vmatprep.subr.bf16.mxu0 0
      %931 = vmatpush1.bf16.msra.mxu0 0
      %932 = vmatprep.subr.bf16.mxu0 0
      %933 = vmatpush1.bf16.msra.mxu0 0
      %934 = vmatprep.mubr.bf16.mxu0 0
      %935 = vmatmul.mubr.bf16.gmra.mrb[0].mxu0 %v896
      %v936 = vpop.f32.mrb[0].mxu0
      %v937 = vadd.f32 0.0, %v936
      %v938 = vpop.f32.mrb[0].mxu0
      %v939 = vpop.f32.mrb[0].mxu0
      %v940 = vpop.f32.mrb[0].mxu0
      %941 = vdwg.mxu0
      %v943 = vsel %vm670, %v892, 0
      %v946 = vsel %vm898, %v663, 0
      %948 = vmatprep.subr.bf16.mxu0 0
      %949 = vmatpush1.bf16.msra.mxu0 %v946
      %950 = vmatprep.subr.bf16.mxu0 0
      %951 = vmatpush1.bf16.msra.mxu0 0
      %952 = vmatprep.subr.bf16.mxu0 0
      %953 = vmatpush1.bf16.msra.mxu0 0
      %954 = vmatprep.subr.bf16.mxu0 0
      %955 = vmatpush1.bf16.msra.mxu0 0
      %956 = vmatprep.subr.bf16.mxu0 0
      %957 = vmatpush1.bf16.msra.mxu0 0
      %958 = vmatprep.subr.bf16.mxu0 0
      %959 = vmatpush1.bf16.msra.mxu0 0
      %960 = vmatprep.subr.bf16.mxu0 0
      %961 = vmatpush1.bf16.msra.mxu0 0
      %962 = vmatprep.subr.bf16.mxu0 0
      %963 = vmatpush1.bf16.msra.mxu0 0
      %964 = vmatprep.subr.bf16.mxu0 0
      %965 = vmatpush1.bf16.msra.mxu0 0
      %966 = vmatprep.subr.bf16.mxu0 0
      %967 = vmatpush1.bf16.msra.mxu0 0
      %968 = vmatprep.subr.bf16.mxu0 0
      %969 = vmatpush1.bf16.msra.mxu0 0
      %970 = vmatprep.subr.bf16.mxu0 0
      %971 = vmatpush1.bf16.msra.mxu0 0
      %972 = vmatprep.subr.bf16.mxu0 0
      %973 = vmatpush1.bf16.msra.mxu0 0
      %974 = vmatprep.subr.bf16.mxu0 0
      %975 = vmatpush1.bf16.msra.mxu0 0
      %976 = vmatprep.subr.bf16.mxu0 0
      %977 = vmatpush1.bf16.msra.mxu0 0
      %978 = vmatprep.subr.bf16.mxu0 0
      %979 = vmatpush1.bf16.msra.mxu0 0
      %980 = vmatprep.mubr.bf16.mxu0 0
      %981 = vmatmul.mubr.bf16.gmra.mrb[0].mxu0 %v943
      %v982 = vpop.f32.mrb[0].mxu0
      %v983 = vadd.f32 0.0, %v982
      %v984 = vpop.f32.mrb[0].mxu0
      %v985 = vpop.f32.mrb[0].mxu0
      %v986 = vpop.f32.mrb[0].mxu0
      %987 = vdwg.mxu0
      %v989 = vsel %vm670, %v893, 0
      %v992 = vsel %vm898, %v666, 0
      %994 = vmatprep.subr.bf16.mxu0 0
      %995 = vmatpush1.bf16.msra.mxu0 %v992
      %996 = vmatprep.subr.bf16.mxu0 0
      %997 = vmatpush1.bf16.msra.mxu0 0
      %998 = vmatprep.subr.bf16.mxu0 0
      %999 = vmatpush1.bf16.msra.mxu0 0
      %1000 = vmatprep.subr.bf16.mxu0 0
      %1001 = vmatpush1.bf16.msra.mxu0 0
      %1002 = vmatprep.subr.bf16.mxu0 0
      %1003 = vmatpush1.bf16.msra.mxu0 0
      %1004 = vmatprep.subr.bf16.mxu0 0
      %1005 = vmatpush1.bf16.msra.mxu0 0
      %1006 = vmatprep.subr.bf16.mxu0 0
      %1007 = vmatpush1.bf16.msra.mxu0 0
      %1008 = vmatprep.subr.bf16.mxu0 0
      %1009 = vmatpush1.bf16.msra.mxu0 0
      %1010 = vmatprep.subr.bf16.mxu0 0
      %1011 = vmatpush1.bf16.msra.mxu0 0
      %1012 = vmatprep.subr.bf16.mxu0 0
      %1013 = vmatpush1.bf16.msra.mxu0 0
      %1014 = vmatprep.subr.bf16.mxu0 0
      %1015 = vmatpush1.bf16.msra.mxu0 0
      %1016 = vmatprep.subr.bf16.mxu0 0
      %1017 = vmatpush1.bf16.msra.mxu0 0
      %1018 = vmatprep.subr.bf16.mxu0 0
      %1019 = vmatpush1.bf16.msra.mxu0 0
      %1020 = vmatprep.subr.bf16.mxu0 0
      %1021 = vmatpush1.bf16.msra.mxu0 0
      %1022 = vmatprep.subr.bf16.mxu0 0
      %1023 = vmatpush1.bf16.msra.mxu0 0
      %1024 = vmatprep.subr.bf16.mxu0 0
      %1025 = vmatpush1.bf16.msra.mxu0 0
      %1026 = vmatprep.mubr.bf16.mxu0 0
      %1027 = vmatmul.mubr.bf16.gmra.mrb[0].mxu0 %v989
      %v1028 = vpop.f32.mrb[0].mxu0
      %v1029 = vadd.f32 0.0, %v1028
      %v1030 = vpop.f32.mrb[0].mxu0
      %v1031 = vpop.f32.mrb[0].mxu0
      %v1032 = vpop.f32.mrb[0].mxu0
      %1033 = vdwg.mxu0
      %v1035 = vsel %vm670, %v894, 0
      %v1038 = vsel %vm898, %v669, 0
      %1040 = vmatprep.subr.bf16.mxu0 0
      %1041 = vmatpush1.bf16.msra.mxu0 %v1038
      %1042 = vmatprep.subr.bf16.mxu0 0
      %1043 = vmatpush1.bf16.msra.mxu0 0
      %1044 = vmatprep.subr.bf16.mxu0 0
      %1045 = vmatpush1.bf16.msra.mxu0 0
      %1046 = vmatprep.subr.bf16.mxu0 0
      %1047 = vmatpush1.bf16.msra.mxu0 0
      %1048 = vmatprep.subr.bf16.mxu0 0
      %1049 = vmatpush1.bf16.msra.mxu0 0
      %1050 = vmatprep.subr.bf16.mxu0 0
      %1051 = vmatpush1.bf16.msra.mxu0 0
      %1052 = vmatprep.subr.bf16.mxu0 0
      %1053 = vmatpush1.bf16.msra.mxu0 0
      %1054 = vmatprep.subr.bf16.mxu0 0
      %1055 = vmatpush1.bf16.msra.mxu0 0
      %1056 = vmatprep.subr.bf16.mxu0 0
      %1057 = vmatpush1.bf16.msra.mxu0 0
      %1058 = vmatprep.subr.bf16.mxu0 0
      %1059 = vmatpush1.bf16.msra.mxu0 0
      %1060 = vmatprep.subr.bf16.mxu0 0
      %1061 = vmatpush1.bf16.msra.mxu0 0
      %1062 = vmatprep.subr.bf16.mxu0 0
      %1063 = vmatpush1.bf16.msra.mxu0 0
      %1064 = vmatprep.subr.bf16.mxu0 0
      %1065 = vmatpush1.bf16.msra.mxu0 0
      %1066 = vmatprep.subr.bf16.mxu0 0
      %1067 = vmatpush1.bf16.msra.mxu0 0
      %1068 = vmatprep.subr.bf16.mxu0 0
      %1069 = vmatpush1.bf16.msra.mxu0 0
      %1070 = vmatprep.subr.bf16.mxu0 0
      %1071 = vmatpush1.bf16.msra.mxu0 0
      %1072 = vmatprep.mubr.bf16.mxu0 0
      %1073 = vmatmul.mubr.bf16.gmra.mrb[0].mxu0 %v1035
      %v1074 = vpop.f32.mrb[0].mxu0
      %v1075 = vadd.f32 0.0, %v1074
      %v1076 = vpop.f32.mrb[0].mxu0
      %v1077 = vpop.f32.mrb[0].mxu0
      %v1078 = vpop.f32.mrb[0].mxu0
      %1079 = vdwg.mxu0
      %v1080 = vrcp.pop %v881
      %v1081 = vrcp.pop %v884
      %v1082 = vrcp.pop %v887
      %v1083 = vrcp.pop %v890
      %v1084 = vmul.f32 %v937, %v1080
      %v1085 = vmul.f32 %v983, %v1081
      %v1086 = vmul.f32 %v1029, %v1082
      %v1087 = vmul.f32 %v1075, %v1083
      %v1088 = vcombine.low %v1084, %v1086
      %v1089 = vcombine.high %v1084, %v1086
      %v1091 = vunpack.c.l.s4 1983009808
      %v1092 = vunpack.c.0.s8 %v1091
      %v1093 = vlaneseq
      %v1094 = vshrl.u32 %v1093, 7
      %v1095 = vsub.s32 %v1092, %v1094
      %v1096 = vrot.slane %v1088, %v1095
      %v1098 = vunpack.c.l.s4 1983009808
      %v1099 = vunpack.c.0.s8 %v1098
      %v1100 = vlaneseq
      %v1101 = vshrl.u32 %v1100, 7
      %v1102 = vsub.s32 %v1099, %v1101
      %v1103 = vrot.slane %v1089, %v1102
      %v1104 = vcombine.low %v1085, %v1087
      %v1105 = vcombine.high %v1085, %v1087
      %v1107 = vunpack.c.l.s4 1983009808
      %v1108 = vunpack.c.0.s8 %v1107
      %v1109 = vlaneseq
      %v1110 = vshrl.u32 %v1109, 7
      %v1111 = vsub.s32 %v1108, %v1110
      %v1112 = vrot.slane %v1104, %v1111
      %v1114 = vunpack.c.l.s4 1983009808
      %v1115 = vunpack.c.0.s8 %v1114
      %v1116 = vlaneseq
      %v1117 = vshrl.u32 %v1116, 7
      %v1118 = vsub.s32 %v1115, %v1117
      %v1119 = vrot.slane %v1105, %v1118
      %v1120 = vcombine.low %v1096, %v1112
      %v1121 = vcombine.high %v1096, %v1112
      %v1123 = vunpack.c.l.s4 1934713408
      %v1124 = vunpack.c.0.s8 %v1123
      %v1125 = vlaneseq
      %v1126 = vshrl.u32 %v1125, 7
      %v1127 = vsub.s32 %v1124, %v1126
      %v1128 = vrot.slane %v1120, %v1127
      %v1130 = vunpack.c.l.s4 1934713408
      %v1131 = vunpack.c.0.s8 %v1130
      %v1132 = vlaneseq
      %v1133 = vshrl.u32 %v1132, 7
      %v1134 = vsub.s32 %v1131, %v1133
      %v1135 = vrot.slane %v1121, %v1134
      %v1136 = vcombine.low %v1103, %v1119
      %v1137 = vcombine.high %v1103, %v1119
      %v1139 = vunpack.c.l.s4 1934713408
      %v1140 = vunpack.c.0.s8 %v1139
      %v1141 = vlaneseq
      %v1142 = vshrl.u32 %v1141, 7
      %v1143 = vsub.s32 %v1140, %v1142
      %v1144 = vrot.slane %v1136, %v1143
      %v1146 = vunpack.c.l.s4 1934713408
      %v1147 = vunpack.c.0.s8 %v1146
      %v1148 = vlaneseq
      %v1149 = vshrl.u32 %v1148, 7
      %v1150 = vsub.s32 %v1147, %v1149
      %v1151 = vrot.slane %v1137, %v1150
      %v1152 = vcombine.high %v1128, 0.0
      %v1153 = vcombine.high %v1135, 0.0
      %v1154 = vcombine.high %v1144, 0.0
      %v1155 = vcombine.high %v1151, 0.0
      %v1156 = vcombine.low %v1128, %v1135
      %v1158 = vunpack.c.l.s4 1983009808
      %v1159 = vunpack.c.0.s8 %v1158
      %v1160 = vlaneseq
      %v1161 = vshrl.u32 %v1160, 7
      %v1162 = vsub.s32 %v1159, %v1161
      %v1163 = vrot.slane %v1156, %v1162
      %v1164 = vcombine.low %v1152, %v1153
      %v1166 = vunpack.c.l.s4 1983009808
      %v1167 = vunpack.c.0.s8 %v1166
      %v1168 = vlaneseq
      %v1169 = vshrl.u32 %v1168, 7
      %v1170 = vsub.s32 %v1167, %v1169
      %v1171 = vrot.slane %v1164, %v1170
      %v1172 = vcombine.low %v1144, %v1151
      %v1174 = vunpack.c.l.s4 1983009808
      %v1175 = vunpack.c.0.s8 %v1174
      %v1176 = vlaneseq
      %v1177 = vshrl.u32 %v1176, 7
      %v1178 = vsub.s32 %v1175, %v1177
      %v1179 = vrot.slane %v1172, %v1178
      %v1180 = vcombine.low %v1154, %v1155
      %v1182 = vunpack.c.l.s4 1983009808
      %v1183 = vunpack.c.0.s8 %v1182
      %v1184 = vlaneseq
      %v1185 = vshrl.u32 %v1184, 7
      %v1186 = vsub.s32 %v1183, %v1185
      %v1187 = vrot.slane %v1180, %v1186
      %v1188 = vcombine.low %v1163, %v1171
      %v1189 = vcombine.high %v1163, %v1171
      %v1191 = vunpack.c.l.s4 1934713408
      %v1192 = vunpack.c.0.s8 %v1191
      %v1193 = vlaneseq
      %v1194 = vshrl.u32 %v1193, 7
      %v1195 = vsub.s32 %v1192, %v1194
      %v1196 = vrot.slane %v1188, %v1195
      %v1198 = vunpack.c.l.s4 1934713408
      %v1199 = vunpack.c.0.s8 %v1198
      %v1200 = vlaneseq
      %v1201 = vshrl.u32 %v1200, 7
      %v1202 = vsub.s32 %v1199, %v1201
      %v1203 = vrot.slane %v1189, %v1202
      %v1204 = vcombine.low %v1179, %v1187
      %v1205 = vcombine.high %v1179, %v1187
      %v1207 = vunpack.c.l.s4 1934713408
      %v1208 = vunpack.c.0.s8 %v1207
      %v1209 = vlaneseq
      %v1210 = vshrl.u32 %v1209, 7
      %v1211 = vsub.s32 %v1208, %v1210
      %v1212 = vrot.slane %v1204, %v1211
      %v1214 = vunpack.c.l.s4 1934713408
      %v1215 = vunpack.c.0.s8 %v1214
      %v1216 = vlaneseq
      %v1217 = vshrl.u32 %v1216, 7
      %v1218 = vsub.s32 %v1215, %v1217
      %v1219 = vrot.slane %v1205, %v1218
      %v1220 = vcombine.low %v1196, %v1212
      %v1221 = vcombine.high %v1196, %v1212
      %v1222 = vcombine.low %v1203, %v1219
      %v1223 = vcombine.high %v1203, %v1219
      %1225 = vrot.lane.b32.xlu0 %v1221, 8
      %v1226 = vpop.permute.xlu0 %1225
      %1229 = vrot.lane.b32.xlu0 %v1222, 16
      %v1230 = vpop.permute.xlu0 %1229
      %1233 = vrot.lane.b32.xlu0 %v1223, 24
      %v1234 = vpop.permute.xlu0 %1233
      %v1236 = vsel %vm670, %v1220, %v1226
      %vm1237 = vcmask 130048
      %v1238 = vsel %vm1237, %v1236, %v1230
      %vm1239 = vcmask 195584
      %v1240 = vsel %vm1239, %v1238, %v1234
      %v1241 = vrot.slane %v161, 4
      %v1242 = vrot.slane %v164, 4
      %v1243 = vrot.slane %v166, 4
      %v1244 = vrot.slane %v168, 4
      %v1247 = vunpack.c.l.s4 1983009808
      %v1248 = vunpack.c.0.s8 %v1247
      %v1249 = vlaneseq
      %v1250 = vshrl.u32 %v1249, 7
      %v1251 = vsub.s32 %v1248, %v1250
      %v1252 = vrot.slane %v1241, %v1251
      %v1255 = vunpack.c.l.s4 1983009808
      %v1256 = vunpack.c.0.s8 %v1255
      %v1257 = vlaneseq
      %v1258 = vshrl.u32 %v1257, 7
      %v1259 = vsub.s32 %v1256, %v1258
      %v1260 = vrot.slane %v1243, %v1259
      %v1261 = vcombine.low %v1252, %v1260
      %v1262 = vcombine.high %v1252, %v1260
      %v1264 = vunpack.c.l.s4 1934713408
      %v1265 = vunpack.c.0.s8 %v1264
      %v1266 = vlaneseq
      %v1267 = vshrl.u32 %v1266, 7
      %v1268 = vsub.s32 %v1265, %v1267
      %v1269 = vrot.slane %v1261, %v1268
      %v1271 = vunpack.c.l.s4 1934713408
      %v1272 = vunpack.c.0.s8 %v1271
      %v1273 = vlaneseq
      %v1274 = vshrl.u32 %v1273, 7
      %v1275 = vsub.s32 %v1272, %v1274
      %v1276 = vrot.slane %v1262, %v1275
      %v1277 = vcombine.high %v1269, 0
      %v1278 = vcombine.high %v1276, 0
      %v1281 = vunpack.c.l.s4 1983009808
      %v1282 = vunpack.c.0.s8 %v1281
      %v1283 = vlaneseq
      %v1284 = vshrl.u32 %v1283, 7
      %v1285 = vsub.s32 %v1282, %v1284
      %v1286 = vrot.slane %v1242, %v1285
      %v1289 = vunpack.c.l.s4 1983009808
      %v1290 = vunpack.c.0.s8 %v1289
      %v1291 = vlaneseq
      %v1292 = vshrl.u32 %v1291, 7
      %v1293 = vsub.s32 %v1290, %v1292
      %v1294 = vrot.slane %v1244, %v1293
      %v1295 = vcombine.low %v1286, %v1294
      %v1296 = vcombine.high %v1286, %v1294
      %v1298 = vunpack.c.l.s4 1934713408
      %v1299 = vunpack.c.0.s8 %v1298
      %v1300 = vlaneseq
      %v1301 = vshrl.u32 %v1300, 7
      %v1302 = vsub.s32 %v1299, %v1301
      %v1303 = vrot.slane %v1295, %v1302
      %v1305 = vunpack.c.l.s4 1934713408
      %v1306 = vunpack.c.0.s8 %v1305
      %v1307 = vlaneseq
      %v1308 = vshrl.u32 %v1307, 7
      %v1309 = vsub.s32 %v1306, %v1308
      %v1310 = vrot.slane %v1296, %v1309
      %v1311 = vcombine.high %v1303, 0
      %v1312 = vcombine.high %v1310, 0
      %v1315 = vpack.i.b16 %v1303, %v1269
      %v1317 = vshrl.u32 %v1269, 16
      %v1318 = vshrl.u32 %v1303, 16
      %v1319 = vpack.i.b16 %v1318, %v1317
      %v1323 = vpack.i.b16 %v1311, %v1277
      %v1325 = vshrl.u32 %v1277, 16
      %v1326 = vshrl.u32 %v1311, 16
      %v1327 = vpack.i.b16 %v1326, %v1325
      %v1331 = vpack.i.b16 %v1310, %v1276
      %v1333 = vshrl.u32 %v1276, 16
      %v1334 = vshrl.u32 %v1310, 16
      %v1335 = vpack.i.b16 %v1334, %v1333
      %v1339 = vpack.i.b16 %v1312, %v1278
      %v1341 = vshrl.u32 %v1278, 16
      %v1342 = vshrl.u32 %v1312, 16
      %v1343 = vpack.i.b16 %v1342, %v1341
      %v1345 = vcombine.low %v1315, %v1331
      %v1347 = vunpack.c.l.s4 1983009808
      %v1348 = vunpack.c.0.s8 %v1347
      %v1349 = vlaneseq
      %v1350 = vshrl.u32 %v1349, 7
      %v1351 = vsub.s32 %v1348, %v1350
      %v1352 = vrot.slane %v1345, %v1351
      %v1353 = vcombine.low %v1323, %v1339
      %v1355 = vunpack.c.l.s4 1983009808
      %v1356 = vunpack.c.0.s8 %v1355
      %v1357 = vlaneseq
      %v1358 = vshrl.u32 %v1357, 7
      %v1359 = vsub.s32 %v1356, %v1358
      %v1360 = vrot.slane %v1353, %v1359
      %v1361 = vcombine.low %v1352, %v1360
      %v1363 = vunpack.c.l.s4 1934713408
      %v1364 = vunpack.c.0.s8 %v1363
      %v1365 = vlaneseq
      %v1366 = vshrl.u32 %v1365, 7
      %v1367 = vsub.s32 %v1364, %v1366
      %v1368 = vrot.slane %v1361, %v1367
      %v1369 = vcombine.high %v1368, 0
      %v1370 = vcombine.low %v1319, %v1335
      %v1372 = vunpack.c.l.s4 1983009808
      %v1373 = vunpack.c.0.s8 %v1372
      %v1374 = vlaneseq
      %v1375 = vshrl.u32 %v1374, 7
      %v1376 = vsub.s32 %v1373, %v1375
      %v1377 = vrot.slane %v1370, %v1376
      %v1378 = vcombine.low %v1327, %v1343
      %v1380 = vunpack.c.l.s4 1983009808
      %v1381 = vunpack.c.0.s8 %v1380
      %v1382 = vlaneseq
      %v1383 = vshrl.u32 %v1382, 7
      %v1384 = vsub.s32 %v1381, %v1383
      %v1385 = vrot.slane %v1378, %v1384
      %v1386 = vcombine.low %v1377, %v1385
      %v1388 = vunpack.c.l.s4 1934713408
      %v1389 = vunpack.c.0.s8 %v1388
      %v1390 = vlaneseq
      %v1391 = vshrl.u32 %v1390, 7
      %v1392 = vsub.s32 %v1389, %v1391
      %v1393 = vrot.slane %v1386, %v1392
      %v1394 = vcombine.high %v1393, 0
      %v1397 = vpack.i.b16 %v1393, %v1368
      %v1398 = vshrl.u32 %v1368, 16
      %v1399 = vshrl.u32 %v1393, 16
      %v1400 = vpack.i.b16 %v1399, %v1398
      %v1403 = vpack.i.b16 %v1394, %v1369
      %v1404 = vshrl.u32 %v1369, 16
      %v1405 = vshrl.u32 %v1394, 16
      %v1406 = vpack.i.b16 %v1405, %v1404
      %1407 = vrot.lane.b32.xlu0 %v1241, 96
      %v1408 = vpop.permute.xlu0 %1407
      %1409 = vrot.lane.b32.xlu0 %v1242, 96
      %v1410 = vpop.permute.xlu0 %1409
      %1411 = vrot.lane.b32.xlu0 %v1243, 96
      %v1412 = vpop.permute.xlu0 %1411
      %1413 = vrot.lane.b32.xlu0 %v1244, 96
      %v1414 = vpop.permute.xlu0 %1413
      %v1417 = vunpack.c.l.s4 1983009808
      %v1418 = vunpack.c.0.s8 %v1417
      %v1419 = vlaneseq
      %v1420 = vshrl.u32 %v1419, 7
      %v1421 = vsub.s32 %v1418, %v1420
      %v1422 = vrot.slane %v1408, %v1421
      %v1425 = vunpack.c.l.s4 1983009808
      %v1426 = vunpack.c.0.s8 %v1425
      %v1427 = vlaneseq
      %v1428 = vshrl.u32 %v1427, 7
      %v1429 = vsub.s32 %v1426, %v1428
      %v1430 = vrot.slane %v1412, %v1429
      %v1431 = vcombine.low %v1422, %v1430
      %v1432 = vcombine.high %v1422, %v1430
      %v1434 = vunpack.c.l.s4 1934713408
      %v1435 = vunpack.c.0.s8 %v1434
      %v1436 = vlaneseq
      %v1437 = vshrl.u32 %v1436, 7
      %v1438 = vsub.s32 %v1435, %v1437
      %v1439 = vrot.slane %v1431, %v1438
      %v1441 = vunpack.c.l.s4 1934713408
      %v1442 = vunpack.c.0.s8 %v1441
      %v1443 = vlaneseq
      %v1444 = vshrl.u32 %v1443, 7
      %v1445 = vsub.s32 %v1442, %v1444
      %v1446 = vrot.slane %v1432, %v1445
      %v1447 = vcombine.high %v1439, 0
      %v1448 = vcombine.high %v1446, 0
      %v1451 = vunpack.c.l.s4 1983009808
      %v1452 = vunpack.c.0.s8 %v1451
      %v1453 = vlaneseq
      %v1454 = vshrl.u32 %v1453, 7
      %v1455 = vsub.s32 %v1452, %v1454
      %v1456 = vrot.slane %v1410, %v1455
      %v1459 = vunpack.c.l.s4 1983009808
      %v1460 = vunpack.c.0.s8 %v1459
      %v1461 = vlaneseq
      %v1462 = vshrl.u32 %v1461, 7
      %v1463 = vsub.s32 %v1460, %v1462
      %v1464 = vrot.slane %v1414, %v1463
      %v1465 = vcombine.low %v1456, %v1464
      %v1466 = vcombine.high %v1456, %v1464
      %v1468 = vunpack.c.l.s4 1934713408
      %v1469 = vunpack.c.0.s8 %v1468
      %v1470 = vlaneseq
      %v1471 = vshrl.u32 %v1470, 7
      %v1472 = vsub.s32 %v1469, %v1471
      %v1473 = vrot.slane %v1465, %v1472
      %v1475 = vunpack.c.l.s4 1934713408
      %v1476 = vunpack.c.0.s8 %v1475
      %v1477 = vlaneseq
      %v1478 = vshrl.u32 %v1477, 7
      %v1479 = vsub.s32 %v1476, %v1478
      %v1480 = vrot.slane %v1466, %v1479
      %v1481 = vcombine.high %v1473, 0
      %v1482 = vcombine.high %v1480, 0
      %v1485 = vpack.i.b16 %v1473, %v1439
      %v1487 = vshrl.u32 %v1439, 16
      %v1488 = vshrl.u32 %v1473, 16
      %v1489 = vpack.i.b16 %v1488, %v1487
      %v1493 = vpack.i.b16 %v1481, %v1447
      %v1495 = vshrl.u32 %v1447, 16
      %v1496 = vshrl.u32 %v1481, 16
      %v1497 = vpack.i.b16 %v1496, %v1495
      %v1501 = vpack.i.b16 %v1480, %v1446
      %v1503 = vshrl.u32 %v1446, 16
      %v1504 = vshrl.u32 %v1480, 16
      %v1505 = vpack.i.b16 %v1504, %v1503
      %v1509 = vpack.i.b16 %v1482, %v1448
      %v1511 = vshrl.u32 %v1448, 16
      %v1512 = vshrl.u32 %v1482, 16
      %v1513 = vpack.i.b16 %v1512, %v1511
      %v1515 = vcombine.low %v1485, %v1501
      %v1517 = vunpack.c.l.s4 1983009808
      %v1518 = vunpack.c.0.s8 %v1517
      %v1519 = vlaneseq
      %v1520 = vshrl.u32 %v1519, 7
      %v1521 = vsub.s32 %v1518, %v1520
      %v1522 = vrot.slane %v1515, %v1521
      %v1523 = vcombine.low %v1493, %v1509
      %v1525 = vunpack.c.l.s4 1983009808
      %v1526 = vunpack.c.0.s8 %v1525
      %v1527 = vlaneseq
      %v1528 = vshrl.u32 %v1527, 7
      %v1529 = vsub.s32 %v1526, %v1528
      %v1530 = vrot.slane %v1523, %v1529
      %v1531 = vcombine.low %v1522, %v1530
      %v1533 = vunpack.c.l.s4 1934713408
      %v1534 = vunpack.c.0.s8 %v1533
      %v1535 = vlaneseq
      %v1536 = vshrl.u32 %v1535, 7
      %v1537 = vsub.s32 %v1534, %v1536
      %v1538 = vrot.slane %v1531, %v1537
      %v1539 = vcombine.high %v1538, 0
      %v1540 = vcombine.low %v1489, %v1505
      %v1542 = vunpack.c.l.s4 1983009808
      %v1543 = vunpack.c.0.s8 %v1542
      %v1544 = vlaneseq
      %v1545 = vshrl.u32 %v1544, 7
      %v1546 = vsub.s32 %v1543, %v1545
      %v1547 = vrot.slane %v1540, %v1546
      %v1548 = vcombine.low %v1497, %v1513
      %v1550 = vunpack.c.l.s4 1983009808
      %v1551 = vunpack.c.0.s8 %v1550
      %v1552 = vlaneseq
      %v1553 = vshrl.u32 %v1552, 7
      %v1554 = vsub.s32 %v1551, %v1553
      %v1555 = vrot.slane %v1548, %v1554
      %v1556 = vcombine.low %v1547, %v1555
      %v1558 = vunpack.c.l.s4 1934713408
      %v1559 = vunpack.c.0.s8 %v1558
      %v1560 = vlaneseq
      %v1561 = vshrl.u32 %v1560, 7
      %v1562 = vsub.s32 %v1559, %v1561
      %v1563 = vrot.slane %v1556, %v1562
      %v1564 = vcombine.high %v1563, 0
      %v1567 = vpack.i.b16 %v1563, %v1538
      %v1568 = vshrl.u32 %v1538, 16
      %v1569 = vshrl.u32 %v1563, 16
      %v1570 = vpack.i.b16 %v1569, %v1568
      %v1573 = vpack.i.b16 %v1564, %v1539
      %v1574 = vshrl.u32 %v1539, 16
      %v1575 = vshrl.u32 %v1564, 16
      %v1576 = vpack.i.b16 %v1575, %v1574
      %1577 = vrot.lane.b32.xlu0 %v1241, 64
      %v1578 = vpop.permute.xlu0 %1577
      %1579 = vrot.lane.b32.xlu0 %v1242, 64
      %v1580 = vpop.permute.xlu0 %1579
      %1581 = vrot.lane.b32.xlu0 %v1243, 64
      %v1582 = vpop.permute.xlu0 %1581
      %1583 = vrot.lane.b32.xlu0 %v1244, 64
      %v1584 = vpop.permute.xlu0 %1583
      %v1587 = vunpack.c.l.s4 1983009808
      %v1588 = vunpack.c.0.s8 %v1587
      %v1589 = vlaneseq
      %v1590 = vshrl.u32 %v1589, 7
      %v1591 = vsub.s32 %v1588, %v1590
      %v1592 = vrot.slane %v1578, %v1591
      %v1595 = vunpack.c.l.s4 1983009808
      %v1596 = vunpack.c.0.s8 %v1595
      %v1597 = vlaneseq
      %v1598 = vshrl.u32 %v1597, 7
      %v1599 = vsub.s32 %v1596, %v1598
      %v1600 = vrot.slane %v1582, %v1599
      %v1601 = vcombine.low %v1592, %v1600
      %v1602 = vcombine.high %v1592, %v1600
      %v1604 = vunpack.c.l.s4 1934713408
      %v1605 = vunpack.c.0.s8 %v1604
      %v1606 = vlaneseq
      %v1607 = vshrl.u32 %v1606, 7
      %v1608 = vsub.s32 %v1605, %v1607
      %v1609 = vrot.slane %v1601, %v1608
      %v1611 = vunpack.c.l.s4 1934713408
      %v1612 = vunpack.c.0.s8 %v1611
      %v1613 = vlaneseq
      %v1614 = vshrl.u32 %v1613, 7
      %v1615 = vsub.s32 %v1612, %v1614
      %v1616 = vrot.slane %v1602, %v1615
      %v1617 = vcombine.high %v1609, 0
      %v1618 = vcombine.high %v1616, 0
      %v1621 = vunpack.c.l.s4 1983009808
      %v1622 = vunpack.c.0.s8 %v1621
      %v1623 = vlaneseq
      %v1624 = vshrl.u32 %v1623, 7
      %v1625 = vsub.s32 %v1622, %v1624
      %v1626 = vrot.slane %v1580, %v1625
      %v1629 = vunpack.c.l.s4 1983009808
      %v1630 = vunpack.c.0.s8 %v1629
      %v1631 = vlaneseq
      %v1632 = vshrl.u32 %v1631, 7
      %v1633 = vsub.s32 %v1630, %v1632
      %v1634 = vrot.slane %v1584, %v1633
      %v1635 = vcombine.low %v1626, %v1634
      %v1636 = vcombine.high %v1626, %v1634
      %v1638 = vunpack.c.l.s4 1934713408
      %v1639 = vunpack.c.0.s8 %v1638
      %v1640 = vlaneseq
      %v1641 = vshrl.u32 %v1640, 7
      %v1642 = vsub.s32 %v1639, %v1641
      %v1643 = vrot.slane %v1635, %v1642
      %v1645 = vunpack.c.l.s4 1934713408
      %v1646 = vunpack.c.0.s8 %v1645
      %v1647 = vlaneseq
      %v1648 = vshrl.u32 %v1647, 7
      %v1649 = vsub.s32 %v1646, %v1648
      %v1650 = vrot.slane %v1636, %v1649
      %v1651 = vcombine.high %v1643, 0
      %v1652 = vcombine.high %v1650, 0
      %v1655 = vpack.i.b16 %v1643, %v1609
      %v1657 = vshrl.u32 %v1609, 16
      %v1658 = vshrl.u32 %v1643, 16
      %v1659 = vpack.i.b16 %v1658, %v1657
      %v1663 = vpack.i.b16 %v1651, %v1617
      %v1665 = vshrl.u32 %v1617, 16
      %v1666 = vshrl.u32 %v1651, 16
      %v1667 = vpack.i.b16 %v1666, %v1665
      %v1671 = vpack.i.b16 %v1650, %v1616
      %v1673 = vshrl.u32 %v1616, 16
      %v1674 = vshrl.u32 %v1650, 16
      %v1675 = vpack.i.b16 %v1674, %v1673
      %v1679 = vpack.i.b16 %v1652, %v1618
      %v1681 = vshrl.u32 %v1618, 16
      %v1682 = vshrl.u32 %v1652, 16
      %v1683 = vpack.i.b16 %v1682, %v1681
      %v1685 = vcombine.low %v1655, %v1671
      %v1687 = vunpack.c.l.s4 1983009808
      %v1688 = vunpack.c.0.s8 %v1687
      %v1689 = vlaneseq
      %v1690 = vshrl.u32 %v1689, 7
      %v1691 = vsub.s32 %v1688, %v1690
      %v1692 = vrot.slane %v1685, %v1691
      %v1693 = vcombine.low %v1663, %v1679
      %v1695 = vunpack.c.l.s4 1983009808
      %v1696 = vunpack.c.0.s8 %v1695
      %v1697 = vlaneseq
      %v1698 = vshrl.u32 %v1697, 7
      %v1699 = vsub.s32 %v1696, %v1698
      %v1700 = vrot.slane %v1693, %v1699
      %v1701 = vcombine.low %v1692, %v1700
      %v1703 = vunpack.c.l.s4 1934713408
      %v1704 = vunpack.c.0.s8 %v1703
      %v1705 = vlaneseq
      %v1706 = vshrl.u32 %v1705, 7
      %v1707 = vsub.s32 %v1704, %v1706
      %v1708 = vrot.slane %v1701, %v1707
      %v1709 = vcombine.high %v1708, 0
      %v1710 = vcombine.low %v1659, %v1675
      %v1712 = vunpack.c.l.s4 1983009808
      %v1713 = vunpack.c.0.s8 %v1712
      %v1714 = vlaneseq
      %v1715 = vshrl.u32 %v1714, 7
      %v1716 = vsub.s32 %v1713, %v1715
      %v1717 = vrot.slane %v1710, %v1716
      %v1718 = vcombine.low %v1667, %v1683
      %v1720 = vunpack.c.l.s4 1983009808
      %v1721 = vunpack.c.0.s8 %v1720
      %v1722 = vlaneseq
      %v1723 = vshrl.u32 %v1722, 7
      %v1724 = vsub.s32 %v1721, %v1723
      %v1725 = vrot.slane %v1718, %v1724
      %v1726 = vcombine.low %v1717, %v1725
      %v1728 = vunpack.c.l.s4 1934713408
      %v1729 = vunpack.c.0.s8 %v1728
      %v1730 = vlaneseq
      %v1731 = vshrl.u32 %v1730, 7
      %v1732 = vsub.s32 %v1729, %v1731
      %v1733 = vrot.slane %v1726, %v1732
      %v1734 = vcombine.high %v1733, 0
      %v1737 = vpack.i.b16 %v1733, %v1708
      %v1738 = vshrl.u32 %v1708, 16
      %v1739 = vshrl.u32 %v1733, 16
      %v1740 = vpack.i.b16 %v1739, %v1738
      %v1743 = vpack.i.b16 %v1734, %v1709
      %v1744 = vshrl.u32 %v1709, 16
      %v1745 = vshrl.u32 %v1734, 16
      %v1746 = vpack.i.b16 %v1745, %v1744
      %v1748 = vsel %vm670, %v1397, 0
      %v1751 = vsel %vm670, %v1567, 0
      %1753 = vmatprep.subr.bf16.mxu0 0
      %1754 = vmatpush1.bf16.xpose.msra.mxu0 %v1751
      %1755 = vmatprep.subr.bf16.mxu0 0
      %1756 = vmatpush1.bf16.xpose.msra.mxu0 0
      %1757 = vmatprep.subr.bf16.mxu0 0
      %1758 = vmatpush1.bf16.xpose.msra.mxu0 0
      %1759 = vmatprep.subr.bf16.mxu0 0
      %1760 = vmatpush1.bf16.xpose.msra.mxu0 0
      %1761 = vmatprep.subr.bf16.mxu0 0
      %1762 = vmatpush1.bf16.xpose.msra.mxu0 0
      %1763 = vmatprep.subr.bf16.mxu0 0
      %1764 = vmatpush1.bf16.xpose.msra.mxu0 0
      %1765 = vmatprep.subr.bf16.mxu0 0
      %1766 = vmatpush1.bf16.xpose.msra.mxu0 0
      %1767 = vmatprep.subr.bf16.mxu0 0
      %1768 = vmatpush1.bf16.xpose.msra.mxu0 0
      %1769 = vmatprep.subr.bf16.mxu0 0
      %1770 = vmatpush1.bf16.xpose.msra.mxu0 0
      %1771 = vmatprep.subr.bf16.mxu0 0
      %1772 = vmatpush1.bf16.xpose.msra.mxu0 0
      %1773 = vmatprep.subr.bf16.mxu0 0
      %1774 = vmatpush1.bf16.xpose.msra.mxu0 0
      %1775 = vmatprep.subr.bf16.mxu0 0
      %1776 = vmatpush1.bf16.xpose.msra.mxu0 0
      %1777 = vmatprep.subr.bf16.mxu0 0
      %1778 = vmatpush1.bf16.xpose.msra.mxu0 0
      %1779 = vmatprep.subr.bf16.mxu0 0
      %1780 = vmatpush1.bf16.xpose.msra.mxu0 0
      %1781 = vmatprep.subr.bf16.mxu0 0
      %1782 = vmatpush1.bf16.xpose.msra.mxu0 0
      %1783 = vmatprep.subr.bf16.mxu0 0
      %1784 = vmatpush1.bf16.xpose.msra.mxu0 0
      %1785 = vmatprep.mubr.bf16.mxu0 0
      %1786 = vmatmul.mubr.bf16.gmra.mrb[0].mxu0 %v1748
      %v1787 = vpop.f32.mrb[0].mxu0
      %v1788 = vadd.f32 0.0, %v1787
      %v1789 = vpop.f32.mrb[0].mxu0
      %v1790 = vpop.f32.mrb[0].mxu0
      %v1791 = vpop.f32.mrb[0].mxu0
      %1792 = vdwg.mxu0
      %v1794 = vsel %vm670, %v1400, 0
      %v1797 = vsel %vm670, %v1570, 0
      %1799 = vmatprep.subr.bf16.mxu0 0
      %1800 = vmatpush1.bf16.xpose.msra.mxu0 %v1797
      %1801 = vmatprep.subr.bf16.mxu0 0
      %1802 = vmatpush1.bf16.xpose.msra.mxu0 0
      %1803 = vmatprep.subr.bf16.mxu0 0
      %1804 = vmatpush1.bf16.xpose.msra.mxu0 0
      %1805 = vmatprep.subr.bf16.mxu0 0
      %1806 = vmatpush1.bf16.xpose.msra.mxu0 0
      %1807 = vmatprep.subr.bf16.mxu0 0
      %1808 = vmatpush1.bf16.xpose.msra.mxu0 0
      %1809 = vmatprep.subr.bf16.mxu0 0
      %1810 = vmatpush1.bf16.xpose.msra.mxu0 0
      %1811 = vmatprep.subr.bf16.mxu0 0
      %1812 = vmatpush1.bf16.xpose.msra.mxu0 0
      %1813 = vmatprep.subr.bf16.mxu0 0
      %1814 = vmatpush1.bf16.xpose.msra.mxu0 0
      %1815 = vmatprep.subr.bf16.mxu0 0
      %1816 = vmatpush1.bf16.xpose.msra.mxu0 0
      %1817 = vmatprep.subr.bf16.mxu0 0
      %1818 = vmatpush1.bf16.xpose.msra.mxu0 0
      %1819 = vmatprep.subr.bf16.mxu0 0
      %1820 = vmatpush1.bf16.xpose.msra.mxu0 0
      %1821 = vmatprep.subr.bf16.mxu0 0
      %1822 = vmatpush1.bf16.xpose.msra.mxu0 0
      %1823 = vmatprep.subr.bf16.mxu0 0
      %1824 = vmatpush1.bf16.xpose.msra.mxu0 0
      %1825 = vmatprep.subr.bf16.mxu0 0
      %1826 = vmatpush1.bf16.xpose.msra.mxu0 0
      %1827 = vmatprep.subr.bf16.mxu0 0
      %1828 = vmatpush1.bf16.xpose.msra.mxu0 0
      %1829 = vmatprep.subr.bf16.mxu0 0
      %1830 = vmatpush1.bf16.xpose.msra.mxu0 0
      %1831 = vmatprep.mubr.bf16.mxu0 0
      %1832 = vmatmul.mubr.bf16.gmra.mrb[0].mxu0 %v1794
      %v1833 = vpop.f32.mrb[0].mxu0
      %v1834 = vadd.f32 0.0, %v1833
      %v1835 = vpop.f32.mrb[0].mxu0
      %v1836 = vpop.f32.mrb[0].mxu0
      %v1837 = vpop.f32.mrb[0].mxu0
      %1838 = vdwg.mxu0
      %v1840 = vsel %vm670, %v1403, 0
      %v1843 = vsel %vm670, %v1573, 0
      %1845 = vmatprep.subr.bf16.mxu0 0
      %1846 = vmatpush1.bf16.xpose.msra.mxu0 %v1843
      %1847 = vmatprep.subr.bf16.mxu0 0
      %1848 = vmatpush1.bf16.xpose.msra.mxu0 0
      %1849 = vmatprep.subr.bf16.mxu0 0
      %1850 = vmatpush1.bf16.xpose.msra.mxu0 0
      %1851 = vmatprep.subr.bf16.mxu0 0
      %1852 = vmatpush1.bf16.xpose.msra.mxu0 0
      %1853 = vmatprep.subr.bf16.mxu0 0
      %1854 = vmatpush1.bf16.xpose.msra.mxu0 0
      %1855 = vmatprep.subr.bf16.mxu0 0
      %1856 = vmatpush1.bf16.xpose.msra.mxu0 0
      %1857 = vmatprep.subr.bf16.mxu0 0
      %1858 = vmatpush1.bf16.xpose.msra.mxu0 0
      %1859 = vmatprep.subr.bf16.mxu0 0
      %1860 = vmatpush1.bf16.xpose.msra.mxu0 0
      %1861 = vmatprep.subr.bf16.mxu0 0
      %1862 = vmatpush1.bf16.xpose.msra.mxu0 0
      %1863 = vmatprep.subr.bf16.mxu0 0
      %1864 = vmatpush1.bf16.xpose.msra.mxu0 0
      %1865 = vmatprep.subr.bf16.mxu0 0
      %1866 = vmatpush1.bf16.xpose.msra.mxu0 0
      %1867 = vmatprep.subr.bf16.mxu0 0
      %1868 = vmatpush1.bf16.xpose.msra.mxu0 0
      %1869 = vmatprep.subr.bf16.mxu0 0
      %1870 = vmatpush1.bf16.xpose.msra.mxu0 0
      %1871 = vmatprep.subr.bf16.mxu0 0
      %1872 = vmatpush1.bf16.xpose.msra.mxu0 0
      %1873 = vmatprep.subr.bf16.mxu0 0
      %1874 = vmatpush1.bf16.xpose.msra.mxu0 0
      %1875 = vmatprep.subr.bf16.mxu0 0
      %1876 = vmatpush1.bf16.xpose.msra.mxu0 0
      %1877 = vmatprep.mubr.bf16.mxu0 0
      %1878 = vmatmul.mubr.bf16.gmra.mrb[0].mxu0 %v1840
      %v1879 = vpop.f32.mrb[0].mxu0
      %v1880 = vadd.f32 0.0, %v1879
      %v1881 = vpop.f32.mrb[0].mxu0
      %v1882 = vpop.f32.mrb[0].mxu0
      %v1883 = vpop.f32.mrb[0].mxu0
      %1884 = vdwg.mxu0
      %v1886 = vsel %vm670, %v1406, 0
      %v1889 = vsel %vm670, %v1576, 0
      %1891 = vmatprep.subr.bf16.mxu0 0
      %1892 = vmatpush1.bf16.xpose.msra.mxu0 %v1889
      %1893 = vmatprep.subr.bf16.mxu0 0
      %1894 = vmatpush1.bf16.xpose.msra.mxu0 0
      %1895 = vmatprep.subr.bf16.mxu0 0
      %1896 = vmatpush1.bf16.xpose.msra.mxu0 0
      %1897 = vmatprep.subr.bf16.mxu0 0
      %1898 = vmatpush1.bf16.xpose.msra.mxu0 0
      %1899 = vmatprep.subr.bf16.mxu0 0
      %1900 = vmatpush1.bf16.xpose.msra.mxu0 0
      %1901 = vmatprep.subr.bf16.mxu0 0
      %1902 = vmatpush1.bf16.xpose.msra.mxu0 0
      %1903 = vmatprep.subr.bf16.mxu0 0
      %1904 = vmatpush1.bf16.xpose.msra.mxu0 0
      %1905 = vmatprep.subr.bf16.mxu0 0
      %1906 = vmatpush1.bf16.xpose.msra.mxu0 0
      %1907 = vmatprep.subr.bf16.mxu0 0
      %1908 = vmatpush1.bf16.xpose.msra.mxu0 0
      %1909 = vmatprep.subr.bf16.mxu0 0
      %1910 = vmatpush1.bf16.xpose.msra.mxu0 0
      %1911 = vmatprep.subr.bf16.mxu0 0
      %1912 = vmatpush1.bf16.xpose.msra.mxu0 0
      %1913 = vmatprep.subr.bf16.mxu0 0
      %1914 = vmatpush1.bf16.xpose.msra.mxu0 0
      %1915 = vmatprep.subr.bf16.mxu0 0
      %1916 = vmatpush1.bf16.xpose.msra.mxu0 0
      %1917 = vmatprep.subr.bf16.mxu0 0
      %1918 = vmatpush1.bf16.xpose.msra.mxu0 0
      %1919 = vmatprep.subr.bf16.mxu0 0
      %1920 = vmatpush1.bf16.xpose.msra.mxu0 0
      %1921 = vmatprep.subr.bf16.mxu0 0
      %1922 = vmatpush1.bf16.xpose.msra.mxu0 0
      %1923 = vmatprep.mubr.bf16.mxu0 0
      %1924 = vmatmul.mubr.bf16.gmra.mrb[0].mxu0 %v1886
      %v1925 = vpop.f32.mrb[0].mxu0
      %v1926 = vadd.f32 0.0, %v1925
      %v1927 = vpop.f32.mrb[0].mxu0
      %v1928 = vpop.f32.mrb[0].mxu0
      %v1929 = vpop.f32.mrb[0].mxu0
      %1930 = vdwg.mxu0
      %v1931 = vsel %vm670, %v1788, -inf
      %1932 = vmax.xlane.f32.xlu0 %v1931
      %v1933 = vpop.xlane.xlu0 %1932
      %v1934 = vsel %vm670, %v1834, -inf
      %1935 = vmax.xlane.f32.xlu0 %v1934
      %v1936 = vpop.xlane.xlu0 %1935
      %v1937 = vsel %vm670, %v1880, -inf
      %1938 = vmax.xlane.f32.xlu0 %v1937
      %v1939 = vpop.xlane.xlu0 %1938
      %v1940 = vsel %vm670, %v1926, -inf
      %1941 = vmax.xlane.f32.xlu0 %v1940
      %v1942 = vpop.xlane.xlu0 %1941
      %v1943 = vsub.f32 %v1788, %v1933
      %v1944 = vsub.f32 %v1834, %v1936
      %v1945 = vsub.f32 %v1880, %v1939
      %v1946 = vsub.f32 %v1926, %v1942
      %v1947 = vmul.f32 %v1943, 1.442695
      %v1948 = vpow.pop %v1947
      %v1949 = vmul.f32 %v1944, 1.442695
      %v1950 = vpow.pop %v1949
      %v1951 = vmul.f32 %v1945, 1.442695
      %v1952 = vpow.pop %v1951
      %v1953 = vmul.f32 %v1946, 1.442695
      %v1954 = vpow.pop %v1953
      %v1955 = vsel %vm670, %v1948, 0.0
      %1956 = vadd.xlane.f32.xlu0 %v1955
      %v1957 = vpop.xlane.xlu0 %1956
      %v1958 = vsel %vm670, %v1950, 0.0
      %1959 = vadd.xlane.f32.xlu0 %v1958
      %v1960 = vpop.xlane.xlu0 %1959
      %v1961 = vsel %vm670, %v1952, 0.0
      %1962 = vadd.xlane.f32.xlu0 %v1961
      %v1963 = vpop.xlane.xlu0 %1962
      %v1964 = vsel %vm670, %v1954, 0.0
      %1965 = vadd.xlane.f32.xlu0 %v1964
      %v1966 = vpop.xlane.xlu0 %1965
      %v1967 = vpack.c.bf16 %v1948, %v1948
      %v1968 = vpack.c.bf16 %v1950, %v1950
      %v1969 = vpack.c.bf16 %v1952, %v1952
      %v1970 = vpack.c.bf16 %v1954, %v1954
      %v1972 = vsel %vm670, %v1967, 0
      %v1975 = vsel %vm898, %v1737, 0
      %1977 = vmatprep.subr.bf16.mxu0 0
      %1978 = vmatpush1.bf16.msra.mxu0 %v1975
      %1979 = vmatprep.subr.bf16.mxu0 0
      %1980 = vmatpush1.bf16.msra.mxu0 0
      %1981 = vmatprep.subr.bf16.mxu0 0
      %1982 = vmatpush1.bf16.msra.mxu0 0
      %1983 = vmatprep.subr.bf16.mxu0 0
      %1984 = vmatpush1.bf16.msra.mxu0 0
      %1985 = vmatprep.subr.bf16.mxu0 0
      %1986 = vmatpush1.bf16.msra.mxu0 0
      %1987 = vmatprep.subr.bf16.mxu0 0
      %1988 = vmatpush1.bf16.msra.mxu0 0
      %1989 = vmatprep.subr.bf16.mxu0 0
      %1990 = vmatpush1.bf16.msra.mxu0 0
      %1991 = vmatprep.subr.bf16.mxu0 0
      %1992 = vmatpush1.bf16.msra.mxu0 0
      %1993 = vmatprep.subr.bf16.mxu0 0
      %1994 = vmatpush1.bf16.msra.mxu0 0
      %1995 = vmatprep.subr.bf16.mxu0 0
      %1996 = vmatpush1.bf16.msra.mxu0 0
      %1997 = vmatprep.subr.bf16.mxu0 0
      %1998 = vmatpush1.bf16.msra.mxu0 0
      %1999 = vmatprep.subr.bf16.mxu0 0
      %2000 = vmatpush1.bf16.msra.mxu0 0
      %2001 = vmatprep.subr.bf16.mxu0 0
      %2002 = vmatpush1.bf16.msra.mxu0 0
      %2003 = vmatprep.subr.bf16.mxu0 0
      %2004 = vmatpush1.bf16.msra.mxu0 0
      %2005 = vmatprep.subr.bf16.mxu0 0
      %2006 = vmatpush1.bf16.msra.mxu0 0
      %2007 = vmatprep.subr.bf16.mxu0 0
      %2008 = vmatpush1.bf16.msra.mxu0 0
      %2009 = vmatprep.mubr.bf16.mxu0 0
      %2010 = vmatmul.mubr.bf16.gmra.mrb[0].mxu0 %v1972
      %v2011 = vpop.f32.mrb[0].mxu0
      %v2012 = vadd.f32 0.0, %v2011
      %v2013 = vpop.f32.mrb[0].mxu0
      %v2014 = vpop.f32.mrb[0].mxu0
      %v2015 = vpop.f32.mrb[0].mxu0
      %2016 = vdwg.mxu0
      %v2018 = vsel %vm670, %v1968, 0
      %v2021 = vsel %vm898, %v1740, 0
      %2023 = vmatprep.subr.bf16.mxu0 0
      %2024 = vmatpush1.bf16.msra.mxu0 %v2021
      %2025 = vmatprep.subr.bf16.mxu0 0
      %2026 = vmatpush1.bf16.msra.mxu0 0
      %2027 = vmatprep.subr.bf16.mxu0 0
      %2028 = vmatpush1.bf16.msra.mxu0 0
      %2029 = vmatprep.subr.bf16.mxu0 0
      %2030 = vmatpush1.bf16.msra.mxu0 0
      %2031 = vmatprep.subr.bf16.mxu0 0
      %2032 = vmatpush1.bf16.msra.mxu0 0
      %2033 = vmatprep.subr.bf16.mxu0 0
      %2034 = vmatpush1.bf16.msra.mxu0 0
      %2035 = vmatprep.subr.bf16.mxu0 0
      %2036 = vmatpush1.bf16.msra.mxu0 0
      %2037 = vmatprep.subr.bf16.mxu0 0
      %2038 = vmatpush1.bf16.msra.mxu0 0
      %2039 = vmatprep.subr.bf16.mxu0 0
      %2040 = vmatpush1.bf16.msra.mxu0 0
      %2041 = vmatprep.subr.bf16.mxu0 0
      %2042 = vmatpush1.bf16.msra.mxu0 0
      %2043 = vmatprep.subr.bf16.mxu0 0
      %2044 = vmatpush1.bf16.msra.mxu0 0
      %2045 = vmatprep.subr.bf16.mxu0 0
      %2046 = vmatpush1.bf16.msra.mxu0 0
      %2047 = vmatprep.subr.bf16.mxu0 0
      %2048 = vmatpush1.bf16.msra.mxu0 0
      %2049 = vmatprep.subr.bf16.mxu0 0
      %2050 = vmatpush1.bf16.msra.mxu0 0
      %2051 = vmatprep.subr.bf16.mxu0 0
      %2052 = vmatpush1.bf16.msra.mxu0 0
      %2053 = vmatprep.subr.bf16.mxu0 0
      %2054 = vmatpush1.bf16.msra.mxu0 0
      %2055 = vmatprep.mubr.bf16.mxu0 0
      %2056 = vmatmul.mubr.bf16.gmra.mrb[0].mxu0 %v2018
      %v2057 = vpop.f32.mrb[0].mxu0
      %v2058 = vadd.f32 0.0, %v2057
      %v2059 = vpop.f32.mrb[0].mxu0
      %v2060 = vpop.f32.mrb[0].mxu0
      %v2061 = vpop.f32.mrb[0].mxu0
      %2062 = vdwg.mxu0
      %v2064 = vsel %vm670, %v1969, 0
      %v2067 = vsel %vm898, %v1743, 0
      %2069 = vmatprep.subr.bf16.mxu0 0
      %2070 = vmatpush1.bf16.msra.mxu0 %v2067
      %2071 = vmatprep.subr.bf16.mxu0 0
      %2072 = vmatpush1.bf16.msra.mxu0 0
      %2073 = vmatprep.subr.bf16.mxu0 0
      %2074 = vmatpush1.bf16.msra.mxu0 0
      %2075 = vmatprep.subr.bf16.mxu0 0
      %2076 = vmatpush1.bf16.msra.mxu0 0
      %2077 = vmatprep.subr.bf16.mxu0 0
      %2078 = vmatpush1.bf16.msra.mxu0 0
      %2079 = vmatprep.subr.bf16.mxu0 0
      %2080 = vmatpush1.bf16.msra.mxu0 0
      %2081 = vmatprep.subr.bf16.mxu0 0
      %2082 = vmatpush1.bf16.msra.mxu0 0
      %2083 = vmatprep.subr.bf16.mxu0 0
      %2084 = vmatpush1.bf16.msra.mxu0 0
      %2085 = vmatprep.subr.bf16.mxu0 0
      %2086 = vmatpush1.bf16.msra.mxu0 0
      %2087 = vmatprep.subr.bf16.mxu0 0
      %2088 = vmatpush1.bf16.msra.mxu0 0
      %2089 = vmatprep.subr.bf16.mxu0 0
      %2090 = vmatpush1.bf16.msra.mxu0 0
      %2091 = vmatprep.subr.bf16.mxu0 0
      %2092 = vmatpush1.bf16.msra.mxu0 0
      %2093 = vmatprep.subr.bf16.mxu0 0
      %2094 = vmatpush1.bf16.msra.mxu0 0
      %2095 = vmatprep.subr.bf16.mxu0 0
      %2096 = vmatpush1.bf16.msra.mxu0 0
      %2097 = vmatprep.subr.bf16.mxu0 0
      %2098 = vmatpush1.bf16.msra.mxu0 0
      %2099 = vmatprep.subr.bf16.mxu0 0
      %2100 = vmatpush1.bf16.msra.mxu0 0
      %2101 = vmatprep.mubr.bf16.mxu0 0
      %2102 = vmatmul.mubr.bf16.gmra.mrb[0].mxu0 %v2064
      %v2103 = vpop.f32.mrb[0].mxu0
      %v2104 = vadd.f32 0.0, %v2103
      %v2105 = vpop.f32.mrb[0].mxu0
      %v2106 = vpop.f32.mrb[0].mxu0
      %v2107 = vpop.f32.mrb[0].mxu0
      %2108 = vdwg.mxu0
      %v2110 = vsel %vm670, %v1970, 0
      %v2113 = vsel %vm898, %v1746, 0
      %2115 = vmatprep.subr.bf16.mxu0 0
      %2116 = vmatpush1.bf16.msra.mxu0 %v2113
      %2117 = vmatprep.subr.bf16.mxu0 0
      %2118 = vmatpush1.bf16.msra.mxu0 0
      %2119 = vmatprep.subr.bf16.mxu0 0
      %2120 = vmatpush1.bf16.msra.mxu0 0
      %2121 = vmatprep.subr.bf16.mxu0 0
      %2122 = vmatpush1.bf16.msra.mxu0 0
      %2123 = vmatprep.subr.bf16.mxu0 0
      %2124 = vmatpush1.bf16.msra.mxu0 0
      %2125 = vmatprep.subr.bf16.mxu0 0
      %2126 = vmatpush1.bf16.msra.mxu0 0
      %2127 = vmatprep.subr.bf16.mxu0 0
      %2128 = vmatpush1.bf16.msra.mxu0 0
      %2129 = vmatprep.subr.bf16.mxu0 0
      %2130 = vmatpush1.bf16.msra.mxu0 0
      %2131 = vmatprep.subr.bf16.mxu0 0
      %2132 = vmatpush1.bf16.msra.mxu0 0
      %2133 = vmatprep.subr.bf16.mxu0 0
      %2134 = vmatpush1.bf16.msra.mxu0 0
      %2135 = vmatprep.subr.bf16.mxu0 0
      %2136 = vmatpush1.bf16.msra.mxu0 0
      %2137 = vmatprep.subr.bf16.mxu0 0
      %2138 = vmatpush1.bf16.msra.mxu0 0
      %2139 = vmatprep.subr.bf16.mxu0 0
      %2140 = vmatpush1.bf16.msra.mxu0 0
      %2141 = vmatprep.subr.bf16.mxu0 0
      %2142 = vmatpush1.bf16.msra.mxu0 0
      %2143 = vmatprep.subr.bf16.mxu0 0
      %2144 = vmatpush1.bf16.msra.mxu0 0
      %2145 = vmatprep.subr.bf16.mxu0 0
      %2146 = vmatpush1.bf16.msra.mxu0 0
      %2147 = vmatprep.mubr.bf16.mxu0 0
      %2148 = vmatmul.mubr.bf16.gmra.mrb[0].mxu0 %v2110
      %v2149 = vpop.f32.mrb[0].mxu0
      %v2150 = vadd.f32 0.0, %v2149
      %v2151 = vpop.f32.mrb[0].mxu0
      %v2152 = vpop.f32.mrb[0].mxu0
      %v2153 = vpop.f32.mrb[0].mxu0
      %2154 = vdwg.mxu0
      %v2155 = vrcp.pop %v1957
      %v2156 = vrcp.pop %v1960
      %v2157 = vrcp.pop %v1963
      %v2158 = vrcp.pop %v1966
      %v2159 = vmul.f32 %v2012, %v2155
      %v2160 = vmul.f32 %v2058, %v2156
      %v2161 = vmul.f32 %v2104, %v2157
      %v2162 = vmul.f32 %v2150, %v2158
      %v2163 = vcombine.low %v2159, %v2161
      %v2164 = vcombine.high %v2159, %v2161
      %v2166 = vunpack.c.l.s4 1983009808
      %v2167 = vunpack.c.0.s8 %v2166
      %v2168 = vlaneseq
      %v2169 = vshrl.u32 %v2168, 7
      %v2170 = vsub.s32 %v2167, %v2169
      %v2171 = vrot.slane %v2163, %v2170
      %v2173 = vunpack.c.l.s4 1983009808
      %v2174 = vunpack.c.0.s8 %v2173
      %v2175 = vlaneseq
      %v2176 = vshrl.u32 %v2175, 7
      %v2177 = vsub.s32 %v2174, %v2176
      %v2178 = vrot.slane %v2164, %v2177
      %v2179 = vcombine.low %v2160, %v2162
      %v2180 = vcombine.high %v2160, %v2162
      %v2182 = vunpack.c.l.s4 1983009808
      %v2183 = vunpack.c.0.s8 %v2182
      %v2184 = vlaneseq
      %v2185 = vshrl.u32 %v2184, 7
      %v2186 = vsub.s32 %v2183, %v2185
      %v2187 = vrot.slane %v2179, %v2186
      %v2189 = vunpack.c.l.s4 1983009808
      %v2190 = vunpack.c.0.s8 %v2189
      %v2191 = vlaneseq
      %v2192 = vshrl.u32 %v2191, 7
      %v2193 = vsub.s32 %v2190, %v2192
      %v2194 = vrot.slane %v2180, %v2193
      %v2195 = vcombine.low %v2171, %v2187
      %v2196 = vcombine.high %v2171, %v2187
      %v2198 = vunpack.c.l.s4 1934713408
      %v2199 = vunpack.c.0.s8 %v2198
      %v2200 = vlaneseq
      %v2201 = vshrl.u32 %v2200, 7
      %v2202 = vsub.s32 %v2199, %v2201
      %v2203 = vrot.slane %v2195, %v2202
      %v2205 = vunpack.c.l.s4 1934713408
      %v2206 = vunpack.c.0.s8 %v2205
      %v2207 = vlaneseq
      %v2208 = vshrl.u32 %v2207, 7
      %v2209 = vsub.s32 %v2206, %v2208
      %v2210 = vrot.slane %v2196, %v2209
      %v2211 = vcombine.low %v2178, %v2194
      %v2212 = vcombine.high %v2178, %v2194
      %v2214 = vunpack.c.l.s4 1934713408
      %v2215 = vunpack.c.0.s8 %v2214
      %v2216 = vlaneseq
      %v2217 = vshrl.u32 %v2216, 7
      %v2218 = vsub.s32 %v2215, %v2217
      %v2219 = vrot.slane %v2211, %v2218
      %v2221 = vunpack.c.l.s4 1934713408
      %v2222 = vunpack.c.0.s8 %v2221
      %v2223 = vlaneseq
      %v2224 = vshrl.u32 %v2223, 7
      %v2225 = vsub.s32 %v2222, %v2224
      %v2226 = vrot.slane %v2212, %v2225
      %v2227 = vcombine.high %v2203, 0.0
      %v2228 = vcombine.high %v2210, 0.0
      %v2229 = vcombine.high %v2219, 0.0
      %v2230 = vcombine.high %v2226, 0.0
      %v2231 = vcombine.low %v2203, %v2210
      %v2233 = vunpack.c.l.s4 1983009808
      %v2234 = vunpack.c.0.s8 %v2233
      %v2235 = vlaneseq
      %v2236 = vshrl.u32 %v2235, 7
      %v2237 = vsub.s32 %v2234, %v2236
      %v2238 = vrot.slane %v2231, %v2237
      %v2239 = vcombine.low %v2227, %v2228
      %v2241 = vunpack.c.l.s4 1983009808
      %v2242 = vunpack.c.0.s8 %v2241
      %v2243 = vlaneseq
      %v2244 = vshrl.u32 %v2243, 7
      %v2245 = vsub.s32 %v2242, %v2244
      %v2246 = vrot.slane %v2239, %v2245
      %v2247 = vcombine.low %v2219, %v2226
      %v2249 = vunpack.c.l.s4 1983009808
      %v2250 = vunpack.c.0.s8 %v2249
      %v2251 = vlaneseq
      %v2252 = vshrl.u32 %v2251, 7
      %v2253 = vsub.s32 %v2250, %v2252
      %v2254 = vrot.slane %v2247, %v2253
      %v2255 = vcombine.low %v2229, %v2230
      %v2257 = vunpack.c.l.s4 1983009808
      %v2258 = vunpack.c.0.s8 %v2257
      %v2259 = vlaneseq
      %v2260 = vshrl.u32 %v2259, 7
      %v2261 = vsub.s32 %v2258, %v2260
      %v2262 = vrot.slane %v2255, %v2261
      %v2263 = vcombine.low %v2238, %v2246
      %v2264 = vcombine.high %v2238, %v2246
      %v2266 = vunpack.c.l.s4 1934713408
      %v2267 = vunpack.c.0.s8 %v2266
      %v2268 = vlaneseq
      %v2269 = vshrl.u32 %v2268, 7
      %v2270 = vsub.s32 %v2267, %v2269
      %v2271 = vrot.slane %v2263, %v2270
      %v2273 = vunpack.c.l.s4 1934713408
      %v2274 = vunpack.c.0.s8 %v2273
      %v2275 = vlaneseq
      %v2276 = vshrl.u32 %v2275, 7
      %v2277 = vsub.s32 %v2274, %v2276
      %v2278 = vrot.slane %v2264, %v2277
      %v2279 = vcombine.low %v2254, %v2262
      %v2280 = vcombine.high %v2254, %v2262
      %v2282 = vunpack.c.l.s4 1934713408
      %v2283 = vunpack.c.0.s8 %v2282
      %v2284 = vlaneseq
      %v2285 = vshrl.u32 %v2284, 7
      %v2286 = vsub.s32 %v2283, %v2285
      %v2287 = vrot.slane %v2279, %v2286
      %v2289 = vunpack.c.l.s4 1934713408
      %v2290 = vunpack.c.0.s8 %v2289
      %v2291 = vlaneseq
      %v2292 = vshrl.u32 %v2291, 7
      %v2293 = vsub.s32 %v2290, %v2292
      %v2294 = vrot.slane %v2280, %v2293
      %v2295 = vcombine.low %v2271, %v2287
      %v2296 = vcombine.high %v2271, %v2287
      %v2297 = vcombine.low %v2278, %v2294
      %v2298 = vcombine.high %v2278, %v2294
      %2300 = vrot.lane.b32.xlu0 %v2296, 8
      %v2301 = vpop.permute.xlu0 %2300
      %2304 = vrot.lane.b32.xlu0 %v2297, 16
      %v2305 = vpop.permute.xlu0 %2304
      %2308 = vrot.lane.b32.xlu0 %v2298, 24
      %v2309 = vpop.permute.xlu0 %2308
      %v2311 = vsel %vm670, %v2295, %v2301
      %v2312 = vsel %vm1237, %v2311, %v2305
      %v2313 = vsel %vm1239, %v2312, %v2309
      %v2314 = vpack.c.bf16 %v2313, %v1240
      %v2315 = vld [vmem:[%s4] sm:$0xf]
      %v2316 = vld [vmem:[%s4 + $0x4] sm:$0xf]
      %v2317 = vld [vmem:[%s4 + $0x8] sm:$0xf]
      %v2318 = vld [vmem:[%s4 + $0xc] sm:$0xf]
      %v2323 = vunpack.c.l.b16 %v2315
      %v2324 = vunpack.c.l.b16 %v2316
      %v2325 = vunpack.c.l.b16 %v2317
      %v2326 = vunpack.c.l.b16 %v2318
      %v2327 = vpack.c.b16 %v2324, %v2323
      %v2328 = vpack.c.b16 %v2326, %v2325
      %v2332 = vsel %vm56, %v2314, 0
      %2334 = vmatprep.subr.bf16.mxu0 0
      %2335 = vmatpush1.bf16.msra.mxu0 %v2327
      %2336 = vmatprep.subr.bf16.mxu0 0
      %2337 = vmatpush1.bf16.msra.mxu0 %v2328
      %2338 = vmatprep.subr.bf16.mxu0 0
      %2339 = vmatpush1.bf16.msra.mxu0 0
      %2340 = vmatprep.subr.bf16.mxu0 0
      %2341 = vmatpush1.bf16.msra.mxu0 0
      %2342 = vmatprep.subr.bf16.mxu0 0
      %2343 = vmatpush1.bf16.msra.mxu0 0
      %2344 = vmatprep.subr.bf16.mxu0 0
      %2345 = vmatpush1.bf16.msra.mxu0 0
      %2346 = vmatprep.subr.bf16.mxu0 0
      %2347 = vmatpush1.bf16.msra.mxu0 0
      %2348 = vmatprep.subr.bf16.mxu0 0
      %2349 = vmatpush1.bf16.msra.mxu0 0
      %2350 = vmatprep.subr.bf16.mxu0 0
      %2351 = vmatpush1.bf16.msra.mxu0 0
      %2352 = vmatprep.subr.bf16.mxu0 0
      %2353 = vmatpush1.bf16.msra.mxu0 0
      %2354 = vmatprep.subr.bf16.mxu0 0
      %2355 = vmatpush1.bf16.msra.mxu0 0
      %2356 = vmatprep.subr.bf16.mxu0 0
      %2357 = vmatpush1.bf16.msra.mxu0 0
      %2358 = vmatprep.subr.bf16.mxu0 0
      %2359 = vmatpush1.bf16.msra.mxu0 0
      %2360 = vmatprep.subr.bf16.mxu0 0
      %2361 = vmatpush1.bf16.msra.mxu0 0
      %2362 = vmatprep.subr.bf16.mxu0 0
      %2363 = vmatpush1.bf16.msra.mxu0 0
      %2364 = vmatprep.subr.bf16.mxu0 0
      %2365 = vmatpush1.bf16.msra.mxu0 0
      %2366 = vmatprep.mubr.bf16.mxu0 0
      %2367 = vmatmul.mubr.bf16.gmra.mrb[0].mxu0 %v2332
      %v2368 = vpop.f32.mrb[0].mxu0
      %v2369 = vadd.f32 0.0, %v2368
      %v2370 = vpop.f32.mrb[0].mxu0
      %v2371 = vpop.f32.mrb[0].mxu0
      %v2372 = vadd.f32 0.0, %v2371
      %v2373 = vpop.f32.mrb[0].mxu0
      %2374 = vdwg.mxu0
      %v2375 = vadd.f32 %v52, %v2369
      %v2376 = vadd.f32 %v53, %v2372
      %v2377 = vld [vmem:[%s5] sm:$0x1]
      %v2378 = vld [vmem:[%s6] sm:$0x1]
      %v2379 = vsel %vm56, %v2375, 0.0
      %2380 = vadd.xlane.f32.xlu0 %v2379
      %v2381 = vpop.xlane.xlu0 %2380
      %v2382 = vsel %vm56, %v2376, 0.0
      %2383 = vadd.xlane.f32.xlu0 %v2382
      %v2384 = vpop.xlane.xlu0 %2383
      %v2385 = vmul.f32 %v2381, %v63
      %v2386 = vmul.f32 %v2384, %v63
      %v2387 = vsub.f32 %v2375, %v2385
      %v2388 = vsub.f32 %v2376, %v2386
      %v2389 = vmul.f32 %v2387, %v2387
      %v2390 = vmul.f32 %v2388, %v2388
      %v2391 = vsel %vm56, %v2389, 0.0
      %2392 = vadd.xlane.f32.xlu0 %v2391
      %v2393 = vpop.xlane.xlu0 %2392
      %v2394 = vsel %vm56, %v2390, 0.0
      %2395 = vadd.xlane.f32.xlu0 %v2394
      %v2396 = vpop.xlane.xlu0 %2395
      %v2397 = vmul.f32 %v2393, %v63
      %v2398 = vmul.f32 %v2396, %v63
      %v2399 = vadd.f32 %v2397, 1e-05
      %v2400 = vadd.f32 %v2398, 1e-05
      %v2401 = vrsqrt.pop %v2399
      %v2402 = vrsqrt.pop %v2400
      %v2403 = vmul.f32 %v2387, %v2401
      %v2404 = vmul.f32 %v2388, %v2402
      %v2406 = vlaneseq
      %v2407 = vshrl.u32 %v2406, 7
      %v2408 = vsub.s32 0, %v2407
      %v2409 = vrot.slane %v2377, %v2408
      %v2411 = vmul.f32 %v2403, %v2409
      %v2412 = vmul.f32 %v2404, %v2409
      %v2414 = vlaneseq
      %v2415 = vshrl.u32 %v2414, 7
      %v2416 = vsub.s32 0, %v2415
      %v2417 = vrot.slane %v2378, %v2416
      %v2419 = vadd.f32 %v2411, %v2417
      %v2420 = vadd.f32 %v2412, %v2417
      %v2421 = vpack.c.bf16 %v2420, %v2419
      %2422 = vst.msk [vmem:[#allocation2] sm:$0xff] %vm56, %v2421
      %2423 = vst.msk [vmem:[#allocation3] sm:$0xff] %vm56, %v2375
      %2424 = vst.msk [vmem:[#allocation3 + $0x8] sm:$0xff] %vm56, %v2376
    $region45: #{tpu_custom_call.1} parent=1 // pred_fallthru
      _
    %v2425 = vld [vmem:[#allocation2] sm:$0xff]
    %v2426 = vld [vmem:[#allocation4] sm:$0xf]
    %v2427 = vld [vmem:[#allocation4 + $0x4] sm:$0xf]
    %v2428 = vld [vmem:[#allocation4 + $0x8] sm:$0xf]
    %v2429 = vld [vmem:[#allocation4 + $0xc] sm:$0xf]
    %v2434 = vunpack.c.l.b16 %v2426
    %v2435 = vunpack.c.l.b16 %v2427
    %v2436 = vunpack.c.l.b16 %v2428
    %v2437 = vunpack.c.l.b16 %v2429
    %v2438 = vpack.c.b16 %v2435, %v2434
    %v2439 = vpack.c.b16 %v2437, %v2436
    %vm2442 = vcmask 261120
    %v2444 = vsel %vm2442, %v2425, 0
    %2446 = vmatprep.subr.bf16.mxu0 0
    %2447 = vmatpush1.bf16.msra.mxu0 %v2438
    %2448 = vmatprep.subr.bf16.mxu0 0
    %2449 = vmatpush1.bf16.msra.mxu0 %v2439
    %2450 = vmatprep.subr.bf16.mxu0 0
    %2451 = vmatpush1.bf16.msra.mxu0 0
    %2452 = vmatprep.subr.bf16.mxu0 0
    %2453 = vmatpush1.bf16.msra.mxu0 0
    %2454 = vmatprep.subr.bf16.mxu0 0
    %2455 = vmatpush1.bf16.msra.mxu0 0
    %2456 = vmatprep.subr.bf16.mxu0 0
    %2457 = vmatpush1.bf16.msra.mxu0 0
    %2458 = vmatprep.subr.bf16.mxu0 0
    %2459 = vmatpush1.bf16.msra.mxu0 0
    %2460 = vmatprep.subr.bf16.mxu0 0
    %2461 = vmatpush1.bf16.msra.mxu0 0
    %2462 = vmatprep.subr.bf16.mxu0 0
    %2463 = vmatpush1.bf16.msra.mxu0 0
    %2464 = vmatprep.subr.bf16.mxu0 0
    %2465 = vmatpush1.bf16.msra.mxu0 0
    %2466 = vmatprep.subr.bf16.mxu0 0
    %2467 = vmatpush1.bf16.msra.mxu0 0
    %2468 = vmatprep.subr.bf16.mxu0 0
    %2469 = vmatpush1.bf16.msra.mxu0 0
    %2470 = vmatprep.subr.bf16.mxu0 0
    %2471 = vmatpush1.bf16.msra.mxu0 0
    %2472 = vmatprep.subr.bf16.mxu0 0
    %2473 = vmatpush1.bf16.msra.mxu0 0
    %2474 = vmatprep.subr.bf16.mxu0 0
    %2475 = vmatpush1.bf16.msra.mxu0 0
    %2476 = vmatprep.subr.bf16.mxu0 0
    %2477 = vmatpush1.bf16.msra.mxu0 0
    %2478 = vmatprep.mubr.bf16.mxu0 0
    %2479 = vmatmul.mubr.bf16.gmra.mrb[0].mxu0 %v2444
    %v2480 = vpop.f32.mrb[0].mxu0
    %v2481 = vadd.f32 0.0, %v2480
    %v2482 = vpop.f32.mrb[0].mxu0
    %v2483 = vpop.f32.mrb[0].mxu0
    %v2484 = vadd.f32 0.0, %v2483
    %v2485 = vpop.f32.mrb[0].mxu0
    %2486 = vdwg.mxu0
    %v2487 = vmax.f32 %v2481, 0.0
    %v2488 = vmax.f32 %v2484, 0.0
    %v2489 = vpack.c.bf16 %v2488, %v2487
    %v2490 = vld [vmem:[#allocation3] sm:$0xff]
    %v2491 = vld [vmem:[#allocation3 + $0x8] sm:$0xff]
    %v2492 = vld [vmem:[%s8] sm:$0xf]
    %v2493 = vld [vmem:[%s8 + $0x4] sm:$0xf]
    %v2494 = vld [vmem:[%s8 + $0x8] sm:$0xf]
    %v2495 = vld [vmem:[%s8 + $0xc] sm:$0xf]
    %v2496 = vld [vmem:[%s8 + $0x10] sm:$0xf]
    %v2497 = vld [vmem:[%s8 + $0x14] sm:$0xf]
    %v2498 = vld [vmem:[%s8 + $0x18] sm:$0xf]
    %v2499 = vld [vmem:[%s8 + $0x1c] sm:$0xf]
    %v2508 = vunpack.c.l.b16 %v2492
    %v2509 = vunpack.c.l.b16 %v2493
    %v2510 = vunpack.c.l.b16 %v2494
    %v2511 = vunpack.c.l.b16 %v2495
    %v2512 = vunpack.c.l.b16 %v2496
    %v2513 = vunpack.c.l.b16 %v2497
    %v2514 = vunpack.c.l.b16 %v2498
    %v2515 = vunpack.c.l.b16 %v2499
    %v2516 = vpack.c.b16 %v2509, %v2508
    %v2517 = vpack.c.b16 %v2511, %v2510
    %v2518 = vpack.c.b16 %v2513, %v2512
    %v2519 = vpack.c.b16 %v2515, %v2514
    %vm2524 = vcmask 523264
    %v2526 = vsel %vm2524, %v2489, 0
    %2528 = vmatprep.subr.bf16.mxu0 0
    %2529 = vmatpush1.bf16.msra.mxu0 %v2516
    %2530 = vmatprep.subr.bf16.mxu0 0
    %2531 = vmatpush1.bf16.msra.mxu0 %v2517
    %2532 = vmatprep.subr.bf16.mxu0 0
    %2533 = vmatpush1.bf16.msra.mxu0 %v2518
    %2534 = vmatprep.subr.bf16.mxu0 0
    %2535 = vmatpush1.bf16.msra.mxu0 %v2519
    %2536 = vmatprep.subr.bf16.mxu0 0
    %2537 = vmatpush1.bf16.msra.mxu0 0
    %2538 = vmatprep.subr.bf16.mxu0 0
    %2539 = vmatpush1.bf16.msra.mxu0 0
    %2540 = vmatprep.subr.bf16.mxu0 0
    %2541 = vmatpush1.bf16.msra.mxu0 0
    %2542 = vmatprep.subr.bf16.mxu0 0
    %2543 = vmatpush1.bf16.msra.mxu0 0
    %2544 = vmatprep.subr.bf16.mxu0 0
    %2545 = vmatpush1.bf16.msra.mxu0 0
    %2546 = vmatprep.subr.bf16.mxu0 0
    %2547 = vmatpush1.bf16.msra.mxu0 0
    %2548 = vmatprep.subr.bf16.mxu0 0
    %2549 = vmatpush1.bf16.msra.mxu0 0
    %2550 = vmatprep.subr.bf16.mxu0 0
    %2551 = vmatpush1.bf16.msra.mxu0 0
    %2552 = vmatprep.subr.bf16.mxu0 0
    %2553 = vmatpush1.bf16.msra.mxu0 0
    %2554 = vmatprep.subr.bf16.mxu0 0
    %2555 = vmatpush1.bf16.msra.mxu0 0
    %2556 = vmatprep.subr.bf16.mxu0 0
    %2557 = vmatpush1.bf16.msra.mxu0 0
    %2558 = vmatprep.subr.bf16.mxu0 0
    %2559 = vmatpush1.bf16.msra.mxu0 0
    %2560 = vmatprep.mubr.bf16.mxu0 0
    %2561 = vmatmul.mubr.bf16.gmra.mrb[0].mxu0 %v2526
    %v2562 = vpop.f32.mrb[0].mxu0
    %v2563 = vadd.f32 0.0, %v2562
    %v2564 = vpop.f32.mrb[0].mxu0
    %v2565 = vpop.f32.mrb[0].mxu0
    %v2566 = vadd.f32 0.0, %v2565
    %v2567 = vpop.f32.mrb[0].mxu0
    %2568 = vdwg.mxu0
    %v2569 = vadd.f32 %v2490, %v2563
    %v2570 = vadd.f32 %v2491, %v2566
    %2571 = vst.msk [vmem:[#allocation3] sm:$0xff] %vm2442, %v2569
    %2572 = vst.msk [vmem:[#allocation3 + $0x8] sm:$0xff] %vm2442, %v2570
    // Predicated region
    $region46: #{tpu_custom_call.1} parent=1 // pred_check
      %p2573 = pneg %p48
    $region47: #{tpu_custom_call.1} parent=1 // pred_check_branch
      %2575 = sbr.rel (%p2573) target = $region49
    $region48: #{tpu_custom_call.1} parent=1 // pred_region
      %v2576 = vld [vmem:[#allocation3] sm:$0xff]
      %v2577 = vld [vmem:[#allocation3 + $0x8] sm:$0xff]
      %2578 = vst.msk [vmem:[#allocation7] sm:$0xff] %vm2442, %v2576
      %2579 = vst.msk [vmem:[#allocation7 + $0x8] sm:$0xff] %vm2442, %v2577
    $region49: #{tpu_custom_call.1} parent=1 // pred_fallthru
      _
    // Predicated region
    $region50: #{tpu_custom_call.1} parent=1 // pred_check
      _
    $region51: #{tpu_custom_call.1} parent=1 // pred_check_branch
      %2581 = sbr.rel (0) target = $region53
    $region52: #{tpu_custom_call.1} parent=1 // pred_region
      %s2583 = ssub.s32 256, 256
      %2584 = vsyncadd [#allocation6], %s2583
      %s2585 = sshll.u32 [#allocation7], 4
      %s2586 = int_to_ptr.vmem [resolvable:$true] %s2585
      %2591 = dma.vmem_to_hbm [thread:$0]  %s2586, 256, %s9, [#allocation6], 128, 128, 8
    $region53: #{tpu_custom_call.1} parent=1 // pred_fallthru
      _
    // Predicated region
    $region54: #{tpu_custom_call.1} parent=1 // pred_check
      _
    $region55: #{tpu_custom_call.1} parent=1 // pred_check_branch
      %2593 = sbr.rel (0) target = $region57
    $region56: #{tpu_custom_call.1} parent=1 // pred_region
      %2594 = dma.done [#allocation6], 256
    $region57: #{tpu_custom_call.1} parent=1 // pred_fallthru
      _
    %2595 = vsyncpa [#allocation5], 1
    %2596 = vsyncpa [#allocation6], 1

</llo_original>
